<compile_context>
chip_gen: v5e
topology: v5e:2x2
jax: 0.10.0
libtpu: 0.0.40
codegen_flags: <defaults>
</compile_context>

<pallas_src>
import functools

import jax
import jax.numpy as jnp
from jax.experimental import pallas as pl
from jax.experimental.pallas import tpu as pltpu


# ----------------------------- configuration -------------------------------
INPUT_CH = 3            # embed channels
INPUT_CH_POS = 12       # embed_pos channels
GEO_FEAT_DIM = 16       # config['decoder']['geo_feat_dim']
HIDDEN_DIM = 64         # config['decoder']['hidden_dim']        (SDF net)
HIDDEN_DIM_COLOR = 64   # config['decoder']['hidden_dim_color']
BETA_MIN = 0.0001

X_DIM = 16                          # INPUT_CH + INPUT_CH_POS (15) padded to 16
WX_ROWS = 2 * HIDDEN_DIM            # stacked [sdf layer1 ; color layer1 pos] = 128
WH_ROWS = 72                        # stacked [Wcg(64) ; sdf(1) ; unc(1) ; pad(6)]
OUT_ROWS = 8                        # rgb(3) + sdf(1) + beta(1) + pad(3)


def _softplus(x):
    # numerically-stable softplus (matches torch.nn.Softplus to float precision)
    return jnp.maximum(x, 0.0) + jnp.log1p(jnp.exp(-jnp.abs(x)))


def _round_up(v, m):
    return ((v + m - 1) // m) * m


# ------------------------------- kernel ------------------------------------
def colorsdf_kernel(x_ref, wx_ref, wh_ref, bh_ref, wc2_ref, wc3_ref, out_ref):
    f32 = jnp.float32
    bf16 = jnp.bfloat16

    x = x_ref[...]                                               # (16, TN) bf16

    # MXU pass 1: stacked (128,16)@(16,TN)
    #   rows   0:64  -> SDF layer 1 (ReLU below)
    #   rows  64:128 -> color layer 1, embed_pos part (kept f32, no activation)
    xw = jnp.dot(wx_ref[...], x, preferred_element_type=f32)     # (128, TN)
    h0 = jnp.maximum(xw[0:HIDDEN_DIM, :], 0.0)                   # (64, TN) f32
    xc = xw[HIDDEN_DIM:WX_ROWS, :]                               # (64, TN) f32

    # MXU pass 2: stacked consumers of h0 = (72,64)@(64,TN) + (72,1)
    #   rows   0:64 -> folded geo->color path (Wcg @ h0 + bcg)
    #   row      64 -> sdf head   (ws2 folded in)
    #   row      65 -> uncertainty head
    hm = (jnp.dot(wh_ref[...], h0.astype(bf16), preferred_element_type=f32)
          + bh_ref[...])                                         # (72, TN)
    c0 = jnp.maximum(hm[0:HIDDEN_DIM_COLOR, :] + xc, 0.0).astype(bf16)
    sdf = hm[HIDDEN_DIM_COLOR:HIDDEN_DIM_COLOR + 1, :]           # (1, TN)
    beta = _softplus(hm[HIDDEN_DIM_COLOR + 1:HIDDEN_DIM_COLOR + 2, :]) + BETA_MIN

    # MXU passes 3/4: color MLP (64->64 ReLU, 64->3 padded to 8 output rows)
    c1 = jnp.maximum(jnp.dot(wc2_ref[...], c0, preferred_element_type=f32), 0.0)
    rgb8 = jnp.dot(wc3_ref[...], c1.astype(bf16),
                   preferred_element_type=f32)                   # (8, TN), rows 3:8 zero

    # Unmasked full-slab store (rows 3..7 already zero via the padded weight),
    # then two masked single-row overwrites for sdf / beta.
    out_ref[...] = rgb8.astype(out_ref.dtype)
    out_ref[3:4, :] = sdf.astype(out_ref.dtype)
    out_ref[4:5, :] = beta.astype(out_ref.dtype)


# ------------------------- weight packing / wrapper --------------------------
def pack_params(p):
    """Fold & stack the natural (in, out) PyTorch-style params into 5 arrays.

    All algebraic folds are computed in f32 and only cast to bf16 at the end.
    """
    f32 = jnp.float32
    bf16 = jnp.bfloat16

    # --- stacked x-consumer: (128, 16) = [W1 ; Wc1x] -------------------------
    # SDF layer 1: (15,64) -> zero-pad to (16,64) -> transpose -> (64,16)
    w1 = jnp.zeros((X_DIM, HIDDEN_DIM), f32)
    w1 = w1.at[:INPUT_CH + INPUT_CH_POS].set(p["ws1"])
    # color layer 1 "pos" part acting directly on x (pos lives at rows 3:15)
    wc1x = jnp.zeros((X_DIM, HIDDEN_DIM_COLOR), f32)
    wc1x = wc1x.at[INPUT_CH:INPUT_CH + INPUT_CH_POS].set(p["wc1"][:INPUT_CH_POS])
    wx = jnp.concatenate([w1.T, wc1x.T], axis=0).astype(bf16)     # (128, 16)

    # --- stacked h0-consumer: (72, 64) + (72, 1) ------------------------------
    wc1_geo = p["wc1"][INPUT_CH_POS:]                             # (16, 64)
    # geo head folded through the color layer 1 geo columns:
    #   geo @ wc1_geo == h0 @ (ws2 @ wf @ wc1_geo) + bf @ wc1_geo
    wcg = (p["ws2"] @ p["wf"] @ wc1_geo).T                        # (64, 64)
    bcg = (p["bf"] @ wc1_geo).T                                   # (64, 1)
    # sdf / uncertainty heads folded through ws2
    whd = (p["ws2"] @ jnp.concatenate([p["wsdf"], p["wunc"]], axis=1)).T  # (2, 64)
    bhd = jnp.concatenate([p["bsdf"], p["bunc"]], axis=1).T               # (2, 1)
    pad_rows = WH_ROWS - HIDDEN_DIM_COLOR - 2
    wh = jnp.concatenate(
        [wcg, whd, jnp.zeros((pad_rows, HIDDEN_DIM), f32)], axis=0).astype(bf16)
    bh = jnp.concatenate(
        [bcg, bhd, jnp.zeros((pad_rows, 1), f32)], axis=0).astype(f32)    # (72, 1)

    # --- color MLP tail -------------------------------------------------------
    wc2 = p["wc2"].T.astype(bf16)                                 # (64, 64)
    wc3 = jnp.concatenate(
        [p["wc3"].T, jnp.zeros((OUT_ROWS - 3, HIDDEN_DIM_COLOR), f32)],
        axis=0).astype(bf16)                                      # (8, 64)

    return (wx, wh, bh, wc2, wc3)


def colorsdf_forward(embed, embed_pos, packed, *, tile_n=4096):
    N = embed.shape[0]
    # Keep at least 2 grid steps (v7x megacore sharding), never below 128 lanes.
    tn = max(128, min(tile_n, _round_up(-(-N // 2), 128)))
    n_tiles = pl.cdiv(N, tn)
    n_pad = n_tiles * tn

    # One lane-dense bf16 input slab (16, n_pad): rows 0-2 embed, 3-14 pos,
    # row 15 zero pad; extra points zero-padded and discarded after the kernel.
    x = jnp.concatenate([embed, embed_pos], axis=-1)              # (N, 15)
    x = jnp.pad(x, ((0, n_pad - N), (0, X_DIM - x.shape[1])))
    x_t = x.T.astype(jnp.bfloat16)                                # (16, n_pad)

    weight_specs = [pl.BlockSpec(w.shape, lambda i: (0, 0)) for w in packed]

    flops_pp = 2 * (WX_ROWS * X_DIM + WH_ROWS * HIDDEN_DIM
                    + HIDDEN_DIM_COLOR * HIDDEN_DIM_COLOR
                    + OUT_ROWS * HIDDEN_DIM_COLOR)
    cost = pl.CostEstimate(
        flops=flops_pp * n_pad,
        transcendentals=2 * n_pad,
        bytes_accessed=(X_DIM * 2 + OUT_ROWS * 4) * n_pad + 32 * 1024,
    )

    grid_spec = pltpu.PrefetchScalarGridSpec(
        num_scalar_prefetch=0,
        grid=(n_tiles,),
        in_specs=[pl.BlockSpec((X_DIM, tn), lambda i: (0, i))] + weight_specs,
        out_specs=pl.BlockSpec((OUT_ROWS, tn), lambda i: (0, i)),
    )

    out_t = pl.pallas_call(
        colorsdf_kernel,
        out_shape=jax.ShapeDtypeStruct((OUT_ROWS, n_pad), jnp.float32),
        grid_spec=grid_spec,
        compiler_params=pltpu.CompilerParams(
            dimension_semantics=("parallel",),
            vmem_limit_bytes=32 * 1024 * 1024),
        cost_estimate=cost,
    )(x_t, *packed)

    # rows 0-2 = rgb, 3 = sdf, 4 = beta; drop pad rows / pad points -> (N, 5)
    return out_t[:5, :N].T


# -------------------------- parameter construction --------------------------
def init_params(key):
    """Deterministic PyTorch-Linear-style init; weights stored as (in, out)."""
    ks = jax.random.split(key, 11)

    def linear_w(k, fan_in, fan_out):
        bound = 1.0 / jnp.sqrt(fan_in)
        return jax.random.uniform(k, (fan_in, fan_out), jnp.float32,
                                  minval=-bound, maxval=bound)

    def linear_b(k, fan_in, fan_out):
        bound = 1.0 / jnp.sqrt(fan_in)
        return jax.random.uniform(k, (1, fan_out), jnp.float32,
                                  minval=-bound, maxval=bound)

    sdf_in = INPUT_CH + INPUT_CH_POS            # 15
    col_in = INPUT_CH_POS + GEO_FEAT_DIM        # 28

    return dict(
        ws1=linear_w(ks[0], sdf_in, HIDDEN_DIM),                 # (15, 64)
        ws2=linear_w(ks[1], HIDDEN_DIM, GEO_FEAT_DIM),           # (64, 16)
        wf=linear_w(ks[2], GEO_FEAT_DIM, GEO_FEAT_DIM),          # (16, 16)
        bf=linear_b(ks[3], GEO_FEAT_DIM, GEO_FEAT_DIM),          # (1, 16)
        wsdf=linear_w(ks[4], GEO_FEAT_DIM, 1),                   # (16, 1)
        bsdf=linear_b(ks[5], GEO_FEAT_DIM, 1),                   # (1, 1)
        wunc=linear_w(ks[6], GEO_FEAT_DIM, 1),                   # (16, 1)
        bunc=linear_b(ks[7], GEO_FEAT_DIM, 1),                   # (1, 1)
        wc1=linear_w(ks[8], col_in, HIDDEN_DIM_COLOR),           # (28, 64)
        wc2=linear_w(ks[9], HIDDEN_DIM_COLOR, HIDDEN_DIM_COLOR), # (64, 64)
        wc3=linear_w(ks[10], HIDDEN_DIM_COLOR, 3),               # (64, 3)
    )


# --------------------------- pure-JAX reference ------------------------------
def reference_forward(embed, embed_pos, p):
    x = jnp.concatenate([embed, embed_pos], axis=-1)
    h = jnp.maximum(x @ p["ws1"], 0.0) @ p["ws2"]
    sdf = h @ p["wsdf"] + p["bsdf"]
    beta = jax.nn.softplus(h @ p["wunc"] + p["bunc"]) + BETA_MIN
    geo = h @ p["wf"] + p["bf"]
    c_in = jnp.concatenate([embed_pos, geo], axis=-1)
    c = jnp.maximum(c_in @ p["wc1"], 0.0)
    c = jnp.maximum(c @ p["wc2"], 0.0)
    rgb = c @ p["wc3"]
    return jnp.concatenate([rgb, sdf, beta], axis=-1)


# --------------------------------- main --------------------------------------
if __name__ == "__main__":
    key = jax.random.PRNGKey(0)
    k_emb, k_pos, k_par = jax.random.split(key, 3)

    N = 4096                     # -> 2 grid steps of 2048 (feeds both v7x TCs)
    embed = jax.random.normal(k_emb, (N, INPUT_CH), jnp.float32)
    embed_pos = jax.random.normal(k_pos, (N, INPUT_CH_POS), jnp.float32)
    params = init_params(k_par)
    packed = pack_params(params)

    fwd = jax.jit(functools.partial(colorsdf_forward, tile_n=4096))
    out = jax.block_until_ready(fwd(embed, embed_pos, packed))

    ref = reference_forward(embed, embed_pos, params)
    assert out.shape == (N, 5), out.shape
    max_err = float(jnp.max(jnp.abs(out - ref)))
    # bf16 operands with f32 accumulation (folded weights quantized once in
    # bf16) vs an all-f32 reference -> loose tolerance
    assert jnp.allclose(out, ref, atol=1e-1, rtol=1e-1), max_err

    print("KERNEL_OK")
</pallas_src>

<mosaic_0001>
module attributes {stable_mosaic.version = 11 : i64} {
  func.func @colorsdf_kernel(%arg0: i32, %arg1: memref<16x2048xbf16, #tpu.memory_space<vmem>>, %arg2: memref<128x16xbf16, #tpu.memory_space<vmem>>, %arg3: memref<72x64xbf16, #tpu.memory_space<vmem>>, %arg4: memref<72x1xf32, #tpu.memory_space<vmem>>, %arg5: memref<64x64xbf16, #tpu.memory_space<vmem>>, %arg6: memref<8x64xbf16, #tpu.memory_space<vmem>>, %arg7: memref<8x2048xf32, #tpu.memory_space<vmem>>) attributes {dimension_semantics = [#tpu.dimension_semantics<parallel>], iteration_bounds = array<i64: 2>, scalar_prefetch = 0 : i64, scratch_operands = 0 : i64, tpu.core_type = #tpu.core_type<tc>, window_params = [{transform_indices = @transform_0, window_bounds = array<i64: 16, 2048>}, {pipeline_mode = #tpu.pipeline_mode<synchronous>, transform_indices = @transform_1, window_bounds = array<i64: 128, 16>}, {pipeline_mode = #tpu.pipeline_mode<synchronous>, transform_indices = @transform_2, window_bounds = array<i64: 72, 64>}, {pipeline_mode = #tpu.pipeline_mode<synchronous>, transform_indices = @transform_3, window_bounds = array<i64: 72, 1>}, {pipeline_mode = #tpu.pipeline_mode<synchronous>, transform_indices = @transform_4, window_bounds = array<i64: 64, 64>}, {pipeline_mode = #tpu.pipeline_mode<synchronous>, transform_indices = @transform_5, window_bounds = array<i64: 8, 64>}, {transform_indices = @transform_6, window_bounds = array<i64: 8, 2048>}]} {
    %c0 = arith.constant 0 : index
    %c0_0 = arith.constant 0 : index
    %0 = vector.load %arg1[%c0, %c0_0] : memref<16x2048xbf16, #tpu.memory_space<vmem>>, vector<16x2048xbf16>
    %c0_1 = arith.constant 0 : index
    %c0_2 = arith.constant 0 : index
    %1 = vector.load %arg2[%c0_1, %c0_2] : memref<128x16xbf16, #tpu.memory_space<vmem>>, vector<128x16xbf16>
    %cst = arith.constant dense<0.000000e+00> : vector<128x2048xf32>
    %2 = tpu.matmul %1, %0, %cst {dimension_numbers = #tpu.dot_dimension_numbers<[1], [0], [0], [1], [0, 0, 1, 1], [], []>} : vector<128x16xbf16>, vector<16x2048xbf16>, vector<128x2048xf32> -> vector<128x2048xf32>
    %3 = vector.extract_strided_slice %2 {offsets = [0, 0], sizes = [64, 2048], strides = [1, 1]} : vector<128x2048xf32> to vector<64x2048xf32>
    %cst_3 = arith.constant 0.000000e+00 : f32
    %4 = vector.broadcast %cst_3 : f32 to vector<64x2048xf32>
    %5 = arith.maximumf %3, %4 : vector<64x2048xf32>
    %6 = vector.extract_strided_slice %2 {offsets = [64, 0], sizes = [64, 2048], strides = [1, 1]} : vector<128x2048xf32> to vector<64x2048xf32>
    %c0_4 = arith.constant 0 : index
    %c0_5 = arith.constant 0 : index
    %7 = vector.load %arg3[%c0_4, %c0_5] : memref<72x64xbf16, #tpu.memory_space<vmem>>, vector<72x64xbf16>
    %8 = arith.truncf %5 : vector<64x2048xf32> to vector<64x2048xbf16>
    %cst_6 = arith.constant dense<0.000000e+00> : vector<72x2048xf32>
    %9 = tpu.matmul %7, %8, %cst_6 {dimension_numbers = #tpu.dot_dimension_numbers<[1], [0], [0], [1], [0, 0, 1, 1], [], []>} : vector<72x64xbf16>, vector<64x2048xbf16>, vector<72x2048xf32> -> vector<72x2048xf32>
    %c0_7 = arith.constant 0 : index
    %c0_8 = arith.constant 0 : index
    %10 = vector.load %arg4[%c0_7, %c0_8] : memref<72x1xf32, #tpu.memory_space<vmem>>, vector<72x1xf32>
    %11 = vector.broadcast %10 : vector<72x1xf32> to vector<72x2048xf32>
    %12 = arith.addf %9, %11 : vector<72x2048xf32>
    %13 = vector.extract_strided_slice %12 {offsets = [0, 0], sizes = [64, 2048], strides = [1, 1]} : vector<72x2048xf32> to vector<64x2048xf32>
    %14 = arith.addf %13, %6 : vector<64x2048xf32>
    %cst_9 = arith.constant 0.000000e+00 : f32
    %15 = vector.broadcast %cst_9 : f32 to vector<64x2048xf32>
    %16 = arith.maximumf %14, %15 : vector<64x2048xf32>
    %17 = arith.truncf %16 : vector<64x2048xf32> to vector<64x2048xbf16>
    %18 = vector.extract_strided_slice %12 {offsets = [64, 0], sizes = [1, 2048], strides = [1, 1]} : vector<72x2048xf32> to vector<1x2048xf32>
    %19 = vector.extract_strided_slice %12 {offsets = [65, 0], sizes = [1, 2048], strides = [1, 1]} : vector<72x2048xf32> to vector<1x2048xf32>
    %cst_10 = arith.constant 0.000000e+00 : f32
    %20 = vector.broadcast %cst_10 : f32 to vector<1x2048xf32>
    %21 = arith.maximumf %19, %20 : vector<1x2048xf32>
    %22 = math.absf %19 : vector<1x2048xf32>
    %cst_11 = arith.constant 0.000000e+00 : f32
    %23 = vector.broadcast %cst_11 : f32 to vector<1x2048xf32>
    %24 = arith.subf %23, %22 : vector<1x2048xf32>
    %25 = math.exp %24 : vector<1x2048xf32>
    %26 = math.log1p %25 : vector<1x2048xf32>
    %27 = arith.addf %21, %26 : vector<1x2048xf32>
    %cst_12 = arith.constant 9.99999974E-5 : f32
    %28 = vector.broadcast %cst_12 : f32 to vector<1x2048xf32>
    %29 = arith.addf %27, %28 : vector<1x2048xf32>
    %c0_13 = arith.constant 0 : index
    %c0_14 = arith.constant 0 : index
    %30 = vector.load %arg5[%c0_13, %c0_14] : memref<64x64xbf16, #tpu.memory_space<vmem>>, vector<64x64xbf16>
    %cst_15 = arith.constant dense<0.000000e+00> : vector<64x2048xf32>
    %31 = tpu.matmul %30, %17, %cst_15 {dimension_numbers = #tpu.dot_dimension_numbers<[1], [0], [0], [1], [0, 0, 1, 1], [], []>} : vector<64x64xbf16>, vector<64x2048xbf16>, vector<64x2048xf32> -> vector<64x2048xf32>
    %cst_16 = arith.constant 0.000000e+00 : f32
    %32 = vector.broadcast %cst_16 : f32 to vector<64x2048xf32>
    %33 = arith.maximumf %31, %32 : vector<64x2048xf32>
    %c0_17 = arith.constant 0 : index
    %c0_18 = arith.constant 0 : index
    %34 = vector.load %arg6[%c0_17, %c0_18] : memref<8x64xbf16, #tpu.memory_space<vmem>>, vector<8x64xbf16>
    %35 = arith.truncf %33 : vector<64x2048xf32> to vector<64x2048xbf16>
    %cst_19 = arith.constant dense<0.000000e+00> : vector<8x2048xf32>
    %36 = tpu.matmul %34, %35, %cst_19 {dimension_numbers = #tpu.dot_dimension_numbers<[1], [0], [0], [1], [0, 0, 1, 1], [], []>} : vector<8x64xbf16>, vector<64x2048xbf16>, vector<8x2048xf32> -> vector<8x2048xf32>
    %c0_20 = arith.constant 0 : index
    %c0_21 = arith.constant 0 : index
    %37 = vector.load %arg7[%c0_20, %c0_21] : memref<8x2048xf32, #tpu.memory_space<vmem>>, vector<8x2048xf32>
    tpu.vector_store %arg7[%c0_20, %c0_21], %36 {strides = array<i32>} : memref<8x2048xf32, #tpu.memory_space<vmem>>, vector<8x2048xf32>,
    %c3 = arith.constant 3 : index
    %c0_22 = arith.constant 0 : index
    %38 = vector.load %arg7[%c3, %c0_22] : memref<8x2048xf32, #tpu.memory_space<vmem>>, vector<1x2048xf32>
    tpu.vector_store %arg7[%c3, %c0_22], %18 {strides = array<i32>} : memref<8x2048xf32, #tpu.memory_space<vmem>>, vector<1x2048xf32>,
    %c4 = arith.constant 4 : index
    %c0_23 = arith.constant 0 : index
    %39 = vector.load %arg7[%c4, %c0_23] : memref<8x2048xf32, #tpu.memory_space<vmem>>, vector<1x2048xf32>
    tpu.vector_store %arg7[%c4, %c0_23], %29 {strides = array<i32>} : memref<8x2048xf32, #tpu.memory_space<vmem>>, vector<1x2048xf32>,
    return
  }
  func.func @transform_0(%arg0: i32) -> (i32, i32) {
    %c0_i32 = arith.constant 0 : i32
    %c0_i32_0 = arith.constant 0 : i32
    return %c0_i32, %arg0 : i32, i32
  }
  func.func @transform_1(%arg0: i32) -> (i32, i32) {
    %c0_i32 = arith.constant 0 : i32
    %c0_i32_0 = arith.constant 0 : i32
    %c0_i32_1 = arith.constant 0 : i32
    return %c0_i32, %c0_i32_0 : i32, i32
  }
  func.func @transform_2(%arg0: i32) -> (i32, i32) {
    %c0_i32 = arith.constant 0 : i32
    %c0_i32_0 = arith.constant 0 : i32
    %c0_i32_1 = arith.constant 0 : i32
    return %c0_i32, %c0_i32_0 : i32, i32
  }
  func.func @transform_3(%arg0: i32) -> (i32, i32) {
    %c0_i32 = arith.constant 0 : i32
    %c0_i32_0 = arith.constant 0 : i32
    %c0_i32_1 = arith.constant 0 : i32
    return %c0_i32, %c0_i32_0 : i32, i32
  }
  func.func @transform_4(%arg0: i32) -> (i32, i32) {
    %c0_i32 = arith.constant 0 : i32
    %c0_i32_0 = arith.constant 0 : i32
    %c0_i32_1 = arith.constant 0 : i32
    return %c0_i32, %c0_i32_0 : i32, i32
  }
  func.func @transform_5(%arg0: i32) -> (i32, i32) {
    %c0_i32 = arith.constant 0 : i32
    %c0_i32_0 = arith.constant 0 : i32
    %c0_i32_1 = arith.constant 0 : i32
    return %c0_i32, %c0_i32_0 : i32, i32
  }
  func.func @transform_6(%arg0: i32) -> (i32, i32) {
    %c0_i32 = arith.constant 0 : i32
    %c0_i32_0 = arith.constant 0 : i32
    return %c0_i32, %arg0 : i32, i32
  }
}

</mosaic_0001>

<llo_original>
// kernel: colorsdf_forward.1
$region0: #{colorsdf_forward.1}
  #allocation0 [shape = 'u32[]', space=smem, size = 0x4, offset = 0x4, fixed_abs, tag = 'smem constant byte address 0x4 - core index']
  #allocation1 [shape = 'u32[72,128]{1,0:T(1,128)}', space=vmem, size = 0x9000, scoped, tag = 'internal scratch']
  %s0 = inlined_call_operand.vmem [shape: bf16[16,4096], index: 0, kind: input, shape index: {}]
  %s1 = inlined_call_operand.vmem [shape: bf16[128,16], index: 1, kind: input, shape index: {}]
  %s2 = inlined_call_operand.vmem [shape: bf16[72,64], index: 2, kind: input, shape index: {}]
  %s3 = inlined_call_operand.vmem [shape: f32[72,1], index: 3, kind: input, shape index: {}]
  %s4 = inlined_call_operand.vmem [shape: bf16[64,64], index: 4, kind: input, shape index: {}]
  %s5 = inlined_call_operand.vmem [shape: bf16[8,64], index: 5, kind: input, shape index: {}]
  %s6 = inlined_call_operand.vmem [shape: f32[8,4096], index: 6, kind: output, shape index: {}]
  %s7 = sld [smem:[#allocation0]]
  $region80: #{colorsdf_forward.1} parent=0
    _
  %s9 = ssub.s32 1, %s7
  %s10 = scalar_select 0, %s9, %s7
  $region1: #{colorsdf_forward.1} parent=0
    #allocation2 [shape = 'u8[131072]{0}', space=vmem, size = 0x20000, scoped, tag = 'input window, operand 0']
    loop: start=0, step=1, limit=4
    $region2: #{colorsdf_forward.1} parent=1 // loop_pre_header
      _
    $region3: #{colorsdf_forward.1} parent=1 // loop_header
      %s12 = sphi 0, %s16
      %p13 = scmp.ge.s32.totalorder %s12, 4
      %s22 = sphi 0, %s24
      %s25 = sphi 0, %s22
      %s26 = sphi 0, %s25
      %s42 = sphi 0, %s26
      %s46 = sphi 0, %s46
      %s48 = sphi 0, %s46
      %s49 = sphi 0, %s48
      %s63 = sphi 0, %s49
      %s67 = sphi 0, %s67
      %s69 = sphi 0, %s67
      %s70 = sphi 0, %s69
      %s84 = sphi 0, %s70
      %s88 = sphi 0, %s88
      %s90 = sphi 0, %s88
      %s91 = sphi 0, %s90
      %s105 = sphi 0, %s91
      %s109 = sphi 0, %s109
      %s111 = sphi 0, %s109
      %s112 = sphi 0, %s111
      %s126 = sphi 0, %s112
      %s130 = sphi 0, %s130
      %s132 = sphi 0, %s130
      %s133 = sphi 0, %s132
      %s147 = sphi 0, %s133
      %s153 = sphi 0, %s155
      %s156 = sphi 0, %s153
      %s157 = sphi 0, %s156
      %s173 = sphi 0, %s157
    $region4: #{colorsdf_forward.1} parent=1 // loop_header_branch
      %15 = sbr.rel (%p13) target = $region8
    $region5: #{colorsdf_forward.1} parent=1 // loop_body
      %s17 = ssub.s32 %s12, 1
      %s18 = ssub.s32 %s12, 2
      %s19 = sadd.s32 %s12, 1
      %s20 = ssub.s32 %s12, %s19
      %p21 = scmp.eq.s32.totalorder %s20, 0
      %s23 = sadd.s32 %s22, 1
      %s24 = scalar_select %p21, %s22, %s23
      %p27 = pneg %p21
      %p28 = scmp.eq.s32.totalorder %s12, 1
      %p29 = por %p27, %p28
      %p30 = scmp.ne.s32.totalorder %s22, %s25
      %p31 = scmp.eq.s32.totalorder %s12, 0
      %p32 = por %p30, %p31
      %p33 = scmp.ne.s32.totalorder %s22, %s25
      %p34 = scmp.eq.s32.totalorder %s17, 1
      %p35 = por %p33, %p34
      %p36 = scmp.ne.s32.totalorder %s25, %s26
      %p37 = scmp.eq.s32.totalorder %s17, 0
      %p38 = por %p36, %p37
      %p39 = scmp.ne.s32.totalorder %s25, %s26
      %p40 = scmp.eq.s32.totalorder %s18, 1
      %p41 = por %p39, %p40
      %p43 = scmp.ne.s32.totalorder %s26, %s42
      %p44 = scmp.eq.s32.totalorder %s18, 0
      %p45 = por %p43, %p44
      %s47 = sadd.s32 %s46, 1
      %p50 = scmp.eq.s32.totalorder %s12, 1
      %p51 = scmp.ne.s32.totalorder %s46, %s48
      %p52 = scmp.eq.s32.totalorder %s12, 0
      %p53 = por %p51, %p52
      %p54 = scmp.ne.s32.totalorder %s46, %s48
      %p55 = scmp.eq.s32.totalorder %s17, 1
      %p56 = por %p54, %p55
      %p57 = scmp.ne.s32.totalorder %s48, %s49
      %p58 = scmp.eq.s32.totalorder %s17, 0
      %p59 = por %p57, %p58
      %p60 = scmp.ne.s32.totalorder %s48, %s49
      %p61 = scmp.eq.s32.totalorder %s18, 1
      %p62 = por %p60, %p61
      %p64 = scmp.ne.s32.totalorder %s49, %s63
      %p65 = scmp.eq.s32.totalorder %s18, 0
      %p66 = por %p64, %p65
      %s68 = sadd.s32 %s67, 1
      %p71 = scmp.eq.s32.totalorder %s12, 1
      %p72 = scmp.ne.s32.totalorder %s67, %s69
      %p73 = scmp.eq.s32.totalorder %s12, 0
      %p74 = por %p72, %p73
      %p75 = scmp.ne.s32.totalorder %s67, %s69
      %p76 = scmp.eq.s32.totalorder %s17, 1
      %p77 = por %p75, %p76
      %p78 = scmp.ne.s32.totalorder %s69, %s70
      %p79 = scmp.eq.s32.totalorder %s17, 0
      %p80 = por %p78, %p79
      %p81 = scmp.ne.s32.totalorder %s69, %s70
      %p82 = scmp.eq.s32.totalorder %s18, 1
      %p83 = por %p81, %p82
      %p85 = scmp.ne.s32.totalorder %s70, %s84
      %p86 = scmp.eq.s32.totalorder %s18, 0
      %p87 = por %p85, %p86
      %s89 = sadd.s32 %s88, 1
      %p92 = scmp.eq.s32.totalorder %s12, 1
      %p93 = scmp.ne.s32.totalorder %s88, %s90
      %p94 = scmp.eq.s32.totalorder %s12, 0
      %p95 = por %p93, %p94
      %p96 = scmp.ne.s32.totalorder %s88, %s90
      %p97 = scmp.eq.s32.totalorder %s17, 1
      %p98 = por %p96, %p97
      %p99 = scmp.ne.s32.totalorder %s90, %s91
      %p100 = scmp.eq.s32.totalorder %s17, 0
      %p101 = por %p99, %p100
      %p102 = scmp.ne.s32.totalorder %s90, %s91
      %p103 = scmp.eq.s32.totalorder %s18, 1
      %p104 = por %p102, %p103
      %p106 = scmp.ne.s32.totalorder %s91, %s105
      %p107 = scmp.eq.s32.totalorder %s18, 0
      %p108 = por %p106, %p107
      %s110 = sadd.s32 %s109, 1
      %p113 = scmp.eq.s32.totalorder %s12, 1
      %p114 = scmp.ne.s32.totalorder %s109, %s111
      %p115 = scmp.eq.s32.totalorder %s12, 0
      %p116 = por %p114, %p115
      %p117 = scmp.ne.s32.totalorder %s109, %s111
      %p118 = scmp.eq.s32.totalorder %s17, 1
      %p119 = por %p117, %p118
      %p120 = scmp.ne.s32.totalorder %s111, %s112
      %p121 = scmp.eq.s32.totalorder %s17, 0
      %p122 = por %p120, %p121
      %p123 = scmp.ne.s32.totalorder %s111, %s112
      %p124 = scmp.eq.s32.totalorder %s18, 1
      %p125 = por %p123, %p124
      %p127 = scmp.ne.s32.totalorder %s112, %s126
      %p128 = scmp.eq.s32.totalorder %s18, 0
      %p129 = por %p127, %p128
      %s131 = sadd.s32 %s130, 1
      %p134 = scmp.eq.s32.totalorder %s12, 1
      %p135 = scmp.ne.s32.totalorder %s130, %s132
      %p136 = scmp.eq.s32.totalorder %s12, 0
      %p137 = por %p135, %p136
      %p138 = scmp.ne.s32.totalorder %s130, %s132
      %p139 = scmp.eq.s32.totalorder %s17, 1
      %p140 = por %p138, %p139
      %p141 = scmp.ne.s32.totalorder %s132, %s133
      %p142 = scmp.eq.s32.totalorder %s17, 0
      %p143 = por %p141, %p142
      %p144 = scmp.ne.s32.totalorder %s132, %s133
      %p145 = scmp.eq.s32.totalorder %s18, 1
      %p146 = por %p144, %p145
      %p148 = scmp.ne.s32.totalorder %s133, %s147
      %p149 = scmp.eq.s32.totalorder %s18, 0
      %p150 = por %p148, %p149
      %s151 = ssub.s32 %s12, %s19
      %p152 = scmp.eq.s32.totalorder %s151, 0
      %s154 = sadd.s32 %s153, 1
      %s155 = scalar_select %p152, %s153, %s154
      %p158 = pneg %p152
      %p159 = scmp.eq.s32.totalorder %s12, 1
      %p160 = por %p158, %p159
      %p161 = scmp.ne.s32.totalorder %s153, %s156
      %p162 = scmp.eq.s32.totalorder %s12, 0
      %p163 = por %p161, %p162
      %p164 = scmp.ne.s32.totalorder %s153, %s156
      %p165 = scmp.eq.s32.totalorder %s17, 1
      %p166 = por %p164, %p165
      %p167 = scmp.ne.s32.totalorder %s156, %s157
      %p168 = scmp.eq.s32.totalorder %s17, 0
      %p169 = por %p167, %p168
      %p170 = scmp.ne.s32.totalorder %s156, %s157
      %p171 = scmp.eq.s32.totalorder %s18, 1
      %p172 = por %p170, %p171
      %p174 = scmp.ne.s32.totalorder %s157, %s173
      %p175 = scmp.eq.s32.totalorder %s18, 0
      %p176 = por %p174, %p175
      %p177 = scmp.le.s32.totalorder 1, %s12
      %p178 = scmp.lt.s32.totalorder %s12, 3
      %p179 = pnand %p177, %p178
      %p180 = pneg %p179
      // Predicated region
      $region9: #{colorsdf_forward.1} parent=5 // pred_check
        _
      $region10: #{colorsdf_forward.1} parent=5 // pred_check_branch
        %182 = sbr.rel (%p179) target = $region12
      $region11: #{colorsdf_forward.1} parent=5 // pred_region
        %s183 = ssub.s32 %s12, 1
        // Predicated region
        $region13: #{colorsdf_forward.1} parent=11 // pred_check
          %p184 = pneg %p59
        $region14: #{colorsdf_forward.1} parent=11 // pred_check_branch
          %186 = sbr.rel (%p184) target = $region16
        $region15: #{colorsdf_forward.1} parent=11 // pred_region
          _
        $region16: #{colorsdf_forward.1} parent=11 // pred_fallthru
          _
        // Predicated region
        $region17: #{colorsdf_forward.1} parent=11 // pred_check
          %p187 = pneg %p80
        $region18: #{colorsdf_forward.1} parent=11 // pred_check_branch
          %189 = sbr.rel (%p187) target = $region20
        $region19: #{colorsdf_forward.1} parent=11 // pred_region
          _
        $region20: #{colorsdf_forward.1} parent=11 // pred_fallthru
          _
        // Predicated region
        $region21: #{colorsdf_forward.1} parent=11 // pred_check
          %p190 = pneg %p101
        $region22: #{colorsdf_forward.1} parent=11 // pred_check_branch
          %192 = sbr.rel (%p190) target = $region24
        $region23: #{colorsdf_forward.1} parent=11 // pred_region
          _
        $region24: #{colorsdf_forward.1} parent=11 // pred_fallthru
          _
        // Predicated region
        $region25: #{colorsdf_forward.1} parent=11 // pred_check
          %p193 = pneg %p122
        $region26: #{colorsdf_forward.1} parent=11 // pred_check_branch
          %195 = sbr.rel (%p193) target = $region28
        $region27: #{colorsdf_forward.1} parent=11 // pred_region
          _
        $region28: #{colorsdf_forward.1} parent=11 // pred_fallthru
          _
        // Predicated region
        $region29: #{colorsdf_forward.1} parent=11 // pred_check
          %p196 = pneg %p143
        $region30: #{colorsdf_forward.1} parent=11 // pred_check_branch
          %198 = sbr.rel (%p196) target = $region32
        $region31: #{colorsdf_forward.1} parent=11 // pred_region
          _
        $region32: #{colorsdf_forward.1} parent=11 // pred_fallthru
          _
      $region12: #{colorsdf_forward.1} parent=5 // pred_fallthru
        _
      %p199 = scmp.lt.s32.totalorder %s12, 2
      // Predicated region
      $region33: #{colorsdf_forward.1} parent=5 // pred_check
        %p200 = pneg %p199
      $region34: #{colorsdf_forward.1} parent=5 // pred_check_branch
        %202 = sbr.rel (%p200) target = $region36
      $region35: #{colorsdf_forward.1} parent=5 // pred_region
        // Predicated region
        $region37: #{colorsdf_forward.1} parent=35 // pred_check
          %p203 = pneg %p32
        $region38: #{colorsdf_forward.1} parent=35 // pred_check_branch
          %205 = sbr.rel (%p203) target = $region40
        $region39: #{colorsdf_forward.1} parent=35 // pred_region
          %s206 = sand.u32 %s22, 1
          %s207 = sand.u32 %s22, 1
          %s208 = smul.addr %s207, 128
          %s209 = scalar_lea.vmem [#allocation2], %s208
          %s210 = smul.u32 16, %s12
          %s211 = smul.addr %s210, 4
          %s212 = scalar_lea.vmem %s0, %s211
          // Predicated region
          $region41: #{colorsdf_forward.1} parent=39 // pred_check
            _
          $region42: #{colorsdf_forward.1} parent=39 // pred_check_branch
            %214 = sbr.rel (0) target = $region44
          $region43: #{colorsdf_forward.1} parent=39 // pred_region
            // Predicated region
            $region45: #{colorsdf_forward.1} parent=43 // pred_check
              _
            $region46: #{colorsdf_forward.1} parent=43 // pred_check_branch
              %216 = sbr.rel (0) target = $region48
            $region47: #{colorsdf_forward.1} parent=43 // pred_region
              loop: start=0, step=1, limit=1
              $region49: #{colorsdf_forward.1} parent=47 // loop_pre_header
                _
              $region50: #{colorsdf_forward.1} parent=47 // loop_header
                %s218 = sphi 0, %s222
                %p219 = scmp.ge.s32.totalorder %s218, 1
                %s223 = sphi %s212, %s212
                %s224 = sphi %s209, %s209
              $region51: #{colorsdf_forward.1} parent=47 // loop_header_branch
                %221 = sbr.rel (%p219) target = $region55
              $region52: #{colorsdf_forward.1} parent=47 // loop_body
                %v225 = vld [vmem:[%s223] sm:$0xff]
                %226 = vst [vmem:[%s224] sm:$0xff] %v225
                %v227 = vld [vmem:[%s223 + $0x8] sm:$0xff]
                %228 = vst [vmem:[%s224 + $0x8] sm:$0xff] %v227
                %v229 = vld [vmem:[%s223 + $0x10] sm:$0xff]
                %230 = vst [vmem:[%s224 + $0x10] sm:$0xff] %v229
                %v231 = vld [vmem:[%s223 + $0x18] sm:$0xff]
                %232 = vst [vmem:[%s224 + $0x18] sm:$0xff] %v231
                %v233 = vld [vmem:[%s223 + $0x20] sm:$0xff]
                %234 = vst [vmem:[%s224 + $0x20] sm:$0xff] %v233
                %v235 = vld [vmem:[%s223 + $0x28] sm:$0xff]
                %236 = vst [vmem:[%s224 + $0x28] sm:$0xff] %v235
                %v237 = vld [vmem:[%s223 + $0x30] sm:$0xff]
                %238 = vst [vmem:[%s224 + $0x30] sm:$0xff] %v237
                %v239 = vld [vmem:[%s223 + $0x38] sm:$0xff]
                %240 = vst [vmem:[%s224 + $0x38] sm:$0xff] %v239
                %v241 = vld [vmem:[%s223 + $0x80] sm:$0xff]
                %242 = vst [vmem:[%s224 + $0x40] sm:$0xff] %v241
                %v243 = vld [vmem:[%s223 + $0x88] sm:$0xff]
                %244 = vst [vmem:[%s224 + $0x48] sm:$0xff] %v243
                %v245 = vld [vmem:[%s223 + $0x90] sm:$0xff]
                %246 = vst [vmem:[%s224 + $0x50] sm:$0xff] %v245
                %v247 = vld [vmem:[%s223 + $0x98] sm:$0xff]
                %248 = vst [vmem:[%s224 + $0x58] sm:$0xff] %v247
                %v249 = vld [vmem:[%s223 + $0xa0] sm:$0xff]
                %250 = vst [vmem:[%s224 + $0x60] sm:$0xff] %v249
                %v251 = vld [vmem:[%s223 + $0xa8] sm:$0xff]
                %252 = vst [vmem:[%s224 + $0x68] sm:$0xff] %v251
                %v253 = vld [vmem:[%s223 + $0xb0] sm:$0xff]
                %254 = vst [vmem:[%s224 + $0x70] sm:$0xff] %v253
                %v255 = vld [vmem:[%s223 + $0xb8] sm:$0xff]
                %256 = vst [vmem:[%s224 + $0x78] sm:$0xff] %v255
              $region53: #{colorsdf_forward.1} parent=47 // loop_footer
                %s222 = sadd.s32 1, %s218
              $region54: #{colorsdf_forward.1} parent=47 // loop_footer_branch
                %217 = sbr.rel target = $region50
              $region55: #{colorsdf_forward.1} parent=47 // loop_exit
                _
            $region48: #{colorsdf_forward.1} parent=43 // pred_fallthru
              _
            // Predicated region
            $region56: #{colorsdf_forward.1} parent=43 // pred_check
              _
            $region57: #{colorsdf_forward.1} parent=43 // pred_check_branch
              %258 = sbr.rel target = $region59
            $region58: #{colorsdf_forward.1} parent=43 // pred_region
              _
            $region59: #{colorsdf_forward.1} parent=43 // pred_fallthru
              _
          $region44: #{colorsdf_forward.1} parent=39 // pred_fallthru
            _
          %259 = vnop
        $region40: #{colorsdf_forward.1} parent=35 // pred_fallthru
          _
      $region36: #{colorsdf_forward.1} parent=5 // pred_fallthru
        _
      %p260 = scmp.le.s32.totalorder 1, %s12
      %p261 = scmp.lt.s32.totalorder %s12, 3
      %p262 = pnand %p260, %p261
      %p263 = pneg %p262
      // Predicated region
      $region60: #{colorsdf_forward.1} parent=5 // pred_check
        _
      $region61: #{colorsdf_forward.1} parent=5 // pred_check_branch
        %265 = sbr.rel (%p262) target = $region63
      $region62: #{colorsdf_forward.1} parent=5 // pred_region
        %s266 = ssub.s32 %s12, 1
        %s267 = sand.u32 %s25, 1
        %s268 = sand.u32 %s25, 1
        %s269 = smul.addr %s268, 128
        %s270 = scalar_lea.vmem [#allocation2], %s269
        // Predicated region
        $region64: #{colorsdf_forward.1} parent=62 // pred_check
          %p271 = pneg %p38
        $region65: #{colorsdf_forward.1} parent=62 // pred_check_branch
          %273 = sbr.rel (%p271) target = $region67
        $region66: #{colorsdf_forward.1} parent=62 // pred_region
          _
        $region67: #{colorsdf_forward.1} parent=62 // pred_fallthru
          _
        %s274 = sand.u32 %s25, 1
        %s275 = sand.u32 %s25, 1
        %s276 = smul.addr %s275, 128
        %s277 = scalar_lea.vmem [#allocation2], %s276
        %p278 = pneg %p38
        %p279 = pneg %p35
        %p280 = pneg %p59
        %p281 = pneg %p56
        %p282 = pneg %p80
        %p283 = pneg %p77
        %p284 = pneg %p101
        %p285 = pneg %p98
        %p286 = pneg %p122
        %p287 = pneg %p119
        %p288 = pneg %p143
        %p289 = pneg %p140
        %p290 = pneg %p169
        %p291 = pneg %p166
        %s292 = smul.u32 16, %s17
        %p293 = scmp.lt.s32.totalorder %s292, 31
        %s294 = scalar_select %p293, %s292, 31
        %s295 = smul.addr %s294, 8
        %s296 = scalar_lea.vmem %s6, %s295
        %s297 = smul.u32 16, %s17
        %s298 = smul.u32 16, %s17
        %p299 = scmp.lt.s32.totalorder %s298, 31
        %s300 = scalar_select %p299, %s298, 31
        %s301 = smul.addr %s300, 8
        %s302 = scalar_lea.vmem %s6, %s301
        %s303 = smul.u32 16, %s17
        %v305 = vld [vmem:[%s270] sm:$0xff]
        %v306 = vld [vmem:[%s270 + $0x8] sm:$0xff]
        %v307 = vld [vmem:[%s270 + $0x10] sm:$0xff]
        %v308 = vld [vmem:[%s270 + $0x18] sm:$0xff]
        %v309 = vld [vmem:[%s270 + $0x20] sm:$0xff]
        %v310 = vld [vmem:[%s270 + $0x28] sm:$0xff]
        %v311 = vld [vmem:[%s270 + $0x30] sm:$0xff]
        %v312 = vld [vmem:[%s270 + $0x38] sm:$0xff]
        %v313 = vld [vmem:[%s270 + $0x40] sm:$0xff]
        %v314 = vld [vmem:[%s270 + $0x48] sm:$0xff]
        %v315 = vld [vmem:[%s270 + $0x50] sm:$0xff]
        %v316 = vld [vmem:[%s270 + $0x58] sm:$0xff]
        %v317 = vld [vmem:[%s270 + $0x60] sm:$0xff]
        %v318 = vld [vmem:[%s270 + $0x68] sm:$0xff]
        %v319 = vld [vmem:[%s270 + $0x70] sm:$0xff]
        %v320 = vld [vmem:[%s270 + $0x78] sm:$0xff]
        %v321 = vld [vmem:[%s1] sm:$0xf]
        %v322 = vld [vmem:[%s1 + $0x4] sm:$0xf]
        %v323 = vld [vmem:[%s1 + $0x8] sm:$0xf]
        %v324 = vld [vmem:[%s1 + $0xc] sm:$0xf]
        %v325 = vld [vmem:[%s1 + $0x10] sm:$0xf]
        %v326 = vld [vmem:[%s1 + $0x14] sm:$0xf]
        %v327 = vld [vmem:[%s1 + $0x18] sm:$0xf]
        %v328 = vld [vmem:[%s1 + $0x1c] sm:$0xf]
        %v329 = vld [vmem:[%s1 + $0x20] sm:$0xf]
        %v330 = vld [vmem:[%s1 + $0x24] sm:$0xf]
        %v331 = vld [vmem:[%s1 + $0x28] sm:$0xf]
        %v332 = vld [vmem:[%s1 + $0x2c] sm:$0xf]
        %v333 = vld [vmem:[%s1 + $0x30] sm:$0xf]
        %v334 = vld [vmem:[%s1 + $0x34] sm:$0xf]
        %v335 = vld [vmem:[%s1 + $0x38] sm:$0xf]
        %v336 = vld [vmem:[%s1 + $0x3c] sm:$0xf]
        %v353 = vunpack.c.l.b16 %v321
        %v354 = vunpack.c.l.b16 %v322
        %v355 = vunpack.c.l.b16 %v323
        %v356 = vunpack.c.l.b16 %v324
        %v357 = vunpack.c.l.b16 %v325
        %v358 = vunpack.c.l.b16 %v326
        %v359 = vunpack.c.l.b16 %v327
        %v360 = vunpack.c.l.b16 %v328
        %v361 = vunpack.c.l.b16 %v329
        %v362 = vunpack.c.l.b16 %v330
        %v363 = vunpack.c.l.b16 %v331
        %v364 = vunpack.c.l.b16 %v332
        %v365 = vunpack.c.l.b16 %v333
        %v366 = vunpack.c.l.b16 %v334
        %v367 = vunpack.c.l.b16 %v335
        %v368 = vunpack.c.l.b16 %v336
        %v369 = vpack.c.b16 %v354, %v353
        %v370 = vpack.c.b16 %v356, %v355
        %v371 = vpack.c.b16 %v358, %v357
        %v372 = vpack.c.b16 %v360, %v359
        %v373 = vpack.c.b16 %v362, %v361
        %v374 = vpack.c.b16 %v364, %v363
        %v375 = vpack.c.b16 %v366, %v365
        %v376 = vpack.c.b16 %v368, %v367
        %v393 = vunpack.c.l.b16 %v305
        %v394 = vunpack.c.h.b16 %v305
        %v395 = vunpack.c.l.b16 %v306
        %v396 = vunpack.c.h.b16 %v306
        %v397 = vunpack.c.l.b16 %v307
        %v398 = vunpack.c.h.b16 %v307
        %v399 = vunpack.c.l.b16 %v308
        %v400 = vunpack.c.h.b16 %v308
        %v401 = vunpack.c.l.b16 %v309
        %v402 = vunpack.c.h.b16 %v309
        %v403 = vunpack.c.l.b16 %v310
        %v404 = vunpack.c.h.b16 %v310
        %v405 = vunpack.c.l.b16 %v311
        %v406 = vunpack.c.h.b16 %v311
        %v407 = vunpack.c.l.b16 %v312
        %v408 = vunpack.c.h.b16 %v312
        %v409 = vunpack.c.l.b16 %v313
        %v410 = vunpack.c.h.b16 %v313
        %v411 = vunpack.c.l.b16 %v314
        %v412 = vunpack.c.h.b16 %v314
        %v413 = vunpack.c.l.b16 %v315
        %v414 = vunpack.c.h.b16 %v315
        %v415 = vunpack.c.l.b16 %v316
        %v416 = vunpack.c.h.b16 %v316
        %v417 = vunpack.c.l.b16 %v317
        %v418 = vunpack.c.h.b16 %v317
        %v419 = vunpack.c.l.b16 %v318
        %v420 = vunpack.c.h.b16 %v318
        %v421 = vunpack.c.l.b16 %v319
        %v422 = vunpack.c.h.b16 %v319
        %v423 = vunpack.c.l.b16 %v320
        %v424 = vunpack.c.h.b16 %v320
        %v425 = vpack.c.b16 %v409, %v393
        %v426 = vpack.c.b16 %v410, %v394
        %v427 = vpack.c.b16 %v411, %v395
        %v428 = vpack.c.b16 %v412, %v396
        %v429 = vpack.c.b16 %v413, %v397
        %v430 = vpack.c.b16 %v414, %v398
        %v431 = vpack.c.b16 %v415, %v399
        %v432 = vpack.c.b16 %v416, %v400
        %v433 = vpack.c.b16 %v417, %v401
        %v434 = vpack.c.b16 %v418, %v402
        %v435 = vpack.c.b16 %v419, %v403
        %v436 = vpack.c.b16 %v420, %v404
        %v437 = vpack.c.b16 %v421, %v405
        %v438 = vpack.c.b16 %v422, %v406
        %v439 = vpack.c.b16 %v423, %v407
        %v440 = vpack.c.b16 %v424, %v408
        %vm457 = vcmask 130048
        %v459 = vsel %vm457, %v369, 0
        %v462 = vsel %vm457, %v370, 0
        %v465 = vsel %vm457, %v371, 0
        %v468 = vsel %vm457, %v372, 0
        %v471 = vsel %vm457, %v373, 0
        %v474 = vsel %vm457, %v374, 0
        %v477 = vsel %vm457, %v375, 0
        %v480 = vsel %vm457, %v376, 0
        %482 = vmatpush.bf16.msra.mxu0 0
        %483 = vmatpush.bf16.msra.mxu0 0
        %484 = vmatpush.bf16.msra.mxu0 0
        %485 = vmatpush.bf16.msra.mxu0 0
        %486 = vmatpush.bf16.msra.mxu0 0
        %487 = vmatpush.bf16.msra.mxu0 0
        %488 = vmatpush.bf16.msra.mxu0 0
        %489 = vmatpush.bf16.msra.mxu0 %v425
        %490 = vmatmul.bf16.gmra.mxu0 %v459
        %v491 = vpop.f32.mrf.mxu0
        %v492 = vadd.f32 0.0, %v491
        %v493 = vpop.f32.mrf.mxu0
        %v494 = vadd.f32 0.0, %v493
        %495 = vmatmul.bf16.gmra.mxu0 %v462
        %v496 = vpop.f32.mrf.mxu0
        %v497 = vadd.f32 0.0, %v496
        %v498 = vpop.f32.mrf.mxu0
        %v499 = vadd.f32 0.0, %v498
        %500 = vmatmul.bf16.gmra.mxu0 %v465
        %v501 = vpop.f32.mrf.mxu0
        %v502 = vadd.f32 0.0, %v501
        %v503 = vpop.f32.mrf.mxu0
        %v504 = vadd.f32 0.0, %v503
        %505 = vmatmul.bf16.gmra.mxu0 %v468
        %v506 = vpop.f32.mrf.mxu0
        %v507 = vadd.f32 0.0, %v506
        %v508 = vpop.f32.mrf.mxu0
        %v509 = vadd.f32 0.0, %v508
        %510 = vmatmul.bf16.gmra.mxu0 %v471
        %v511 = vpop.f32.mrf.mxu0
        %v512 = vadd.f32 0.0, %v511
        %v513 = vpop.f32.mrf.mxu0
        %v514 = vadd.f32 0.0, %v513
        %515 = vmatmul.bf16.gmra.mxu0 %v474
        %v516 = vpop.f32.mrf.mxu0
        %v517 = vadd.f32 0.0, %v516
        %v518 = vpop.f32.mrf.mxu0
        %v519 = vadd.f32 0.0, %v518
        %520 = vmatmul.bf16.gmra.mxu0 %v477
        %v521 = vpop.f32.mrf.mxu0
        %v522 = vadd.f32 0.0, %v521
        %v523 = vpop.f32.mrf.mxu0
        %v524 = vadd.f32 0.0, %v523
        %525 = vmatmul.bf16.gmra.mxu0 %v480
        %v526 = vpop.f32.mrf.mxu0
        %v527 = vadd.f32 0.0, %v526
        %v528 = vpop.f32.mrf.mxu0
        %v529 = vadd.f32 0.0, %v528
        %530 = vdwg.mxu0
        %531 = vmatpush.bf16.msra.mxu0 0
        %532 = vmatpush.bf16.msra.mxu0 0
        %533 = vmatpush.bf16.msra.mxu0 0
        %534 = vmatpush.bf16.msra.mxu0 0
        %535 = vmatpush.bf16.msra.mxu0 0
        %536 = vmatpush.bf16.msra.mxu0 0
        %537 = vmatpush.bf16.msra.mxu0 0
        %538 = vmatpush.bf16.msra.mxu0 %v426
        %539 = vmatmul.bf16.gmra.mxu0 %v459
        %v540 = vpop.f32.mrf.mxu0
        %v541 = vadd.f32 0.0, %v540
        %v542 = vpop.f32.mrf.mxu0
        %v543 = vadd.f32 0.0, %v542
        %544 = vmatmul.bf16.gmra.mxu0 %v462
        %v545 = vpop.f32.mrf.mxu0
        %v546 = vadd.f32 0.0, %v545
        %v547 = vpop.f32.mrf.mxu0
        %v548 = vadd.f32 0.0, %v547
        %549 = vmatmul.bf16.gmra.mxu0 %v465
        %v550 = vpop.f32.mrf.mxu0
        %v551 = vadd.f32 0.0, %v550
        %v552 = vpop.f32.mrf.mxu0
        %v553 = vadd.f32 0.0, %v552
        %554 = vmatmul.bf16.gmra.mxu0 %v468
        %v555 = vpop.f32.mrf.mxu0
        %v556 = vadd.f32 0.0, %v555
        %v557 = vpop.f32.mrf.mxu0
        %v558 = vadd.f32 0.0, %v557
        %559 = vmatmul.bf16.gmra.mxu0 %v471
        %v560 = vpop.f32.mrf.mxu0
        %v561 = vadd.f32 0.0, %v560
        %v562 = vpop.f32.mrf.mxu0
        %v563 = vadd.f32 0.0, %v562
        %564 = vmatmul.bf16.gmra.mxu0 %v474
        %v565 = vpop.f32.mrf.mxu0
        %v566 = vadd.f32 0.0, %v565
        %v567 = vpop.f32.mrf.mxu0
        %v568 = vadd.f32 0.0, %v567
        %569 = vmatmul.bf16.gmra.mxu0 %v477
        %v570 = vpop.f32.mrf.mxu0
        %v571 = vadd.f32 0.0, %v570
        %v572 = vpop.f32.mrf.mxu0
        %v573 = vadd.f32 0.0, %v572
        %574 = vmatmul.bf16.gmra.mxu0 %v480
        %v575 = vpop.f32.mrf.mxu0
        %v576 = vadd.f32 0.0, %v575
        %v577 = vpop.f32.mrf.mxu0
        %v578 = vadd.f32 0.0, %v577
        %579 = vdwg.mxu0
        %580 = vmatpush.bf16.msra.mxu0 0
        %581 = vmatpush.bf16.msra.mxu0 0
        %582 = vmatpush.bf16.msra.mxu0 0
        %583 = vmatpush.bf16.msra.mxu0 0
        %584 = vmatpush.bf16.msra.mxu0 0
        %585 = vmatpush.bf16.msra.mxu0 0
        %586 = vmatpush.bf16.msra.mxu0 0
        %587 = vmatpush.bf16.msra.mxu0 %v427
        %588 = vmatmul.bf16.gmra.mxu0 %v459
        %v589 = vpop.f32.mrf.mxu0
        %v590 = vadd.f32 0.0, %v589
        %v591 = vpop.f32.mrf.mxu0
        %v592 = vadd.f32 0.0, %v591
        %593 = vmatmul.bf16.gmra.mxu0 %v462
        %v594 = vpop.f32.mrf.mxu0
        %v595 = vadd.f32 0.0, %v594
        %v596 = vpop.f32.mrf.mxu0
        %v597 = vadd.f32 0.0, %v596
        %598 = vmatmul.bf16.gmra.mxu0 %v465
        %v599 = vpop.f32.mrf.mxu0
        %v600 = vadd.f32 0.0, %v599
        %v601 = vpop.f32.mrf.mxu0
        %v602 = vadd.f32 0.0, %v601
        %603 = vmatmul.bf16.gmra.mxu0 %v468
        %v604 = vpop.f32.mrf.mxu0
        %v605 = vadd.f32 0.0, %v604
        %v606 = vpop.f32.mrf.mxu0
        %v607 = vadd.f32 0.0, %v606
        %608 = vmatmul.bf16.gmra.mxu0 %v471
        %v609 = vpop.f32.mrf.mxu0
        %v610 = vadd.f32 0.0, %v609
        %v611 = vpop.f32.mrf.mxu0
        %v612 = vadd.f32 0.0, %v611
        %613 = vmatmul.bf16.gmra.mxu0 %v474
        %v614 = vpop.f32.mrf.mxu0
        %v615 = vadd.f32 0.0, %v614
        %v616 = vpop.f32.mrf.mxu0
        %v617 = vadd.f32 0.0, %v616
        %618 = vmatmul.bf16.gmra.mxu0 %v477
        %v619 = vpop.f32.mrf.mxu0
        %v620 = vadd.f32 0.0, %v619
        %v621 = vpop.f32.mrf.mxu0
        %v622 = vadd.f32 0.0, %v621
        %623 = vmatmul.bf16.gmra.mxu0 %v480
        %v624 = vpop.f32.mrf.mxu0
        %v625 = vadd.f32 0.0, %v624
        %v626 = vpop.f32.mrf.mxu0
        %v627 = vadd.f32 0.0, %v626
        %628 = vdwg.mxu0
        %629 = vmatpush.bf16.msra.mxu0 0
        %630 = vmatpush.bf16.msra.mxu0 0
        %631 = vmatpush.bf16.msra.mxu0 0
        %632 = vmatpush.bf16.msra.mxu0 0
        %633 = vmatpush.bf16.msra.mxu0 0
        %634 = vmatpush.bf16.msra.mxu0 0
        %635 = vmatpush.bf16.msra.mxu0 0
        %636 = vmatpush.bf16.msra.mxu0 %v428
        %637 = vmatmul.bf16.gmra.mxu0 %v459
        %v638 = vpop.f32.mrf.mxu0
        %v639 = vadd.f32 0.0, %v638
        %v640 = vpop.f32.mrf.mxu0
        %v641 = vadd.f32 0.0, %v640
        %642 = vmatmul.bf16.gmra.mxu0 %v462
        %v643 = vpop.f32.mrf.mxu0
        %v644 = vadd.f32 0.0, %v643
        %v645 = vpop.f32.mrf.mxu0
        %v646 = vadd.f32 0.0, %v645
        %647 = vmatmul.bf16.gmra.mxu0 %v465
        %v648 = vpop.f32.mrf.mxu0
        %v649 = vadd.f32 0.0, %v648
        %v650 = vpop.f32.mrf.mxu0
        %v651 = vadd.f32 0.0, %v650
        %652 = vmatmul.bf16.gmra.mxu0 %v468
        %v653 = vpop.f32.mrf.mxu0
        %v654 = vadd.f32 0.0, %v653
        %v655 = vpop.f32.mrf.mxu0
        %v656 = vadd.f32 0.0, %v655
        %657 = vmatmul.bf16.gmra.mxu0 %v471
        %v658 = vpop.f32.mrf.mxu0
        %v659 = vadd.f32 0.0, %v658
        %v660 = vpop.f32.mrf.mxu0
        %v661 = vadd.f32 0.0, %v660
        %662 = vmatmul.bf16.gmra.mxu0 %v474
        %v663 = vpop.f32.mrf.mxu0
        %v664 = vadd.f32 0.0, %v663
        %v665 = vpop.f32.mrf.mxu0
        %v666 = vadd.f32 0.0, %v665
        %667 = vmatmul.bf16.gmra.mxu0 %v477
        %v668 = vpop.f32.mrf.mxu0
        %v669 = vadd.f32 0.0, %v668
        %v670 = vpop.f32.mrf.mxu0
        %v671 = vadd.f32 0.0, %v670
        %672 = vmatmul.bf16.gmra.mxu0 %v480
        %v673 = vpop.f32.mrf.mxu0
        %v674 = vadd.f32 0.0, %v673
        %v675 = vpop.f32.mrf.mxu0
        %v676 = vadd.f32 0.0, %v675
        %677 = vdwg.mxu0
        %678 = vmatpush.bf16.msra.mxu0 0
        %679 = vmatpush.bf16.msra.mxu0 0
        %680 = vmatpush.bf16.msra.mxu0 0
        %681 = vmatpush.bf16.msra.mxu0 0
        %682 = vmatpush.bf16.msra.mxu0 0
        %683 = vmatpush.bf16.msra.mxu0 0
        %684 = vmatpush.bf16.msra.mxu0 0
        %685 = vmatpush.bf16.msra.mxu0 %v429
        %686 = vmatmul.bf16.gmra.mxu0 %v459
        %v687 = vpop.f32.mrf.mxu0
        %v688 = vadd.f32 0.0, %v687
        %v689 = vpop.f32.mrf.mxu0
        %v690 = vadd.f32 0.0, %v689
        %691 = vmatmul.bf16.gmra.mxu0 %v462
        %v692 = vpop.f32.mrf.mxu0
        %v693 = vadd.f32 0.0, %v692
        %v694 = vpop.f32.mrf.mxu0
        %v695 = vadd.f32 0.0, %v694
        %696 = vmatmul.bf16.gmra.mxu0 %v465
        %v697 = vpop.f32.mrf.mxu0
        %v698 = vadd.f32 0.0, %v697
        %v699 = vpop.f32.mrf.mxu0
        %v700 = vadd.f32 0.0, %v699
        %701 = vmatmul.bf16.gmra.mxu0 %v468
        %v702 = vpop.f32.mrf.mxu0
        %v703 = vadd.f32 0.0, %v702
        %v704 = vpop.f32.mrf.mxu0
        %v705 = vadd.f32 0.0, %v704
        %706 = vmatmul.bf16.gmra.mxu0 %v471
        %v707 = vpop.f32.mrf.mxu0
        %v708 = vadd.f32 0.0, %v707
        %v709 = vpop.f32.mrf.mxu0
        %v710 = vadd.f32 0.0, %v709
        %711 = vmatmul.bf16.gmra.mxu0 %v474
        %v712 = vpop.f32.mrf.mxu0
        %v713 = vadd.f32 0.0, %v712
        %v714 = vpop.f32.mrf.mxu0
        %v715 = vadd.f32 0.0, %v714
        %716 = vmatmul.bf16.gmra.mxu0 %v477
        %v717 = vpop.f32.mrf.mxu0
        %v718 = vadd.f32 0.0, %v717
        %v719 = vpop.f32.mrf.mxu0
        %v720 = vadd.f32 0.0, %v719
        %721 = vmatmul.bf16.gmra.mxu0 %v480
        %v722 = vpop.f32.mrf.mxu0
        %v723 = vadd.f32 0.0, %v722
        %v724 = vpop.f32.mrf.mxu0
        %v725 = vadd.f32 0.0, %v724
        %726 = vdwg.mxu0
        %727 = vmatpush.bf16.msra.mxu0 0
        %728 = vmatpush.bf16.msra.mxu0 0
        %729 = vmatpush.bf16.msra.mxu0 0
        %730 = vmatpush.bf16.msra.mxu0 0
        %731 = vmatpush.bf16.msra.mxu0 0
        %732 = vmatpush.bf16.msra.mxu0 0
        %733 = vmatpush.bf16.msra.mxu0 0
        %734 = vmatpush.bf16.msra.mxu0 %v430
        %735 = vmatmul.bf16.gmra.mxu0 %v459
        %v736 = vpop.f32.mrf.mxu0
        %v737 = vadd.f32 0.0, %v736
        %v738 = vpop.f32.mrf.mxu0
        %v739 = vadd.f32 0.0, %v738
        %740 = vmatmul.bf16.gmra.mxu0 %v462
        %v741 = vpop.f32.mrf.mxu0
        %v742 = vadd.f32 0.0, %v741
        %v743 = vpop.f32.mrf.mxu0
        %v744 = vadd.f32 0.0, %v743
        %745 = vmatmul.bf16.gmra.mxu0 %v465
        %v746 = vpop.f32.mrf.mxu0
        %v747 = vadd.f32 0.0, %v746
        %v748 = vpop.f32.mrf.mxu0
        %v749 = vadd.f32 0.0, %v748
        %750 = vmatmul.bf16.gmra.mxu0 %v468
        %v751 = vpop.f32.mrf.mxu0
        %v752 = vadd.f32 0.0, %v751
        %v753 = vpop.f32.mrf.mxu0
        %v754 = vadd.f32 0.0, %v753
        %755 = vmatmul.bf16.gmra.mxu0 %v471
        %v756 = vpop.f32.mrf.mxu0
        %v757 = vadd.f32 0.0, %v756
        %v758 = vpop.f32.mrf.mxu0
        %v759 = vadd.f32 0.0, %v758
        %760 = vmatmul.bf16.gmra.mxu0 %v474
        %v761 = vpop.f32.mrf.mxu0
        %v762 = vadd.f32 0.0, %v761
        %v763 = vpop.f32.mrf.mxu0
        %v764 = vadd.f32 0.0, %v763
        %765 = vmatmul.bf16.gmra.mxu0 %v477
        %v766 = vpop.f32.mrf.mxu0
        %v767 = vadd.f32 0.0, %v766
        %v768 = vpop.f32.mrf.mxu0
        %v769 = vadd.f32 0.0, %v768
        %770 = vmatmul.bf16.gmra.mxu0 %v480
        %v771 = vpop.f32.mrf.mxu0
        %v772 = vadd.f32 0.0, %v771
        %v773 = vpop.f32.mrf.mxu0
        %v774 = vadd.f32 0.0, %v773
        %775 = vdwg.mxu0
        %776 = vmatpush.bf16.msra.mxu0 0
        %777 = vmatpush.bf16.msra.mxu0 0
        %778 = vmatpush.bf16.msra.mxu0 0
        %779 = vmatpush.bf16.msra.mxu0 0
        %780 = vmatpush.bf16.msra.mxu0 0
        %781 = vmatpush.bf16.msra.mxu0 0
        %782 = vmatpush.bf16.msra.mxu0 0
        %783 = vmatpush.bf16.msra.mxu0 %v431
        %784 = vmatmul.bf16.gmra.mxu0 %v459
        %v785 = vpop.f32.mrf.mxu0
        %v786 = vadd.f32 0.0, %v785
        %v787 = vpop.f32.mrf.mxu0
        %v788 = vadd.f32 0.0, %v787
        %789 = vmatmul.bf16.gmra.mxu0 %v462
        %v790 = vpop.f32.mrf.mxu0
        %v791 = vadd.f32 0.0, %v790
        %v792 = vpop.f32.mrf.mxu0
        %v793 = vadd.f32 0.0, %v792
        %794 = vmatmul.bf16.gmra.mxu0 %v465
        %v795 = vpop.f32.mrf.mxu0
        %v796 = vadd.f32 0.0, %v795
        %v797 = vpop.f32.mrf.mxu0
        %v798 = vadd.f32 0.0, %v797
        %799 = vmatmul.bf16.gmra.mxu0 %v468
        %v800 = vpop.f32.mrf.mxu0
        %v801 = vadd.f32 0.0, %v800
        %v802 = vpop.f32.mrf.mxu0
        %v803 = vadd.f32 0.0, %v802
        %804 = vmatmul.bf16.gmra.mxu0 %v471
        %v805 = vpop.f32.mrf.mxu0
        %v806 = vadd.f32 0.0, %v805
        %v807 = vpop.f32.mrf.mxu0
        %v808 = vadd.f32 0.0, %v807
        %809 = vmatmul.bf16.gmra.mxu0 %v474
        %v810 = vpop.f32.mrf.mxu0
        %v811 = vadd.f32 0.0, %v810
        %v812 = vpop.f32.mrf.mxu0
        %v813 = vadd.f32 0.0, %v812
        %814 = vmatmul.bf16.gmra.mxu0 %v477
        %v815 = vpop.f32.mrf.mxu0
        %v816 = vadd.f32 0.0, %v815
        %v817 = vpop.f32.mrf.mxu0
        %v818 = vadd.f32 0.0, %v817
        %819 = vmatmul.bf16.gmra.mxu0 %v480
        %v820 = vpop.f32.mrf.mxu0
        %v821 = vadd.f32 0.0, %v820
        %v822 = vpop.f32.mrf.mxu0
        %v823 = vadd.f32 0.0, %v822
        %824 = vdwg.mxu0
        %825 = vmatpush.bf16.msra.mxu0 0
        %826 = vmatpush.bf16.msra.mxu0 0
        %827 = vmatpush.bf16.msra.mxu0 0
        %828 = vmatpush.bf16.msra.mxu0 0
        %829 = vmatpush.bf16.msra.mxu0 0
        %830 = vmatpush.bf16.msra.mxu0 0
        %831 = vmatpush.bf16.msra.mxu0 0
        %832 = vmatpush.bf16.msra.mxu0 %v432
        %833 = vmatmul.bf16.gmra.mxu0 %v459
        %v834 = vpop.f32.mrf.mxu0
        %v835 = vadd.f32 0.0, %v834
        %v836 = vpop.f32.mrf.mxu0
        %v837 = vadd.f32 0.0, %v836
        %838 = vmatmul.bf16.gmra.mxu0 %v462
        %v839 = vpop.f32.mrf.mxu0
        %v840 = vadd.f32 0.0, %v839
        %v841 = vpop.f32.mrf.mxu0
        %v842 = vadd.f32 0.0, %v841
        %843 = vmatmul.bf16.gmra.mxu0 %v465
        %v844 = vpop.f32.mrf.mxu0
        %v845 = vadd.f32 0.0, %v844
        %v846 = vpop.f32.mrf.mxu0
        %v847 = vadd.f32 0.0, %v846
        %848 = vmatmul.bf16.gmra.mxu0 %v468
        %v849 = vpop.f32.mrf.mxu0
        %v850 = vadd.f32 0.0, %v849
        %v851 = vpop.f32.mrf.mxu0
        %v852 = vadd.f32 0.0, %v851
        %853 = vmatmul.bf16.gmra.mxu0 %v471
        %v854 = vpop.f32.mrf.mxu0
        %v855 = vadd.f32 0.0, %v854
        %v856 = vpop.f32.mrf.mxu0
        %v857 = vadd.f32 0.0, %v856
        %858 = vmatmul.bf16.gmra.mxu0 %v474
        %v859 = vpop.f32.mrf.mxu0
        %v860 = vadd.f32 0.0, %v859
        %v861 = vpop.f32.mrf.mxu0
        %v862 = vadd.f32 0.0, %v861
        %863 = vmatmul.bf16.gmra.mxu0 %v477
        %v864 = vpop.f32.mrf.mxu0
        %v865 = vadd.f32 0.0, %v864
        %v866 = vpop.f32.mrf.mxu0
        %v867 = vadd.f32 0.0, %v866
        %868 = vmatmul.bf16.gmra.mxu0 %v480
        %v869 = vpop.f32.mrf.mxu0
        %v870 = vadd.f32 0.0, %v869
        %v871 = vpop.f32.mrf.mxu0
        %v872 = vadd.f32 0.0, %v871
        %873 = vdwg.mxu0
        %874 = vmatpush.bf16.msra.mxu0 0
        %875 = vmatpush.bf16.msra.mxu0 0
        %876 = vmatpush.bf16.msra.mxu0 0
        %877 = vmatpush.bf16.msra.mxu0 0
        %878 = vmatpush.bf16.msra.mxu0 0
        %879 = vmatpush.bf16.msra.mxu0 0
        %880 = vmatpush.bf16.msra.mxu0 0
        %881 = vmatpush.bf16.msra.mxu0 %v433
        %882 = vmatmul.bf16.gmra.mxu0 %v459
        %v883 = vpop.f32.mrf.mxu0
        %v884 = vadd.f32 0.0, %v883
        %v885 = vpop.f32.mrf.mxu0
        %v886 = vadd.f32 0.0, %v885
        %887 = vmatmul.bf16.gmra.mxu0 %v462
        %v888 = vpop.f32.mrf.mxu0
        %v889 = vadd.f32 0.0, %v888
        %v890 = vpop.f32.mrf.mxu0
        %v891 = vadd.f32 0.0, %v890
        %892 = vmatmul.bf16.gmra.mxu0 %v465
        %v893 = vpop.f32.mrf.mxu0
        %v894 = vadd.f32 0.0, %v893
        %v895 = vpop.f32.mrf.mxu0
        %v896 = vadd.f32 0.0, %v895
        %897 = vmatmul.bf16.gmra.mxu0 %v468
        %v898 = vpop.f32.mrf.mxu0
        %v899 = vadd.f32 0.0, %v898
        %v900 = vpop.f32.mrf.mxu0
        %v901 = vadd.f32 0.0, %v900
        %902 = vmatmul.bf16.gmra.mxu0 %v471
        %v903 = vpop.f32.mrf.mxu0
        %v904 = vadd.f32 0.0, %v903
        %v905 = vpop.f32.mrf.mxu0
        %v906 = vadd.f32 0.0, %v905
        %907 = vmatmul.bf16.gmra.mxu0 %v474
        %v908 = vpop.f32.mrf.mxu0
        %v909 = vadd.f32 0.0, %v908
        %v910 = vpop.f32.mrf.mxu0
        %v911 = vadd.f32 0.0, %v910
        %912 = vmatmul.bf16.gmra.mxu0 %v477
        %v913 = vpop.f32.mrf.mxu0
        %v914 = vadd.f32 0.0, %v913
        %v915 = vpop.f32.mrf.mxu0
        %v916 = vadd.f32 0.0, %v915
        %917 = vmatmul.bf16.gmra.mxu0 %v480
        %v918 = vpop.f32.mrf.mxu0
        %v919 = vadd.f32 0.0, %v918
        %v920 = vpop.f32.mrf.mxu0
        %v921 = vadd.f32 0.0, %v920
        %922 = vdwg.mxu0
        %923 = vmatpush.bf16.msra.mxu0 0
        %924 = vmatpush.bf16.msra.mxu0 0
        %925 = vmatpush.bf16.msra.mxu0 0
        %926 = vmatpush.bf16.msra.mxu0 0
        %927 = vmatpush.bf16.msra.mxu0 0
        %928 = vmatpush.bf16.msra.mxu0 0
        %929 = vmatpush.bf16.msra.mxu0 0
        %930 = vmatpush.bf16.msra.mxu0 %v434
        %931 = vmatmul.bf16.gmra.mxu0 %v459
        %v932 = vpop.f32.mrf.mxu0
        %v933 = vadd.f32 0.0, %v932
        %v934 = vpop.f32.mrf.mxu0
        %v935 = vadd.f32 0.0, %v934
        %936 = vmatmul.bf16.gmra.mxu0 %v462
        %v937 = vpop.f32.mrf.mxu0
        %v938 = vadd.f32 0.0, %v937
        %v939 = vpop.f32.mrf.mxu0
        %v940 = vadd.f32 0.0, %v939
        %941 = vmatmul.bf16.gmra.mxu0 %v465
        %v942 = vpop.f32.mrf.mxu0
        %v943 = vadd.f32 0.0, %v942
        %v944 = vpop.f32.mrf.mxu0
        %v945 = vadd.f32 0.0, %v944
        %946 = vmatmul.bf16.gmra.mxu0 %v468
        %v947 = vpop.f32.mrf.mxu0
        %v948 = vadd.f32 0.0, %v947
        %v949 = vpop.f32.mrf.mxu0
        %v950 = vadd.f32 0.0, %v949
        %951 = vmatmul.bf16.gmra.mxu0 %v471
        %v952 = vpop.f32.mrf.mxu0
        %v953 = vadd.f32 0.0, %v952
        %v954 = vpop.f32.mrf.mxu0
        %v955 = vadd.f32 0.0, %v954
        %956 = vmatmul.bf16.gmra.mxu0 %v474
        %v957 = vpop.f32.mrf.mxu0
        %v958 = vadd.f32 0.0, %v957
        %v959 = vpop.f32.mrf.mxu0
        %v960 = vadd.f32 0.0, %v959
        %961 = vmatmul.bf16.gmra.mxu0 %v477
        %v962 = vpop.f32.mrf.mxu0
        %v963 = vadd.f32 0.0, %v962
        %v964 = vpop.f32.mrf.mxu0
        %v965 = vadd.f32 0.0, %v964
        %966 = vmatmul.bf16.gmra.mxu0 %v480
        %v967 = vpop.f32.mrf.mxu0
        %v968 = vadd.f32 0.0, %v967
        %v969 = vpop.f32.mrf.mxu0
        %v970 = vadd.f32 0.0, %v969
        %971 = vdwg.mxu0
        %972 = vmatpush.bf16.msra.mxu0 0
        %973 = vmatpush.bf16.msra.mxu0 0
        %974 = vmatpush.bf16.msra.mxu0 0
        %975 = vmatpush.bf16.msra.mxu0 0
        %976 = vmatpush.bf16.msra.mxu0 0
        %977 = vmatpush.bf16.msra.mxu0 0
        %978 = vmatpush.bf16.msra.mxu0 0
        %979 = vmatpush.bf16.msra.mxu0 %v435
        %980 = vmatmul.bf16.gmra.mxu0 %v459
        %v981 = vpop.f32.mrf.mxu0
        %v982 = vadd.f32 0.0, %v981
        %v983 = vpop.f32.mrf.mxu0
        %v984 = vadd.f32 0.0, %v983
        %985 = vmatmul.bf16.gmra.mxu0 %v462
        %v986 = vpop.f32.mrf.mxu0
        %v987 = vadd.f32 0.0, %v986
        %v988 = vpop.f32.mrf.mxu0
        %v989 = vadd.f32 0.0, %v988
        %990 = vmatmul.bf16.gmra.mxu0 %v465
        %v991 = vpop.f32.mrf.mxu0
        %v992 = vadd.f32 0.0, %v991
        %v993 = vpop.f32.mrf.mxu0
        %v994 = vadd.f32 0.0, %v993
        %995 = vmatmul.bf16.gmra.mxu0 %v468
        %v996 = vpop.f32.mrf.mxu0
        %v997 = vadd.f32 0.0, %v996
        %v998 = vpop.f32.mrf.mxu0
        %v999 = vadd.f32 0.0, %v998
        %1000 = vmatmul.bf16.gmra.mxu0 %v471
        %v1001 = vpop.f32.mrf.mxu0
        %v1002 = vadd.f32 0.0, %v1001
        %v1003 = vpop.f32.mrf.mxu0
        %v1004 = vadd.f32 0.0, %v1003
        %1005 = vmatmul.bf16.gmra.mxu0 %v474
        %v1006 = vpop.f32.mrf.mxu0
        %v1007 = vadd.f32 0.0, %v1006
        %v1008 = vpop.f32.mrf.mxu0
        %v1009 = vadd.f32 0.0, %v1008
        %1010 = vmatmul.bf16.gmra.mxu0 %v477
        %v1011 = vpop.f32.mrf.mxu0
        %v1012 = vadd.f32 0.0, %v1011
        %v1013 = vpop.f32.mrf.mxu0
        %v1014 = vadd.f32 0.0, %v1013
        %1015 = vmatmul.bf16.gmra.mxu0 %v480
        %v1016 = vpop.f32.mrf.mxu0
        %v1017 = vadd.f32 0.0, %v1016
        %v1018 = vpop.f32.mrf.mxu0
        %v1019 = vadd.f32 0.0, %v1018
        %1020 = vdwg.mxu0
        %1021 = vmatpush.bf16.msra.mxu0 0
        %1022 = vmatpush.bf16.msra.mxu0 0
        %1023 = vmatpush.bf16.msra.mxu0 0
        %1024 = vmatpush.bf16.msra.mxu0 0
        %1025 = vmatpush.bf16.msra.mxu0 0
        %1026 = vmatpush.bf16.msra.mxu0 0
        %1027 = vmatpush.bf16.msra.mxu0 0
        %1028 = vmatpush.bf16.msra.mxu0 %v436
        %1029 = vmatmul.bf16.gmra.mxu0 %v459
        %v1030 = vpop.f32.mrf.mxu0
        %v1031 = vadd.f32 0.0, %v1030
        %v1032 = vpop.f32.mrf.mxu0
        %v1033 = vadd.f32 0.0, %v1032
        %1034 = vmatmul.bf16.gmra.mxu0 %v462
        %v1035 = vpop.f32.mrf.mxu0
        %v1036 = vadd.f32 0.0, %v1035
        %v1037 = vpop.f32.mrf.mxu0
        %v1038 = vadd.f32 0.0, %v1037
        %1039 = vmatmul.bf16.gmra.mxu0 %v465
        %v1040 = vpop.f32.mrf.mxu0
        %v1041 = vadd.f32 0.0, %v1040
        %v1042 = vpop.f32.mrf.mxu0
        %v1043 = vadd.f32 0.0, %v1042
        %1044 = vmatmul.bf16.gmra.mxu0 %v468
        %v1045 = vpop.f32.mrf.mxu0
        %v1046 = vadd.f32 0.0, %v1045
        %v1047 = vpop.f32.mrf.mxu0
        %v1048 = vadd.f32 0.0, %v1047
        %1049 = vmatmul.bf16.gmra.mxu0 %v471
        %v1050 = vpop.f32.mrf.mxu0
        %v1051 = vadd.f32 0.0, %v1050
        %v1052 = vpop.f32.mrf.mxu0
        %v1053 = vadd.f32 0.0, %v1052
        %1054 = vmatmul.bf16.gmra.mxu0 %v474
        %v1055 = vpop.f32.mrf.mxu0
        %v1056 = vadd.f32 0.0, %v1055
        %v1057 = vpop.f32.mrf.mxu0
        %v1058 = vadd.f32 0.0, %v1057
        %1059 = vmatmul.bf16.gmra.mxu0 %v477
        %v1060 = vpop.f32.mrf.mxu0
        %v1061 = vadd.f32 0.0, %v1060
        %v1062 = vpop.f32.mrf.mxu0
        %v1063 = vadd.f32 0.0, %v1062
        %1064 = vmatmul.bf16.gmra.mxu0 %v480
        %v1065 = vpop.f32.mrf.mxu0
        %v1066 = vadd.f32 0.0, %v1065
        %v1067 = vpop.f32.mrf.mxu0
        %v1068 = vadd.f32 0.0, %v1067
        %1069 = vdwg.mxu0
        %1070 = vmatpush.bf16.msra.mxu0 0
        %1071 = vmatpush.bf16.msra.mxu0 0
        %1072 = vmatpush.bf16.msra.mxu0 0
        %1073 = vmatpush.bf16.msra.mxu0 0
        %1074 = vmatpush.bf16.msra.mxu0 0
        %1075 = vmatpush.bf16.msra.mxu0 0
        %1076 = vmatpush.bf16.msra.mxu0 0
        %1077 = vmatpush.bf16.msra.mxu0 %v437
        %1078 = vmatmul.bf16.gmra.mxu0 %v459
        %v1079 = vpop.f32.mrf.mxu0
        %v1080 = vadd.f32 0.0, %v1079
        %v1081 = vpop.f32.mrf.mxu0
        %v1082 = vadd.f32 0.0, %v1081
        %1083 = vmatmul.bf16.gmra.mxu0 %v462
        %v1084 = vpop.f32.mrf.mxu0
        %v1085 = vadd.f32 0.0, %v1084
        %v1086 = vpop.f32.mrf.mxu0
        %v1087 = vadd.f32 0.0, %v1086
        %1088 = vmatmul.bf16.gmra.mxu0 %v465
        %v1089 = vpop.f32.mrf.mxu0
        %v1090 = vadd.f32 0.0, %v1089
        %v1091 = vpop.f32.mrf.mxu0
        %v1092 = vadd.f32 0.0, %v1091
        %1093 = vmatmul.bf16.gmra.mxu0 %v468
        %v1094 = vpop.f32.mrf.mxu0
        %v1095 = vadd.f32 0.0, %v1094
        %v1096 = vpop.f32.mrf.mxu0
        %v1097 = vadd.f32 0.0, %v1096
        %1098 = vmatmul.bf16.gmra.mxu0 %v471
        %v1099 = vpop.f32.mrf.mxu0
        %v1100 = vadd.f32 0.0, %v1099
        %v1101 = vpop.f32.mrf.mxu0
        %v1102 = vadd.f32 0.0, %v1101
        %1103 = vmatmul.bf16.gmra.mxu0 %v474
        %v1104 = vpop.f32.mrf.mxu0
        %v1105 = vadd.f32 0.0, %v1104
        %v1106 = vpop.f32.mrf.mxu0
        %v1107 = vadd.f32 0.0, %v1106
        %1108 = vmatmul.bf16.gmra.mxu0 %v477
        %v1109 = vpop.f32.mrf.mxu0
        %v1110 = vadd.f32 0.0, %v1109
        %v1111 = vpop.f32.mrf.mxu0
        %v1112 = vadd.f32 0.0, %v1111
        %1113 = vmatmul.bf16.gmra.mxu0 %v480
        %v1114 = vpop.f32.mrf.mxu0
        %v1115 = vadd.f32 0.0, %v1114
        %v1116 = vpop.f32.mrf.mxu0
        %v1117 = vadd.f32 0.0, %v1116
        %1118 = vdwg.mxu0
        %1119 = vmatpush.bf16.msra.mxu0 0
        %1120 = vmatpush.bf16.msra.mxu0 0
        %1121 = vmatpush.bf16.msra.mxu0 0
        %1122 = vmatpush.bf16.msra.mxu0 0
        %1123 = vmatpush.bf16.msra.mxu0 0
        %1124 = vmatpush.bf16.msra.mxu0 0
        %1125 = vmatpush.bf16.msra.mxu0 0
        %1126 = vmatpush.bf16.msra.mxu0 %v438
        %1127 = vmatmul.bf16.gmra.mxu0 %v459
        %v1128 = vpop.f32.mrf.mxu0
        %v1129 = vadd.f32 0.0, %v1128
        %v1130 = vpop.f32.mrf.mxu0
        %v1131 = vadd.f32 0.0, %v1130
        %1132 = vmatmul.bf16.gmra.mxu0 %v462
        %v1133 = vpop.f32.mrf.mxu0
        %v1134 = vadd.f32 0.0, %v1133
        %v1135 = vpop.f32.mrf.mxu0
        %v1136 = vadd.f32 0.0, %v1135
        %1137 = vmatmul.bf16.gmra.mxu0 %v465
        %v1138 = vpop.f32.mrf.mxu0
        %v1139 = vadd.f32 0.0, %v1138
        %v1140 = vpop.f32.mrf.mxu0
        %v1141 = vadd.f32 0.0, %v1140
        %1142 = vmatmul.bf16.gmra.mxu0 %v468
        %v1143 = vpop.f32.mrf.mxu0
        %v1144 = vadd.f32 0.0, %v1143
        %v1145 = vpop.f32.mrf.mxu0
        %v1146 = vadd.f32 0.0, %v1145
        %1147 = vmatmul.bf16.gmra.mxu0 %v471
        %v1148 = vpop.f32.mrf.mxu0
        %v1149 = vadd.f32 0.0, %v1148
        %v1150 = vpop.f32.mrf.mxu0
        %v1151 = vadd.f32 0.0, %v1150
        %1152 = vmatmul.bf16.gmra.mxu0 %v474
        %v1153 = vpop.f32.mrf.mxu0
        %v1154 = vadd.f32 0.0, %v1153
        %v1155 = vpop.f32.mrf.mxu0
        %v1156 = vadd.f32 0.0, %v1155
        %1157 = vmatmul.bf16.gmra.mxu0 %v477
        %v1158 = vpop.f32.mrf.mxu0
        %v1159 = vadd.f32 0.0, %v1158
        %v1160 = vpop.f32.mrf.mxu0
        %v1161 = vadd.f32 0.0, %v1160
        %1162 = vmatmul.bf16.gmra.mxu0 %v480
        %v1163 = vpop.f32.mrf.mxu0
        %v1164 = vadd.f32 0.0, %v1163
        %v1165 = vpop.f32.mrf.mxu0
        %v1166 = vadd.f32 0.0, %v1165
        %1167 = vdwg.mxu0
        %1168 = vmatpush.bf16.msra.mxu0 0
        %1169 = vmatpush.bf16.msra.mxu0 0
        %1170 = vmatpush.bf16.msra.mxu0 0
        %1171 = vmatpush.bf16.msra.mxu0 0
        %1172 = vmatpush.bf16.msra.mxu0 0
        %1173 = vmatpush.bf16.msra.mxu0 0
        %1174 = vmatpush.bf16.msra.mxu0 0
        %1175 = vmatpush.bf16.msra.mxu0 %v439
        %1176 = vmatmul.bf16.gmra.mxu0 %v459
        %v1177 = vpop.f32.mrf.mxu0
        %v1178 = vadd.f32 0.0, %v1177
        %v1179 = vpop.f32.mrf.mxu0
        %v1180 = vadd.f32 0.0, %v1179
        %1181 = vmatmul.bf16.gmra.mxu0 %v462
        %v1182 = vpop.f32.mrf.mxu0
        %v1183 = vadd.f32 0.0, %v1182
        %v1184 = vpop.f32.mrf.mxu0
        %v1185 = vadd.f32 0.0, %v1184
        %1186 = vmatmul.bf16.gmra.mxu0 %v465
        %v1187 = vpop.f32.mrf.mxu0
        %v1188 = vadd.f32 0.0, %v1187
        %v1189 = vpop.f32.mrf.mxu0
        %v1190 = vadd.f32 0.0, %v1189
        %1191 = vmatmul.bf16.gmra.mxu0 %v468
        %v1192 = vpop.f32.mrf.mxu0
        %v1193 = vadd.f32 0.0, %v1192
        %v1194 = vpop.f32.mrf.mxu0
        %v1195 = vadd.f32 0.0, %v1194
        %1196 = vmatmul.bf16.gmra.mxu0 %v471
        %v1197 = vpop.f32.mrf.mxu0
        %v1198 = vadd.f32 0.0, %v1197
        %v1199 = vpop.f32.mrf.mxu0
        %v1200 = vadd.f32 0.0, %v1199
        %1201 = vmatmul.bf16.gmra.mxu0 %v474
        %v1202 = vpop.f32.mrf.mxu0
        %v1203 = vadd.f32 0.0, %v1202
        %v1204 = vpop.f32.mrf.mxu0
        %v1205 = vadd.f32 0.0, %v1204
        %1206 = vmatmul.bf16.gmra.mxu0 %v477
        %v1207 = vpop.f32.mrf.mxu0
        %v1208 = vadd.f32 0.0, %v1207
        %v1209 = vpop.f32.mrf.mxu0
        %v1210 = vadd.f32 0.0, %v1209
        %1211 = vmatmul.bf16.gmra.mxu0 %v480
        %v1212 = vpop.f32.mrf.mxu0
        %v1213 = vadd.f32 0.0, %v1212
        %v1214 = vpop.f32.mrf.mxu0
        %v1215 = vadd.f32 0.0, %v1214
        %1216 = vdwg.mxu0
        %1217 = vmatpush.bf16.msra.mxu0 0
        %1218 = vmatpush.bf16.msra.mxu0 0
        %1219 = vmatpush.bf16.msra.mxu0 0
        %1220 = vmatpush.bf16.msra.mxu0 0
        %1221 = vmatpush.bf16.msra.mxu0 0
        %1222 = vmatpush.bf16.msra.mxu0 0
        %1223 = vmatpush.bf16.msra.mxu0 0
        %1224 = vmatpush.bf16.msra.mxu0 %v440
        %1225 = vmatmul.bf16.gmra.mxu0 %v459
        %v1226 = vpop.f32.mrf.mxu0
        %v1227 = vadd.f32 0.0, %v1226
        %v1228 = vpop.f32.mrf.mxu0
        %v1229 = vadd.f32 0.0, %v1228
        %1230 = vmatmul.bf16.gmra.mxu0 %v462
        %v1231 = vpop.f32.mrf.mxu0
        %v1232 = vadd.f32 0.0, %v1231
        %v1233 = vpop.f32.mrf.mxu0
        %v1234 = vadd.f32 0.0, %v1233
        %1235 = vmatmul.bf16.gmra.mxu0 %v465
        %v1236 = vpop.f32.mrf.mxu0
        %v1237 = vadd.f32 0.0, %v1236
        %v1238 = vpop.f32.mrf.mxu0
        %v1239 = vadd.f32 0.0, %v1238
        %1240 = vmatmul.bf16.gmra.mxu0 %v468
        %v1241 = vpop.f32.mrf.mxu0
        %v1242 = vadd.f32 0.0, %v1241
        %v1243 = vpop.f32.mrf.mxu0
        %v1244 = vadd.f32 0.0, %v1243
        %1245 = vmatmul.bf16.gmra.mxu0 %v471
        %v1246 = vpop.f32.mrf.mxu0
        %v1247 = vadd.f32 0.0, %v1246
        %v1248 = vpop.f32.mrf.mxu0
        %v1249 = vadd.f32 0.0, %v1248
        %1250 = vmatmul.bf16.gmra.mxu0 %v474
        %v1251 = vpop.f32.mrf.mxu0
        %v1252 = vadd.f32 0.0, %v1251
        %v1253 = vpop.f32.mrf.mxu0
        %v1254 = vadd.f32 0.0, %v1253
        %1255 = vmatmul.bf16.gmra.mxu0 %v477
        %v1256 = vpop.f32.mrf.mxu0
        %v1257 = vadd.f32 0.0, %v1256
        %v1258 = vpop.f32.mrf.mxu0
        %v1259 = vadd.f32 0.0, %v1258
        %1260 = vmatmul.bf16.gmra.mxu0 %v480
        %v1261 = vpop.f32.mrf.mxu0
        %v1262 = vadd.f32 0.0, %v1261
        %v1263 = vpop.f32.mrf.mxu0
        %v1264 = vadd.f32 0.0, %v1263
        %1265 = vdwg.mxu0
        %v1266 = vmax.f32 %v492, 0.0
        %v1267 = vmax.f32 %v541, 0.0
        %v1268 = vmax.f32 %v590, 0.0
        %v1269 = vmax.f32 %v639, 0.0
        %v1270 = vmax.f32 %v688, 0.0
        %v1271 = vmax.f32 %v737, 0.0
        %v1272 = vmax.f32 %v786, 0.0
        %v1273 = vmax.f32 %v835, 0.0
        %v1274 = vmax.f32 %v884, 0.0
        %v1275 = vmax.f32 %v933, 0.0
        %v1276 = vmax.f32 %v982, 0.0
        %v1277 = vmax.f32 %v1031, 0.0
        %v1278 = vmax.f32 %v1080, 0.0
        %v1279 = vmax.f32 %v1129, 0.0
        %v1280 = vmax.f32 %v1178, 0.0
        %v1281 = vmax.f32 %v1227, 0.0
        %v1282 = vmax.f32 %v494, 0.0
        %v1283 = vmax.f32 %v543, 0.0
        %v1284 = vmax.f32 %v592, 0.0
        %v1285 = vmax.f32 %v641, 0.0
        %v1286 = vmax.f32 %v690, 0.0
        %v1287 = vmax.f32 %v739, 0.0
        %v1288 = vmax.f32 %v788, 0.0
        %v1289 = vmax.f32 %v837, 0.0
        %v1290 = vmax.f32 %v886, 0.0
        %v1291 = vmax.f32 %v935, 0.0
        %v1292 = vmax.f32 %v984, 0.0
        %v1293 = vmax.f32 %v1033, 0.0
        %v1294 = vmax.f32 %v1082, 0.0
        %v1295 = vmax.f32 %v1131, 0.0
        %v1296 = vmax.f32 %v1180, 0.0
        %v1297 = vmax.f32 %v1229, 0.0
        %v1298 = vmax.f32 %v497, 0.0
        %v1299 = vmax.f32 %v546, 0.0
        %v1300 = vmax.f32 %v595, 0.0
        %v1301 = vmax.f32 %v644, 0.0
        %v1302 = vmax.f32 %v693, 0.0
        %v1303 = vmax.f32 %v742, 0.0
        %v1304 = vmax.f32 %v791, 0.0
        %v1305 = vmax.f32 %v840, 0.0
        %v1306 = vmax.f32 %v889, 0.0
        %v1307 = vmax.f32 %v938, 0.0
        %v1308 = vmax.f32 %v987, 0.0
        %v1309 = vmax.f32 %v1036, 0.0
        %v1310 = vmax.f32 %v1085, 0.0
        %v1311 = vmax.f32 %v1134, 0.0
        %v1312 = vmax.f32 %v1183, 0.0
        %v1313 = vmax.f32 %v1232, 0.0
        %v1314 = vmax.f32 %v499, 0.0
        %v1315 = vmax.f32 %v548, 0.0
        %v1316 = vmax.f32 %v597, 0.0
        %v1317 = vmax.f32 %v646, 0.0
        %v1318 = vmax.f32 %v695, 0.0
        %v1319 = vmax.f32 %v744, 0.0
        %v1320 = vmax.f32 %v793, 0.0
        %v1321 = vmax.f32 %v842, 0.0
        %v1322 = vmax.f32 %v891, 0.0
        %v1323 = vmax.f32 %v940, 0.0
        %v1324 = vmax.f32 %v989, 0.0
        %v1325 = vmax.f32 %v1038, 0.0
        %v1326 = vmax.f32 %v1087, 0.0
        %v1327 = vmax.f32 %v1136, 0.0
        %v1328 = vmax.f32 %v1185, 0.0
        %v1329 = vmax.f32 %v1234, 0.0
        %v1330 = vmax.f32 %v502, 0.0
        %v1331 = vmax.f32 %v551, 0.0
        %v1332 = vmax.f32 %v600, 0.0
        %v1333 = vmax.f32 %v649, 0.0
        %v1334 = vmax.f32 %v698, 0.0
        %v1335 = vmax.f32 %v747, 0.0
        %v1336 = vmax.f32 %v796, 0.0
        %v1337 = vmax.f32 %v845, 0.0
        %v1338 = vmax.f32 %v894, 0.0
        %v1339 = vmax.f32 %v943, 0.0
        %v1340 = vmax.f32 %v992, 0.0
        %v1341 = vmax.f32 %v1041, 0.0
        %v1342 = vmax.f32 %v1090, 0.0
        %v1343 = vmax.f32 %v1139, 0.0
        %v1344 = vmax.f32 %v1188, 0.0
        %v1345 = vmax.f32 %v1237, 0.0
        %v1346 = vmax.f32 %v504, 0.0
        %v1347 = vmax.f32 %v553, 0.0
        %v1348 = vmax.f32 %v602, 0.0
        %v1349 = vmax.f32 %v651, 0.0
        %v1350 = vmax.f32 %v700, 0.0
        %v1351 = vmax.f32 %v749, 0.0
        %v1352 = vmax.f32 %v798, 0.0
        %v1353 = vmax.f32 %v847, 0.0
        %v1354 = vmax.f32 %v896, 0.0
        %v1355 = vmax.f32 %v945, 0.0
        %v1356 = vmax.f32 %v994, 0.0
        %v1357 = vmax.f32 %v1043, 0.0
        %v1358 = vmax.f32 %v1092, 0.0
        %v1359 = vmax.f32 %v1141, 0.0
        %v1360 = vmax.f32 %v1190, 0.0
        %v1361 = vmax.f32 %v1239, 0.0
        %v1362 = vmax.f32 %v507, 0.0
        %v1363 = vmax.f32 %v556, 0.0
        %v1364 = vmax.f32 %v605, 0.0
        %v1365 = vmax.f32 %v654, 0.0
        %v1366 = vmax.f32 %v703, 0.0
        %v1367 = vmax.f32 %v752, 0.0
        %v1368 = vmax.f32 %v801, 0.0
        %v1369 = vmax.f32 %v850, 0.0
        %v1370 = vmax.f32 %v899, 0.0
        %v1371 = vmax.f32 %v948, 0.0
        %v1372 = vmax.f32 %v997, 0.0
        %v1373 = vmax.f32 %v1046, 0.0
        %v1374 = vmax.f32 %v1095, 0.0
        %v1375 = vmax.f32 %v1144, 0.0
        %v1376 = vmax.f32 %v1193, 0.0
        %v1377 = vmax.f32 %v1242, 0.0
        %v1378 = vmax.f32 %v509, 0.0
        %v1379 = vmax.f32 %v558, 0.0
        %v1380 = vmax.f32 %v607, 0.0
        %v1381 = vmax.f32 %v656, 0.0
        %v1382 = vmax.f32 %v705, 0.0
        %v1383 = vmax.f32 %v754, 0.0
        %v1384 = vmax.f32 %v803, 0.0
        %v1385 = vmax.f32 %v852, 0.0
        %v1386 = vmax.f32 %v901, 0.0
        %v1387 = vmax.f32 %v950, 0.0
        %v1388 = vmax.f32 %v999, 0.0
        %v1389 = vmax.f32 %v1048, 0.0
        %v1390 = vmax.f32 %v1097, 0.0
        %v1391 = vmax.f32 %v1146, 0.0
        %v1392 = vmax.f32 %v1195, 0.0
        %v1393 = vmax.f32 %v1244, 0.0
        %v1394 = vld [vmem:[%s2] sm:$0xf]
        %v1395 = vld [vmem:[%s2 + $0x4] sm:$0xf]
        %v1396 = vld [vmem:[%s2 + $0x8] sm:$0xf]
        %v1397 = vld [vmem:[%s2 + $0xc] sm:$0xf]
        %v1398 = vld [vmem:[%s2 + $0x10] sm:$0xf]
        %v1399 = vld [vmem:[%s2 + $0x14] sm:$0xf]
        %v1400 = vld [vmem:[%s2 + $0x18] sm:$0xf]
        %v1401 = vld [vmem:[%s2 + $0x1c] sm:$0xf]
        %v1402 = vld [vmem:[%s2 + $0x20] sm:$0xf]
        %v1403 = vpack.c.bf16 %v1282, %v1266
        %v1404 = vpack.c.bf16 %v1283, %v1267
        %v1405 = vpack.c.bf16 %v1284, %v1268
        %v1406 = vpack.c.bf16 %v1285, %v1269
        %v1407 = vpack.c.bf16 %v1286, %v1270
        %v1408 = vpack.c.bf16 %v1287, %v1271
        %v1409 = vpack.c.bf16 %v1288, %v1272
        %v1410 = vpack.c.bf16 %v1289, %v1273
        %v1411 = vpack.c.bf16 %v1290, %v1274
        %v1412 = vpack.c.bf16 %v1291, %v1275
        %v1413 = vpack.c.bf16 %v1292, %v1276
        %v1414 = vpack.c.bf16 %v1293, %v1277
        %v1415 = vpack.c.bf16 %v1294, %v1278
        %v1416 = vpack.c.bf16 %v1295, %v1279
        %v1417 = vpack.c.bf16 %v1296, %v1280
        %v1418 = vpack.c.bf16 %v1297, %v1281
        %v1419 = vpack.c.bf16 %v1314, %v1298
        %v1420 = vpack.c.bf16 %v1315, %v1299
        %v1421 = vpack.c.bf16 %v1316, %v1300
        %v1422 = vpack.c.bf16 %v1317, %v1301
        %v1423 = vpack.c.bf16 %v1318, %v1302
        %v1424 = vpack.c.bf16 %v1319, %v1303
        %v1425 = vpack.c.bf16 %v1320, %v1304
        %v1426 = vpack.c.bf16 %v1321, %v1305
        %v1427 = vpack.c.bf16 %v1322, %v1306
        %v1428 = vpack.c.bf16 %v1323, %v1307
        %v1429 = vpack.c.bf16 %v1324, %v1308
        %v1430 = vpack.c.bf16 %v1325, %v1309
        %v1431 = vpack.c.bf16 %v1326, %v1310
        %v1432 = vpack.c.bf16 %v1327, %v1311
        %v1433 = vpack.c.bf16 %v1328, %v1312
        %v1434 = vpack.c.bf16 %v1329, %v1313
        %v1435 = vpack.c.bf16 %v1346, %v1330
        %v1436 = vpack.c.bf16 %v1347, %v1331
        %v1437 = vpack.c.bf16 %v1348, %v1332
        %v1438 = vpack.c.bf16 %v1349, %v1333
        %v1439 = vpack.c.bf16 %v1350, %v1334
        %v1440 = vpack.c.bf16 %v1351, %v1335
        %v1441 = vpack.c.bf16 %v1352, %v1336
        %v1442 = vpack.c.bf16 %v1353, %v1337
        %v1443 = vpack.c.bf16 %v1354, %v1338
        %v1444 = vpack.c.bf16 %v1355, %v1339
        %v1445 = vpack.c.bf16 %v1356, %v1340
        %v1446 = vpack.c.bf16 %v1357, %v1341
        %v1447 = vpack.c.bf16 %v1358, %v1342
        %v1448 = vpack.c.bf16 %v1359, %v1343
        %v1449 = vpack.c.bf16 %v1360, %v1344
        %v1450 = vpack.c.bf16 %v1361, %v1345
        %v1451 = vpack.c.bf16 %v1378, %v1362
        %v1452 = vpack.c.bf16 %v1379, %v1363
        %v1453 = vpack.c.bf16 %v1380, %v1364
        %v1454 = vpack.c.bf16 %v1381, %v1365
        %v1455 = vpack.c.bf16 %v1382, %v1366
        %v1456 = vpack.c.bf16 %v1383, %v1367
        %v1457 = vpack.c.bf16 %v1384, %v1368
        %v1458 = vpack.c.bf16 %v1385, %v1369
        %v1459 = vpack.c.bf16 %v1386, %v1370
        %v1460 = vpack.c.bf16 %v1387, %v1371
        %v1461 = vpack.c.bf16 %v1388, %v1372
        %v1462 = vpack.c.bf16 %v1389, %v1373
        %v1463 = vpack.c.bf16 %v1390, %v1374
        %v1464 = vpack.c.bf16 %v1391, %v1375
        %v1465 = vpack.c.bf16 %v1392, %v1376
        %v1466 = vpack.c.bf16 %v1393, %v1377
        %v1467 = vld [vmem:[%s3] sm:$0xff]
        %v1468 = vld [vmem:[%s3 + $0x8] sm:$0xff]
        %v1469 = vld [vmem:[%s3 + $0x10] sm:$0xff]
        %v1470 = vld [vmem:[%s3 + $0x18] sm:$0xff]
        %v1471 = vld [vmem:[%s3 + $0x20] sm:$0xff]
        %v1472 = vld [vmem:[%s3 + $0x28] sm:$0xff]
        %v1473 = vld [vmem:[%s3 + $0x30] sm:$0xff]
        %v1474 = vld [vmem:[%s3 + $0x38] sm:$0xff]
        %v1475 = vld [vmem:[%s3 + $0x40] sm:$0xff]
        %1477 = vset.pattern.permute.xlu0 0
        %1478 = vperm.xlu0 %1477, %v1467
        %v1479 = vpop.permute.xlu0 %1478
        %1482 = vset.pattern.permute.xlu0 0
        %1483 = vperm.xlu0 %1482, %v1468
        %v1484 = vpop.permute.xlu0 %1483
        %1487 = vset.pattern.permute.xlu0 0
        %1488 = vperm.xlu0 %1487, %v1469
        %v1489 = vpop.permute.xlu0 %1488
        %1492 = vset.pattern.permute.xlu0 0
        %1493 = vperm.xlu0 %1492, %v1470
        %v1494 = vpop.permute.xlu0 %1493
        %1497 = vset.pattern.permute.xlu0 0
        %1498 = vperm.xlu0 %1497, %v1471
        %v1499 = vpop.permute.xlu0 %1498
        %1502 = vset.pattern.permute.xlu0 0
        %1503 = vperm.xlu0 %1502, %v1472
        %v1504 = vpop.permute.xlu0 %1503
        %1507 = vset.pattern.permute.xlu0 0
        %1508 = vperm.xlu0 %1507, %v1473
        %v1509 = vpop.permute.xlu0 %1508
        %1512 = vset.pattern.permute.xlu0 0
        %1513 = vperm.xlu0 %1512, %v1474
        %v1514 = vpop.permute.xlu0 %1513
        %1517 = vset.pattern.permute.xlu0 0
        %1518 = vperm.xlu0 %1517, %v1475
        %v1519 = vpop.permute.xlu0 %1518
        %v1530 = vunpack.c.l.b16 %v1394
        %v1531 = vunpack.c.l.b16 %v1395
        %v1532 = vunpack.c.l.b16 %v1396
        %v1533 = vunpack.c.l.b16 %v1397
        %v1534 = vunpack.c.l.b16 %v1398
        %v1535 = vunpack.c.l.b16 %v1399
        %v1536 = vunpack.c.l.b16 %v1400
        %v1537 = vunpack.c.l.b16 %v1401
        %v1538 = vunpack.c.l.b16 %v1402
        %v1539 = vpack.c.b16 %v1531, %v1530
        %v1540 = vpack.c.b16 %v1533, %v1532
        %v1541 = vpack.c.b16 %v1535, %v1534
        %v1542 = vpack.c.b16 %v1537, %v1536
        %v1543 = vpack.c.b16 %v1538, %v1538
        %vm1544 = vcmask 523264
        %v1546 = vsel %vm1544, %v1539, 0
        %v1549 = vsel %vm1544, %v1540, 0
        %v1552 = vsel %vm1544, %v1541, 0
        %v1555 = vsel %vm1544, %v1542, 0
        %v1558 = vsel %vm1544, %v1543, 0
        %1560 = vmatpush.bf16.msra.mxu0 0
        %1561 = vmatpush.bf16.msra.mxu0 0
        %1562 = vmatpush.bf16.msra.mxu0 0
        %1563 = vmatpush.bf16.msra.mxu0 0
        %1564 = vmatpush.bf16.msra.mxu0 %v1451
        %1565 = vmatpush.bf16.msra.mxu0 %v1435
        %1566 = vmatpush.bf16.msra.mxu0 %v1419
        %1567 = vmatpush.bf16.msra.mxu0 %v1403
        %1568 = vmatmul.bf16.gmra.mxu0 %v1546
        %v1569 = vpop.f32.mrf.mxu0
        %v1570 = vadd.f32 %v1479, %v1569
        %v1571 = vpop.f32.mrf.mxu0
        %v1572 = vadd.f32 %v1484, %v1571
        %1573 = vmatmul.bf16.gmra.mxu0 %v1549
        %v1574 = vpop.f32.mrf.mxu0
        %v1575 = vadd.f32 %v1489, %v1574
        %v1576 = vpop.f32.mrf.mxu0
        %v1577 = vadd.f32 %v1494, %v1576
        %1578 = vmatmul.bf16.gmra.mxu0 %v1552
        %v1579 = vpop.f32.mrf.mxu0
        %v1580 = vadd.f32 %v1499, %v1579
        %v1581 = vpop.f32.mrf.mxu0
        %v1582 = vadd.f32 %v1504, %v1581
        %1583 = vmatmul.bf16.gmra.mxu0 %v1555
        %v1584 = vpop.f32.mrf.mxu0
        %v1585 = vadd.f32 %v1509, %v1584
        %v1586 = vpop.f32.mrf.mxu0
        %v1587 = vadd.f32 %v1514, %v1586
        %1588 = vmatmul.bf16.gmra.mxu0 %v1558
        %v1589 = vpop.f32.mrf.mxu0
        %v1590 = vadd.f32 %v1519, %v1589
        %v1591 = vpop.f32.mrf.mxu0
        %1592 = vdwg.mxu0
        %1593 = vmatpush.bf16.msra.mxu0 0
        %1594 = vmatpush.bf16.msra.mxu0 0
        %1595 = vmatpush.bf16.msra.mxu0 0
        %1596 = vmatpush.bf16.msra.mxu0 0
        %1597 = vmatpush.bf16.msra.mxu0 %v1452
        %1598 = vmatpush.bf16.msra.mxu0 %v1436
        %1599 = vmatpush.bf16.msra.mxu0 %v1420
        %1600 = vmatpush.bf16.msra.mxu0 %v1404
        %1601 = vmatmul.bf16.gmra.mxu0 %v1546
        %v1602 = vpop.f32.mrf.mxu0
        %v1603 = vadd.f32 %v1479, %v1602
        %v1604 = vpop.f32.mrf.mxu0
        %v1605 = vadd.f32 %v1484, %v1604
        %1606 = vmatmul.bf16.gmra.mxu0 %v1549
        %v1607 = vpop.f32.mrf.mxu0
        %v1608 = vadd.f32 %v1489, %v1607
        %v1609 = vpop.f32.mrf.mxu0
        %v1610 = vadd.f32 %v1494, %v1609
        %1611 = vmatmul.bf16.gmra.mxu0 %v1552
        %v1612 = vpop.f32.mrf.mxu0
        %v1613 = vadd.f32 %v1499, %v1612
        %v1614 = vpop.f32.mrf.mxu0
        %v1615 = vadd.f32 %v1504, %v1614
        %1616 = vmatmul.bf16.gmra.mxu0 %v1555
        %v1617 = vpop.f32.mrf.mxu0
        %v1618 = vadd.f32 %v1509, %v1617
        %v1619 = vpop.f32.mrf.mxu0
        %v1620 = vadd.f32 %v1514, %v1619
        %1621 = vmatmul.bf16.gmra.mxu0 %v1558
        %v1622 = vpop.f32.mrf.mxu0
        %v1623 = vadd.f32 %v1519, %v1622
        %v1624 = vpop.f32.mrf.mxu0
        %1625 = vdwg.mxu0
        %1626 = vmatpush.bf16.msra.mxu0 0
        %1627 = vmatpush.bf16.msra.mxu0 0
        %1628 = vmatpush.bf16.msra.mxu0 0
        %1629 = vmatpush.bf16.msra.mxu0 0
        %1630 = vmatpush.bf16.msra.mxu0 %v1453
        %1631 = vmatpush.bf16.msra.mxu0 %v1437
        %1632 = vmatpush.bf16.msra.mxu0 %v1421
        %1633 = vmatpush.bf16.msra.mxu0 %v1405
        %1634 = vmatmul.bf16.gmra.mxu0 %v1546
        %v1635 = vpop.f32.mrf.mxu0
        %v1636 = vadd.f32 %v1479, %v1635
        %v1637 = vpop.f32.mrf.mxu0
        %v1638 = vadd.f32 %v1484, %v1637
        %1639 = vmatmul.bf16.gmra.mxu0 %v1549
        %v1640 = vpop.f32.mrf.mxu0
        %v1641 = vadd.f32 %v1489, %v1640
        %v1642 = vpop.f32.mrf.mxu0
        %v1643 = vadd.f32 %v1494, %v1642
        %1644 = vmatmul.bf16.gmra.mxu0 %v1552
        %v1645 = vpop.f32.mrf.mxu0
        %v1646 = vadd.f32 %v1499, %v1645
        %v1647 = vpop.f32.mrf.mxu0
        %v1648 = vadd.f32 %v1504, %v1647
        %1649 = vmatmul.bf16.gmra.mxu0 %v1555
        %v1650 = vpop.f32.mrf.mxu0
        %v1651 = vadd.f32 %v1509, %v1650
        %v1652 = vpop.f32.mrf.mxu0
        %v1653 = vadd.f32 %v1514, %v1652
        %1654 = vmatmul.bf16.gmra.mxu0 %v1558
        %v1655 = vpop.f32.mrf.mxu0
        %v1656 = vadd.f32 %v1519, %v1655
        %v1657 = vpop.f32.mrf.mxu0
        %1658 = vdwg.mxu0
        %1659 = vmatpush.bf16.msra.mxu0 0
        %1660 = vmatpush.bf16.msra.mxu0 0
        %1661 = vmatpush.bf16.msra.mxu0 0
        %1662 = vmatpush.bf16.msra.mxu0 0
        %1663 = vmatpush.bf16.msra.mxu0 %v1454
        %1664 = vmatpush.bf16.msra.mxu0 %v1438
        %1665 = vmatpush.bf16.msra.mxu0 %v1422
        %1666 = vmatpush.bf16.msra.mxu0 %v1406
        %1667 = vmatmul.bf16.gmra.mxu0 %v1546
        %v1668 = vpop.f32.mrf.mxu0
        %v1669 = vadd.f32 %v1479, %v1668
        %v1670 = vpop.f32.mrf.mxu0
        %v1671 = vadd.f32 %v1484, %v1670
        %1672 = vmatmul.bf16.gmra.mxu0 %v1549
        %v1673 = vpop.f32.mrf.mxu0
        %v1674 = vadd.f32 %v1489, %v1673
        %v1675 = vpop.f32.mrf.mxu0
        %v1676 = vadd.f32 %v1494, %v1675
        %1677 = vmatmul.bf16.gmra.mxu0 %v1552
        %v1678 = vpop.f32.mrf.mxu0
        %v1679 = vadd.f32 %v1499, %v1678
        %v1680 = vpop.f32.mrf.mxu0
        %v1681 = vadd.f32 %v1504, %v1680
        %1682 = vmatmul.bf16.gmra.mxu0 %v1555
        %v1683 = vpop.f32.mrf.mxu0
        %v1684 = vadd.f32 %v1509, %v1683
        %v1685 = vpop.f32.mrf.mxu0
        %v1686 = vadd.f32 %v1514, %v1685
        %1687 = vmatmul.bf16.gmra.mxu0 %v1558
        %v1688 = vpop.f32.mrf.mxu0
        %v1689 = vadd.f32 %v1519, %v1688
        %v1690 = vpop.f32.mrf.mxu0
        %1691 = vdwg.mxu0
        %1692 = vmatpush.bf16.msra.mxu0 0
        %1693 = vmatpush.bf16.msra.mxu0 0
        %1694 = vmatpush.bf16.msra.mxu0 0
        %1695 = vmatpush.bf16.msra.mxu0 0
        %1696 = vmatpush.bf16.msra.mxu0 %v1455
        %1697 = vmatpush.bf16.msra.mxu0 %v1439
        %1698 = vmatpush.bf16.msra.mxu0 %v1423
        %1699 = vmatpush.bf16.msra.mxu0 %v1407
        %1700 = vmatmul.bf16.gmra.mxu0 %v1546
        %v1701 = vpop.f32.mrf.mxu0
        %v1702 = vadd.f32 %v1479, %v1701
        %v1703 = vpop.f32.mrf.mxu0
        %v1704 = vadd.f32 %v1484, %v1703
        %1705 = vmatmul.bf16.gmra.mxu0 %v1549
        %v1706 = vpop.f32.mrf.mxu0
        %v1707 = vadd.f32 %v1489, %v1706
        %v1708 = vpop.f32.mrf.mxu0
        %v1709 = vadd.f32 %v1494, %v1708
        %1710 = vmatmul.bf16.gmra.mxu0 %v1552
        %v1711 = vpop.f32.mrf.mxu0
        %v1712 = vadd.f32 %v1499, %v1711
        %v1713 = vpop.f32.mrf.mxu0
        %v1714 = vadd.f32 %v1504, %v1713
        %1715 = vmatmul.bf16.gmra.mxu0 %v1555
        %v1716 = vpop.f32.mrf.mxu0
        %v1717 = vadd.f32 %v1509, %v1716
        %v1718 = vpop.f32.mrf.mxu0
        %v1719 = vadd.f32 %v1514, %v1718
        %1720 = vmatmul.bf16.gmra.mxu0 %v1558
        %v1721 = vpop.f32.mrf.mxu0
        %v1722 = vadd.f32 %v1519, %v1721
        %v1723 = vpop.f32.mrf.mxu0
        %1724 = vdwg.mxu0
        %1725 = vmatpush.bf16.msra.mxu0 0
        %1726 = vmatpush.bf16.msra.mxu0 0
        %1727 = vmatpush.bf16.msra.mxu0 0
        %1728 = vmatpush.bf16.msra.mxu0 0
        %1729 = vmatpush.bf16.msra.mxu0 %v1456
        %1730 = vmatpush.bf16.msra.mxu0 %v1440
        %1731 = vmatpush.bf16.msra.mxu0 %v1424
        %1732 = vmatpush.bf16.msra.mxu0 %v1408
        %1733 = vmatmul.bf16.gmra.mxu0 %v1546
        %v1734 = vpop.f32.mrf.mxu0
        %v1735 = vadd.f32 %v1479, %v1734
        %v1736 = vpop.f32.mrf.mxu0
        %v1737 = vadd.f32 %v1484, %v1736
        %1738 = vmatmul.bf16.gmra.mxu0 %v1549
        %v1739 = vpop.f32.mrf.mxu0
        %v1740 = vadd.f32 %v1489, %v1739
        %v1741 = vpop.f32.mrf.mxu0
        %v1742 = vadd.f32 %v1494, %v1741
        %1743 = vmatmul.bf16.gmra.mxu0 %v1552
        %v1744 = vpop.f32.mrf.mxu0
        %v1745 = vadd.f32 %v1499, %v1744
        %v1746 = vpop.f32.mrf.mxu0
        %v1747 = vadd.f32 %v1504, %v1746
        %1748 = vmatmul.bf16.gmra.mxu0 %v1555
        %v1749 = vpop.f32.mrf.mxu0
        %v1750 = vadd.f32 %v1509, %v1749
        %v1751 = vpop.f32.mrf.mxu0
        %v1752 = vadd.f32 %v1514, %v1751
        %1753 = vmatmul.bf16.gmra.mxu0 %v1558
        %v1754 = vpop.f32.mrf.mxu0
        %v1755 = vadd.f32 %v1519, %v1754
        %v1756 = vpop.f32.mrf.mxu0
        %1757 = vdwg.mxu0
        %1758 = vmatpush.bf16.msra.mxu0 0
        %1759 = vmatpush.bf16.msra.mxu0 0
        %1760 = vmatpush.bf16.msra.mxu0 0
        %1761 = vmatpush.bf16.msra.mxu0 0
        %1762 = vmatpush.bf16.msra.mxu0 %v1457
        %1763 = vmatpush.bf16.msra.mxu0 %v1441
        %1764 = vmatpush.bf16.msra.mxu0 %v1425
        %1765 = vmatpush.bf16.msra.mxu0 %v1409
        %1766 = vmatmul.bf16.gmra.mxu0 %v1546
        %v1767 = vpop.f32.mrf.mxu0
        %v1768 = vadd.f32 %v1479, %v1767
        %v1769 = vpop.f32.mrf.mxu0
        %v1770 = vadd.f32 %v1484, %v1769
        %1771 = vmatmul.bf16.gmra.mxu0 %v1549
        %v1772 = vpop.f32.mrf.mxu0
        %v1773 = vadd.f32 %v1489, %v1772
        %v1774 = vpop.f32.mrf.mxu0
        %v1775 = vadd.f32 %v1494, %v1774
        %1776 = vmatmul.bf16.gmra.mxu0 %v1552
        %v1777 = vpop.f32.mrf.mxu0
        %v1778 = vadd.f32 %v1499, %v1777
        %v1779 = vpop.f32.mrf.mxu0
        %v1780 = vadd.f32 %v1504, %v1779
        %1781 = vmatmul.bf16.gmra.mxu0 %v1555
        %v1782 = vpop.f32.mrf.mxu0
        %v1783 = vadd.f32 %v1509, %v1782
        %v1784 = vpop.f32.mrf.mxu0
        %v1785 = vadd.f32 %v1514, %v1784
        %1786 = vmatmul.bf16.gmra.mxu0 %v1558
        %v1787 = vpop.f32.mrf.mxu0
        %v1788 = vadd.f32 %v1519, %v1787
        %v1789 = vpop.f32.mrf.mxu0
        %1790 = vdwg.mxu0
        %1791 = vmatpush.bf16.msra.mxu0 0
        %1792 = vmatpush.bf16.msra.mxu0 0
        %1793 = vmatpush.bf16.msra.mxu0 0
        %1794 = vmatpush.bf16.msra.mxu0 0
        %1795 = vmatpush.bf16.msra.mxu0 %v1458
        %1796 = vmatpush.bf16.msra.mxu0 %v1442
        %1797 = vmatpush.bf16.msra.mxu0 %v1426
        %1798 = vmatpush.bf16.msra.mxu0 %v1410
        %1799 = vmatmul.bf16.gmra.mxu0 %v1546
        %v1800 = vpop.f32.mrf.mxu0
        %v1801 = vadd.f32 %v1479, %v1800
        %v1802 = vpop.f32.mrf.mxu0
        %v1803 = vadd.f32 %v1484, %v1802
        %1804 = vmatmul.bf16.gmra.mxu0 %v1549
        %v1805 = vpop.f32.mrf.mxu0
        %v1806 = vadd.f32 %v1489, %v1805
        %v1807 = vpop.f32.mrf.mxu0
        %v1808 = vadd.f32 %v1494, %v1807
        %1809 = vmatmul.bf16.gmra.mxu0 %v1552
        %v1810 = vpop.f32.mrf.mxu0
        %v1811 = vadd.f32 %v1499, %v1810
        %v1812 = vpop.f32.mrf.mxu0
        %v1813 = vadd.f32 %v1504, %v1812
        %1814 = vmatmul.bf16.gmra.mxu0 %v1555
        %v1815 = vpop.f32.mrf.mxu0
        %v1816 = vadd.f32 %v1509, %v1815
        %v1817 = vpop.f32.mrf.mxu0
        %v1818 = vadd.f32 %v1514, %v1817
        %1819 = vmatmul.bf16.gmra.mxu0 %v1558
        %v1820 = vpop.f32.mrf.mxu0
        %v1821 = vadd.f32 %v1519, %v1820
        %v1822 = vpop.f32.mrf.mxu0
        %1823 = vdwg.mxu0
        %1824 = vmatpush.bf16.msra.mxu0 0
        %1825 = vmatpush.bf16.msra.mxu0 0
        %1826 = vmatpush.bf16.msra.mxu0 0
        %1827 = vmatpush.bf16.msra.mxu0 0
        %1828 = vmatpush.bf16.msra.mxu0 %v1459
        %1829 = vmatpush.bf16.msra.mxu0 %v1443
        %1830 = vmatpush.bf16.msra.mxu0 %v1427
        %1831 = vmatpush.bf16.msra.mxu0 %v1411
        %1832 = vmatmul.bf16.gmra.mxu0 %v1546
        %v1833 = vpop.f32.mrf.mxu0
        %v1834 = vadd.f32 %v1479, %v1833
        %v1835 = vpop.f32.mrf.mxu0
        %v1836 = vadd.f32 %v1484, %v1835
        %1837 = vmatmul.bf16.gmra.mxu0 %v1549
        %v1838 = vpop.f32.mrf.mxu0
        %v1839 = vadd.f32 %v1489, %v1838
        %v1840 = vpop.f32.mrf.mxu0
        %v1841 = vadd.f32 %v1494, %v1840
        %1842 = vmatmul.bf16.gmra.mxu0 %v1552
        %v1843 = vpop.f32.mrf.mxu0
        %v1844 = vadd.f32 %v1499, %v1843
        %v1845 = vpop.f32.mrf.mxu0
        %v1846 = vadd.f32 %v1504, %v1845
        %1847 = vmatmul.bf16.gmra.mxu0 %v1555
        %v1848 = vpop.f32.mrf.mxu0
        %v1849 = vadd.f32 %v1509, %v1848
        %v1850 = vpop.f32.mrf.mxu0
        %v1851 = vadd.f32 %v1514, %v1850
        %1852 = vmatmul.bf16.gmra.mxu0 %v1558
        %v1853 = vpop.f32.mrf.mxu0
        %v1854 = vadd.f32 %v1519, %v1853
        %v1855 = vpop.f32.mrf.mxu0
        %1856 = vdwg.mxu0
        %1857 = vmatpush.bf16.msra.mxu0 0
        %1858 = vmatpush.bf16.msra.mxu0 0
        %1859 = vmatpush.bf16.msra.mxu0 0
        %1860 = vmatpush.bf16.msra.mxu0 0
        %1861 = vmatpush.bf16.msra.mxu0 %v1460
        %1862 = vmatpush.bf16.msra.mxu0 %v1444
        %1863 = vmatpush.bf16.msra.mxu0 %v1428
        %1864 = vmatpush.bf16.msra.mxu0 %v1412
        %1865 = vmatmul.bf16.gmra.mxu0 %v1546
        %v1866 = vpop.f32.mrf.mxu0
        %v1867 = vadd.f32 %v1479, %v1866
        %v1868 = vpop.f32.mrf.mxu0
        %v1869 = vadd.f32 %v1484, %v1868
        %1870 = vmatmul.bf16.gmra.mxu0 %v1549
        %v1871 = vpop.f32.mrf.mxu0
        %v1872 = vadd.f32 %v1489, %v1871
        %v1873 = vpop.f32.mrf.mxu0
        %v1874 = vadd.f32 %v1494, %v1873
        %1875 = vmatmul.bf16.gmra.mxu0 %v1552
        %v1876 = vpop.f32.mrf.mxu0
        %v1877 = vadd.f32 %v1499, %v1876
        %v1878 = vpop.f32.mrf.mxu0
        %v1879 = vadd.f32 %v1504, %v1878
        %1880 = vmatmul.bf16.gmra.mxu0 %v1555
        %v1881 = vpop.f32.mrf.mxu0
        %v1882 = vadd.f32 %v1509, %v1881
        %v1883 = vpop.f32.mrf.mxu0
        %v1884 = vadd.f32 %v1514, %v1883
        %1885 = vmatmul.bf16.gmra.mxu0 %v1558
        %v1886 = vpop.f32.mrf.mxu0
        %v1887 = vadd.f32 %v1519, %v1886
        %v1888 = vpop.f32.mrf.mxu0
        %1889 = vdwg.mxu0
        %1890 = vmatpush.bf16.msra.mxu0 0
        %1891 = vmatpush.bf16.msra.mxu0 0
        %1892 = vmatpush.bf16.msra.mxu0 0
        %1893 = vmatpush.bf16.msra.mxu0 0
        %1894 = vmatpush.bf16.msra.mxu0 %v1461
        %1895 = vmatpush.bf16.msra.mxu0 %v1445
        %1896 = vmatpush.bf16.msra.mxu0 %v1429
        %1897 = vmatpush.bf16.msra.mxu0 %v1413
        %1898 = vmatmul.bf16.gmra.mxu0 %v1546
        %v1899 = vpop.f32.mrf.mxu0
        %v1900 = vadd.f32 %v1479, %v1899
        %v1901 = vpop.f32.mrf.mxu0
        %v1902 = vadd.f32 %v1484, %v1901
        %1903 = vmatmul.bf16.gmra.mxu0 %v1549
        %v1904 = vpop.f32.mrf.mxu0
        %v1905 = vadd.f32 %v1489, %v1904
        %v1906 = vpop.f32.mrf.mxu0
        %v1907 = vadd.f32 %v1494, %v1906
        %1908 = vmatmul.bf16.gmra.mxu0 %v1552
        %v1909 = vpop.f32.mrf.mxu0
        %v1910 = vadd.f32 %v1499, %v1909
        %v1911 = vpop.f32.mrf.mxu0
        %v1912 = vadd.f32 %v1504, %v1911
        %1913 = vmatmul.bf16.gmra.mxu0 %v1555
        %v1914 = vpop.f32.mrf.mxu0
        %v1915 = vadd.f32 %v1509, %v1914
        %v1916 = vpop.f32.mrf.mxu0
        %v1917 = vadd.f32 %v1514, %v1916
        %1918 = vmatmul.bf16.gmra.mxu0 %v1558
        %v1919 = vpop.f32.mrf.mxu0
        %v1920 = vadd.f32 %v1519, %v1919
        %v1921 = vpop.f32.mrf.mxu0
        %1922 = vdwg.mxu0
        %1923 = vmatpush.bf16.msra.mxu0 0
        %1924 = vmatpush.bf16.msra.mxu0 0
        %1925 = vmatpush.bf16.msra.mxu0 0
        %1926 = vmatpush.bf16.msra.mxu0 0
        %1927 = vmatpush.bf16.msra.mxu0 %v1462
        %1928 = vmatpush.bf16.msra.mxu0 %v1446
        %1929 = vmatpush.bf16.msra.mxu0 %v1430
        %1930 = vmatpush.bf16.msra.mxu0 %v1414
        %1931 = vmatmul.bf16.gmra.mxu0 %v1546
        %v1932 = vpop.f32.mrf.mxu0
        %v1933 = vadd.f32 %v1479, %v1932
        %v1934 = vpop.f32.mrf.mxu0
        %v1935 = vadd.f32 %v1484, %v1934
        %1936 = vmatmul.bf16.gmra.mxu0 %v1549
        %v1937 = vpop.f32.mrf.mxu0
        %v1938 = vadd.f32 %v1489, %v1937
        %v1939 = vpop.f32.mrf.mxu0
        %v1940 = vadd.f32 %v1494, %v1939
        %1941 = vmatmul.bf16.gmra.mxu0 %v1552
        %v1942 = vpop.f32.mrf.mxu0
        %v1943 = vadd.f32 %v1499, %v1942
        %v1944 = vpop.f32.mrf.mxu0
        %v1945 = vadd.f32 %v1504, %v1944
        %1946 = vmatmul.bf16.gmra.mxu0 %v1555
        %v1947 = vpop.f32.mrf.mxu0
        %v1948 = vadd.f32 %v1509, %v1947
        %v1949 = vpop.f32.mrf.mxu0
        %v1950 = vadd.f32 %v1514, %v1949
        %1951 = vmatmul.bf16.gmra.mxu0 %v1558
        %v1952 = vpop.f32.mrf.mxu0
        %v1953 = vadd.f32 %v1519, %v1952
        %v1954 = vpop.f32.mrf.mxu0
        %1955 = vdwg.mxu0
        %1956 = vmatpush.bf16.msra.mxu0 0
        %1957 = vmatpush.bf16.msra.mxu0 0
        %1958 = vmatpush.bf16.msra.mxu0 0
        %1959 = vmatpush.bf16.msra.mxu0 0
        %1960 = vmatpush.bf16.msra.mxu0 %v1463
        %1961 = vmatpush.bf16.msra.mxu0 %v1447
        %1962 = vmatpush.bf16.msra.mxu0 %v1431
        %1963 = vmatpush.bf16.msra.mxu0 %v1415
        %1964 = vmatmul.bf16.gmra.mxu0 %v1546
        %v1965 = vpop.f32.mrf.mxu0
        %v1966 = vadd.f32 %v1479, %v1965
        %v1967 = vpop.f32.mrf.mxu0
        %v1968 = vadd.f32 %v1484, %v1967
        %1969 = vmatmul.bf16.gmra.mxu0 %v1549
        %v1970 = vpop.f32.mrf.mxu0
        %v1971 = vadd.f32 %v1489, %v1970
        %v1972 = vpop.f32.mrf.mxu0
        %v1973 = vadd.f32 %v1494, %v1972
        %1974 = vmatmul.bf16.gmra.mxu0 %v1552
        %v1975 = vpop.f32.mrf.mxu0
        %v1976 = vadd.f32 %v1499, %v1975
        %v1977 = vpop.f32.mrf.mxu0
        %v1978 = vadd.f32 %v1504, %v1977
        %1979 = vmatmul.bf16.gmra.mxu0 %v1555
        %v1980 = vpop.f32.mrf.mxu0
        %v1981 = vadd.f32 %v1509, %v1980
        %v1982 = vpop.f32.mrf.mxu0
        %v1983 = vadd.f32 %v1514, %v1982
        %1984 = vmatmul.bf16.gmra.mxu0 %v1558
        %v1985 = vpop.f32.mrf.mxu0
        %v1986 = vadd.f32 %v1519, %v1985
        %v1987 = vpop.f32.mrf.mxu0
        %1988 = vdwg.mxu0
        %1989 = vmatpush.bf16.msra.mxu0 0
        %1990 = vmatpush.bf16.msra.mxu0 0
        %1991 = vmatpush.bf16.msra.mxu0 0
        %1992 = vmatpush.bf16.msra.mxu0 0
        %1993 = vmatpush.bf16.msra.mxu0 %v1464
        %1994 = vmatpush.bf16.msra.mxu0 %v1448
        %1995 = vmatpush.bf16.msra.mxu0 %v1432
        %1996 = vmatpush.bf16.msra.mxu0 %v1416
        %1997 = vmatmul.bf16.gmra.mxu0 %v1546
        %v1998 = vpop.f32.mrf.mxu0
        %v1999 = vadd.f32 %v1479, %v1998
        %v2000 = vpop.f32.mrf.mxu0
        %v2001 = vadd.f32 %v1484, %v2000
        %2002 = vmatmul.bf16.gmra.mxu0 %v1549
        %v2003 = vpop.f32.mrf.mxu0
        %v2004 = vadd.f32 %v1489, %v2003
        %v2005 = vpop.f32.mrf.mxu0
        %v2006 = vadd.f32 %v1494, %v2005
        %2007 = vmatmul.bf16.gmra.mxu0 %v1552
        %v2008 = vpop.f32.mrf.mxu0
        %v2009 = vadd.f32 %v1499, %v2008
        %v2010 = vpop.f32.mrf.mxu0
        %v2011 = vadd.f32 %v1504, %v2010
        %2012 = vmatmul.bf16.gmra.mxu0 %v1555
        %v2013 = vpop.f32.mrf.mxu0
        %v2014 = vadd.f32 %v1509, %v2013
        %v2015 = vpop.f32.mrf.mxu0
        %v2016 = vadd.f32 %v1514, %v2015
        %2017 = vmatmul.bf16.gmra.mxu0 %v1558
        %v2018 = vpop.f32.mrf.mxu0
        %v2019 = vadd.f32 %v1519, %v2018
        %v2020 = vpop.f32.mrf.mxu0
        %2021 = vdwg.mxu0
        %2022 = vmatpush.bf16.msra.mxu0 0
        %2023 = vmatpush.bf16.msra.mxu0 0
        %2024 = vmatpush.bf16.msra.mxu0 0
        %2025 = vmatpush.bf16.msra.mxu0 0
        %2026 = vmatpush.bf16.msra.mxu0 %v1465
        %2027 = vmatpush.bf16.msra.mxu0 %v1449
        %2028 = vmatpush.bf16.msra.mxu0 %v1433
        %2029 = vmatpush.bf16.msra.mxu0 %v1417
        %2030 = vmatmul.bf16.gmra.mxu0 %v1546
        %v2031 = vpop.f32.mrf.mxu0
        %v2032 = vadd.f32 %v1479, %v2031
        %v2033 = vpop.f32.mrf.mxu0
        %v2034 = vadd.f32 %v1484, %v2033
        %2035 = vmatmul.bf16.gmra.mxu0 %v1549
        %v2036 = vpop.f32.mrf.mxu0
        %v2037 = vadd.f32 %v1489, %v2036
        %v2038 = vpop.f32.mrf.mxu0
        %v2039 = vadd.f32 %v1494, %v2038
        %2040 = vmatmul.bf16.gmra.mxu0 %v1552
        %v2041 = vpop.f32.mrf.mxu0
        %v2042 = vadd.f32 %v1499, %v2041
        %v2043 = vpop.f32.mrf.mxu0
        %v2044 = vadd.f32 %v1504, %v2043
        %2045 = vmatmul.bf16.gmra.mxu0 %v1555
        %v2046 = vpop.f32.mrf.mxu0
        %v2047 = vadd.f32 %v1509, %v2046
        %v2048 = vpop.f32.mrf.mxu0
        %v2049 = vadd.f32 %v1514, %v2048
        %2050 = vmatmul.bf16.gmra.mxu0 %v1558
        %v2051 = vpop.f32.mrf.mxu0
        %v2052 = vadd.f32 %v1519, %v2051
        %v2053 = vpop.f32.mrf.mxu0
        %2054 = vdwg.mxu0
        %2055 = vmatpush.bf16.msra.mxu0 0
        %2056 = vmatpush.bf16.msra.mxu0 0
        %2057 = vmatpush.bf16.msra.mxu0 0
        %2058 = vmatpush.bf16.msra.mxu0 0
        %2059 = vmatpush.bf16.msra.mxu0 %v1466
        %2060 = vmatpush.bf16.msra.mxu0 %v1450
        %2061 = vmatpush.bf16.msra.mxu0 %v1434
        %2062 = vmatpush.bf16.msra.mxu0 %v1418
        %2063 = vmatmul.bf16.gmra.mxu0 %v1546
        %v2064 = vpop.f32.mrf.mxu0
        %v2065 = vadd.f32 %v1479, %v2064
        %v2066 = vpop.f32.mrf.mxu0
        %v2067 = vadd.f32 %v1484, %v2066
        %2068 = vmatmul.bf16.gmra.mxu0 %v1549
        %v2069 = vpop.f32.mrf.mxu0
        %v2070 = vadd.f32 %v1489, %v2069
        %v2071 = vpop.f32.mrf.mxu0
        %v2072 = vadd.f32 %v1494, %v2071
        %2073 = vmatmul.bf16.gmra.mxu0 %v1552
        %v2074 = vpop.f32.mrf.mxu0
        %v2075 = vadd.f32 %v1499, %v2074
        %v2076 = vpop.f32.mrf.mxu0
        %v2077 = vadd.f32 %v1504, %v2076
        %2078 = vmatmul.bf16.gmra.mxu0 %v1555
        %v2079 = vpop.f32.mrf.mxu0
        %v2080 = vadd.f32 %v1509, %v2079
        %v2081 = vpop.f32.mrf.mxu0
        %v2082 = vadd.f32 %v1514, %v2081
        %2083 = vmatmul.bf16.gmra.mxu0 %v1558
        %v2084 = vpop.f32.mrf.mxu0
        %v2085 = vadd.f32 %v1519, %v2084
        %v2086 = vpop.f32.mrf.mxu0
        %2087 = vdwg.mxu0
        %v2088 = vadd.f32 %v1570, %v512
        %v2089 = vadd.f32 %v1603, %v561
        %v2090 = vadd.f32 %v1636, %v610
        %v2091 = vadd.f32 %v1669, %v659
        %v2092 = vadd.f32 %v1702, %v708
        %v2093 = vadd.f32 %v1735, %v757
        %v2094 = vadd.f32 %v1768, %v806
        %v2095 = vadd.f32 %v1801, %v855
        %v2096 = vadd.f32 %v1834, %v904
        %v2097 = vadd.f32 %v1867, %v953
        %v2098 = vadd.f32 %v1900, %v1002
        %v2099 = vadd.f32 %v1933, %v1051
        %v2100 = vadd.f32 %v1966, %v1100
        %v2101 = vadd.f32 %v1999, %v1149
        %v2102 = vadd.f32 %v2032, %v1198
        %v2103 = vadd.f32 %v2065, %v1247
        %v2104 = vadd.f32 %v1572, %v514
        %v2105 = vadd.f32 %v1605, %v563
        %v2106 = vadd.f32 %v1638, %v612
        %v2107 = vadd.f32 %v1671, %v661
        %v2108 = vadd.f32 %v1704, %v710
        %v2109 = vadd.f32 %v1737, %v759
        %v2110 = vadd.f32 %v1770, %v808
        %v2111 = vadd.f32 %v1803, %v857
        %v2112 = vadd.f32 %v1836, %v906
        %v2113 = vadd.f32 %v1869, %v955
        %v2114 = vadd.f32 %v1902, %v1004
        %v2115 = vadd.f32 %v1935, %v1053
        %v2116 = vadd.f32 %v1968, %v1102
        %v2117 = vadd.f32 %v2001, %v1151
        %v2118 = vadd.f32 %v2034, %v1200
        %v2119 = vadd.f32 %v2067, %v1249
        %v2120 = vadd.f32 %v1575, %v517
        %v2121 = vadd.f32 %v1608, %v566
        %v2122 = vadd.f32 %v1641, %v615
        %v2123 = vadd.f32 %v1674, %v664
        %v2124 = vadd.f32 %v1707, %v713
        %v2125 = vadd.f32 %v1740, %v762
        %v2126 = vadd.f32 %v1773, %v811
        %v2127 = vadd.f32 %v1806, %v860
        %v2128 = vadd.f32 %v1839, %v909
        %v2129 = vadd.f32 %v1872, %v958
        %v2130 = vadd.f32 %v1905, %v1007
        %v2131 = vadd.f32 %v1938, %v1056
        %v2132 = vadd.f32 %v1971, %v1105
        %v2133 = vadd.f32 %v2004, %v1154
        %v2134 = vadd.f32 %v2037, %v1203
        %v2135 = vadd.f32 %v2070, %v1252
        %v2136 = vadd.f32 %v1577, %v519
        %v2137 = vadd.f32 %v1610, %v568
        %v2138 = vadd.f32 %v1643, %v617
        %v2139 = vadd.f32 %v1676, %v666
        %v2140 = vadd.f32 %v1709, %v715
        %v2141 = vadd.f32 %v1742, %v764
        %v2142 = vadd.f32 %v1775, %v813
        %v2143 = vadd.f32 %v1808, %v862
        %v2144 = vadd.f32 %v1841, %v911
        %v2145 = vadd.f32 %v1874, %v960
        %v2146 = vadd.f32 %v1907, %v1009
        %v2147 = vadd.f32 %v1940, %v1058
        %v2148 = vadd.f32 %v1973, %v1107
        %v2149 = vadd.f32 %v2006, %v1156
        %v2150 = vadd.f32 %v2039, %v1205
        %v2151 = vadd.f32 %v2072, %v1254
        %v2152 = vadd.f32 %v1580, %v522
        %v2153 = vadd.f32 %v1613, %v571
        %v2154 = vadd.f32 %v1646, %v620
        %v2155 = vadd.f32 %v1679, %v669
        %v2156 = vadd.f32 %v1712, %v718
        %v2157 = vadd.f32 %v1745, %v767
        %v2158 = vadd.f32 %v1778, %v816
        %v2159 = vadd.f32 %v1811, %v865
        %v2160 = vadd.f32 %v1844, %v914
        %v2161 = vadd.f32 %v1877, %v963
        %v2162 = vadd.f32 %v1910, %v1012
        %v2163 = vadd.f32 %v1943, %v1061
        %v2164 = vadd.f32 %v1976, %v1110
        %v2165 = vadd.f32 %v2009, %v1159
        %v2166 = vadd.f32 %v2042, %v1208
        %v2167 = vadd.f32 %v2075, %v1257
        %v2168 = vadd.f32 %v1582, %v524
        %v2169 = vadd.f32 %v1615, %v573
        %v2170 = vadd.f32 %v1648, %v622
        %v2171 = vadd.f32 %v1681, %v671
        %v2172 = vadd.f32 %v1714, %v720
        %v2173 = vadd.f32 %v1747, %v769
        %v2174 = vadd.f32 %v1780, %v818
        %v2175 = vadd.f32 %v1813, %v867
        %v2176 = vadd.f32 %v1846, %v916
        %v2177 = vadd.f32 %v1879, %v965
        %v2178 = vadd.f32 %v1912, %v1014
        %v2179 = vadd.f32 %v1945, %v1063
        %v2180 = vadd.f32 %v1978, %v1112
        %v2181 = vadd.f32 %v2011, %v1161
        %v2182 = vadd.f32 %v2044, %v1210
        %v2183 = vadd.f32 %v2077, %v1259
        %v2184 = vadd.f32 %v1585, %v527
        %v2185 = vadd.f32 %v1618, %v576
        %v2186 = vadd.f32 %v1651, %v625
        %v2187 = vadd.f32 %v1684, %v674
        %v2188 = vadd.f32 %v1717, %v723
        %v2189 = vadd.f32 %v1750, %v772
        %v2190 = vadd.f32 %v1783, %v821
        %v2191 = vadd.f32 %v1816, %v870
        %v2192 = vadd.f32 %v1849, %v919
        %v2193 = vadd.f32 %v1882, %v968
        %v2194 = vadd.f32 %v1915, %v1017
        %v2195 = vadd.f32 %v1948, %v1066
        %v2196 = vadd.f32 %v1981, %v1115
        %v2197 = vadd.f32 %v2014, %v1164
        %v2198 = vadd.f32 %v2047, %v1213
        %v2199 = vadd.f32 %v2080, %v1262
        %v2200 = vadd.f32 %v1587, %v529
        %v2201 = vadd.f32 %v1620, %v578
        %v2202 = vadd.f32 %v1653, %v627
        %v2203 = vadd.f32 %v1686, %v676
        %v2204 = vadd.f32 %v1719, %v725
        %v2205 = vadd.f32 %v1752, %v774
        %v2206 = vadd.f32 %v1785, %v823
        %v2207 = vadd.f32 %v1818, %v872
        %v2208 = vadd.f32 %v1851, %v921
        %v2209 = vadd.f32 %v1884, %v970
        %v2210 = vadd.f32 %v1917, %v1019
        %v2211 = vadd.f32 %v1950, %v1068
        %v2212 = vadd.f32 %v1983, %v1117
        %v2213 = vadd.f32 %v2016, %v1166
        %v2214 = vadd.f32 %v2049, %v1215
        %v2215 = vadd.f32 %v2082, %v1264
        %v2216 = vmax.f32 %v2088, 0.0
        %v2217 = vmax.f32 %v2089, 0.0
        %v2218 = vmax.f32 %v2090, 0.0
        %v2219 = vmax.f32 %v2091, 0.0
        %v2220 = vmax.f32 %v2092, 0.0
        %v2221 = vmax.f32 %v2093, 0.0
        %v2222 = vmax.f32 %v2094, 0.0
        %v2223 = vmax.f32 %v2095, 0.0
        %v2224 = vmax.f32 %v2096, 0.0
        %v2225 = vmax.f32 %v2097, 0.0
        %v2226 = vmax.f32 %v2098, 0.0
        %v2227 = vmax.f32 %v2099, 0.0
        %v2228 = vmax.f32 %v2100, 0.0
        %v2229 = vmax.f32 %v2101, 0.0
        %v2230 = vmax.f32 %v2102, 0.0
        %v2231 = vmax.f32 %v2103, 0.0
        %v2232 = vmax.f32 %v2104, 0.0
        %v2233 = vmax.f32 %v2105, 0.0
        %v2234 = vmax.f32 %v2106, 0.0
        %v2235 = vmax.f32 %v2107, 0.0
        %v2236 = vmax.f32 %v2108, 0.0
        %v2237 = vmax.f32 %v2109, 0.0
        %v2238 = vmax.f32 %v2110, 0.0
        %v2239 = vmax.f32 %v2111, 0.0
        %v2240 = vmax.f32 %v2112, 0.0
        %v2241 = vmax.f32 %v2113, 0.0
        %v2242 = vmax.f32 %v2114, 0.0
        %v2243 = vmax.f32 %v2115, 0.0
        %v2244 = vmax.f32 %v2116, 0.0
        %v2245 = vmax.f32 %v2117, 0.0
        %v2246 = vmax.f32 %v2118, 0.0
        %v2247 = vmax.f32 %v2119, 0.0
        %v2248 = vmax.f32 %v2120, 0.0
        %v2249 = vmax.f32 %v2121, 0.0
        %v2250 = vmax.f32 %v2122, 0.0
        %v2251 = vmax.f32 %v2123, 0.0
        %v2252 = vmax.f32 %v2124, 0.0
        %v2253 = vmax.f32 %v2125, 0.0
        %v2254 = vmax.f32 %v2126, 0.0
        %v2255 = vmax.f32 %v2127, 0.0
        %v2256 = vmax.f32 %v2128, 0.0
        %v2257 = vmax.f32 %v2129, 0.0
        %v2258 = vmax.f32 %v2130, 0.0
        %v2259 = vmax.f32 %v2131, 0.0
        %v2260 = vmax.f32 %v2132, 0.0
        %v2261 = vmax.f32 %v2133, 0.0
        %v2262 = vmax.f32 %v2134, 0.0
        %v2263 = vmax.f32 %v2135, 0.0
        %v2264 = vmax.f32 %v2136, 0.0
        %v2265 = vmax.f32 %v2137, 0.0
        %v2266 = vmax.f32 %v2138, 0.0
        %v2267 = vmax.f32 %v2139, 0.0
        %v2268 = vmax.f32 %v2140, 0.0
        %v2269 = vmax.f32 %v2141, 0.0
        %v2270 = vmax.f32 %v2142, 0.0
        %v2271 = vmax.f32 %v2143, 0.0
        %v2272 = vmax.f32 %v2144, 0.0
        %v2273 = vmax.f32 %v2145, 0.0
        %v2274 = vmax.f32 %v2146, 0.0
        %v2275 = vmax.f32 %v2147, 0.0
        %v2276 = vmax.f32 %v2148, 0.0
        %v2277 = vmax.f32 %v2149, 0.0
        %v2278 = vmax.f32 %v2150, 0.0
        %v2279 = vmax.f32 %v2151, 0.0
        %v2280 = vmax.f32 %v2152, 0.0
        %v2281 = vmax.f32 %v2153, 0.0
        %v2282 = vmax.f32 %v2154, 0.0
        %v2283 = vmax.f32 %v2155, 0.0
        %v2284 = vmax.f32 %v2156, 0.0
        %v2285 = vmax.f32 %v2157, 0.0
        %v2286 = vmax.f32 %v2158, 0.0
        %v2287 = vmax.f32 %v2159, 0.0
        %v2288 = vmax.f32 %v2160, 0.0
        %v2289 = vmax.f32 %v2161, 0.0
        %v2290 = vmax.f32 %v2162, 0.0
        %v2291 = vmax.f32 %v2163, 0.0
        %v2292 = vmax.f32 %v2164, 0.0
        %v2293 = vmax.f32 %v2165, 0.0
        %v2294 = vmax.f32 %v2166, 0.0
        %v2295 = vmax.f32 %v2167, 0.0
        %v2296 = vmax.f32 %v2168, 0.0
        %v2297 = vmax.f32 %v2169, 0.0
        %v2298 = vmax.f32 %v2170, 0.0
        %v2299 = vmax.f32 %v2171, 0.0
        %v2300 = vmax.f32 %v2172, 0.0
        %v2301 = vmax.f32 %v2173, 0.0
        %v2302 = vmax.f32 %v2174, 0.0
        %v2303 = vmax.f32 %v2175, 0.0
        %v2304 = vmax.f32 %v2176, 0.0
        %v2305 = vmax.f32 %v2177, 0.0
        %v2306 = vmax.f32 %v2178, 0.0
        %v2307 = vmax.f32 %v2179, 0.0
        %v2308 = vmax.f32 %v2180, 0.0
        %v2309 = vmax.f32 %v2181, 0.0
        %v2310 = vmax.f32 %v2182, 0.0
        %v2311 = vmax.f32 %v2183, 0.0
        %v2312 = vmax.f32 %v2184, 0.0
        %v2313 = vmax.f32 %v2185, 0.0
        %v2314 = vmax.f32 %v2186, 0.0
        %v2315 = vmax.f32 %v2187, 0.0
        %v2316 = vmax.f32 %v2188, 0.0
        %v2317 = vmax.f32 %v2189, 0.0
        %v2318 = vmax.f32 %v2190, 0.0
        %v2319 = vmax.f32 %v2191, 0.0
        %v2320 = vmax.f32 %v2192, 0.0
        %v2321 = vmax.f32 %v2193, 0.0
        %v2322 = vmax.f32 %v2194, 0.0
        %v2323 = vmax.f32 %v2195, 0.0
        %v2324 = vmax.f32 %v2196, 0.0
        %v2325 = vmax.f32 %v2197, 0.0
        %v2326 = vmax.f32 %v2198, 0.0
        %v2327 = vmax.f32 %v2199, 0.0
        %v2328 = vmax.f32 %v2200, 0.0
        %v2329 = vmax.f32 %v2201, 0.0
        %v2330 = vmax.f32 %v2202, 0.0
        %v2331 = vmax.f32 %v2203, 0.0
        %v2332 = vmax.f32 %v2204, 0.0
        %v2333 = vmax.f32 %v2205, 0.0
        %v2334 = vmax.f32 %v2206, 0.0
        %v2335 = vmax.f32 %v2207, 0.0
        %v2336 = vmax.f32 %v2208, 0.0
        %v2337 = vmax.f32 %v2209, 0.0
        %v2338 = vmax.f32 %v2210, 0.0
        %v2339 = vmax.f32 %v2211, 0.0
        %v2340 = vmax.f32 %v2212, 0.0
        %v2341 = vmax.f32 %v2213, 0.0
        %v2342 = vmax.f32 %v2214, 0.0
        %v2343 = vmax.f32 %v2215, 0.0
        %v2344 = vpack.c.bf16 %v2232, %v2216
        %v2345 = vpack.c.bf16 %v2233, %v2217
        %v2346 = vpack.c.bf16 %v2234, %v2218
        %v2347 = vpack.c.bf16 %v2235, %v2219
        %v2348 = vpack.c.bf16 %v2236, %v2220
        %v2349 = vpack.c.bf16 %v2237, %v2221
        %v2350 = vpack.c.bf16 %v2238, %v2222
        %v2351 = vpack.c.bf16 %v2239, %v2223
        %v2352 = vpack.c.bf16 %v2240, %v2224
        %v2353 = vpack.c.bf16 %v2241, %v2225
        %v2354 = vpack.c.bf16 %v2242, %v2226
        %v2355 = vpack.c.bf16 %v2243, %v2227
        %v2356 = vpack.c.bf16 %v2244, %v2228
        %v2357 = vpack.c.bf16 %v2245, %v2229
        %v2358 = vpack.c.bf16 %v2246, %v2230
        %v2359 = vpack.c.bf16 %v2247, %v2231
        %v2360 = vpack.c.bf16 %v2264, %v2248
        %v2361 = vpack.c.bf16 %v2265, %v2249
        %v2362 = vpack.c.bf16 %v2266, %v2250
        %v2363 = vpack.c.bf16 %v2267, %v2251
        %v2364 = vpack.c.bf16 %v2268, %v2252
        %v2365 = vpack.c.bf16 %v2269, %v2253
        %v2366 = vpack.c.bf16 %v2270, %v2254
        %v2367 = vpack.c.bf16 %v2271, %v2255
        %v2368 = vpack.c.bf16 %v2272, %v2256
        %v2369 = vpack.c.bf16 %v2273, %v2257
        %v2370 = vpack.c.bf16 %v2274, %v2258
        %v2371 = vpack.c.bf16 %v2275, %v2259
        %v2372 = vpack.c.bf16 %v2276, %v2260
        %v2373 = vpack.c.bf16 %v2277, %v2261
        %v2374 = vpack.c.bf16 %v2278, %v2262
        %v2375 = vpack.c.bf16 %v2279, %v2263
        %v2376 = vpack.c.bf16 %v2296, %v2280
        %v2377 = vpack.c.bf16 %v2297, %v2281
        %v2378 = vpack.c.bf16 %v2298, %v2282
        %v2379 = vpack.c.bf16 %v2299, %v2283
        %v2380 = vpack.c.bf16 %v2300, %v2284
        %v2381 = vpack.c.bf16 %v2301, %v2285
        %v2382 = vpack.c.bf16 %v2302, %v2286
        %v2383 = vpack.c.bf16 %v2303, %v2287
        %v2384 = vpack.c.bf16 %v2304, %v2288
        %v2385 = vpack.c.bf16 %v2305, %v2289
        %v2386 = vpack.c.bf16 %v2306, %v2290
        %v2387 = vpack.c.bf16 %v2307, %v2291
        %v2388 = vpack.c.bf16 %v2308, %v2292
        %v2389 = vpack.c.bf16 %v2309, %v2293
        %v2390 = vpack.c.bf16 %v2310, %v2294
        %v2391 = vpack.c.bf16 %v2311, %v2295
        %v2392 = vpack.c.bf16 %v2328, %v2312
        %v2393 = vpack.c.bf16 %v2329, %v2313
        %v2394 = vpack.c.bf16 %v2330, %v2314
        %v2395 = vpack.c.bf16 %v2331, %v2315
        %v2396 = vpack.c.bf16 %v2332, %v2316
        %v2397 = vpack.c.bf16 %v2333, %v2317
        %v2398 = vpack.c.bf16 %v2334, %v2318
        %v2399 = vpack.c.bf16 %v2335, %v2319
        %v2400 = vpack.c.bf16 %v2336, %v2320
        %v2401 = vpack.c.bf16 %v2337, %v2321
        %v2402 = vpack.c.bf16 %v2338, %v2322
        %v2403 = vpack.c.bf16 %v2339, %v2323
        %v2404 = vpack.c.bf16 %v2340, %v2324
        %v2405 = vpack.c.bf16 %v2341, %v2325
        %v2406 = vpack.c.bf16 %v2342, %v2326
        %v2407 = vpack.c.bf16 %v2343, %v2327
        %v2408 = vmax.f32 %v1590, 0.0
        %v2409 = vmax.f32 %v1623, 0.0
        %v2410 = vmax.f32 %v1656, 0.0
        %v2411 = vmax.f32 %v1689, 0.0
        %v2412 = vmax.f32 %v1722, 0.0
        %v2413 = vmax.f32 %v1755, 0.0
        %v2414 = vmax.f32 %v1788, 0.0
        %v2415 = vmax.f32 %v1821, 0.0
        %v2416 = vmax.f32 %v1854, 0.0
        %v2417 = vmax.f32 %v1887, 0.0
        %v2418 = vmax.f32 %v1920, 0.0
        %v2419 = vmax.f32 %v1953, 0.0
        %v2420 = vmax.f32 %v1986, 0.0
        %v2421 = vmax.f32 %v2019, 0.0
        %v2422 = vmax.f32 %v2052, 0.0
        %v2423 = vmax.f32 %v2085, 0.0
        %v2424 = vand.u32 2147483647, %v1590
        %v2425 = vand.u32 2147483647, %v1623
        %v2426 = vand.u32 2147483647, %v1656
        %v2427 = vand.u32 2147483647, %v1689
        %v2428 = vand.u32 2147483647, %v1722
        %v2429 = vand.u32 2147483647, %v1755
        %v2430 = vand.u32 2147483647, %v1788
        %v2431 = vand.u32 2147483647, %v1821
        %v2432 = vand.u32 2147483647, %v1854
        %v2433 = vand.u32 2147483647, %v1887
        %v2434 = vand.u32 2147483647, %v1920
        %v2435 = vand.u32 2147483647, %v1953
        %v2436 = vand.u32 2147483647, %v1986
        %v2437 = vand.u32 2147483647, %v2019
        %v2438 = vand.u32 2147483647, %v2052
        %v2439 = vand.u32 2147483647, %v2085
        %v2440 = vsub.f32 0.0, %v2424
        %v2441 = vsub.f32 0.0, %v2425
        %v2442 = vsub.f32 0.0, %v2426
        %v2443 = vsub.f32 0.0, %v2427
        %v2444 = vsub.f32 0.0, %v2428
        %v2445 = vsub.f32 0.0, %v2429
        %v2446 = vsub.f32 0.0, %v2430
        %v2447 = vsub.f32 0.0, %v2431
        %v2448 = vsub.f32 0.0, %v2432
        %v2449 = vsub.f32 0.0, %v2433
        %v2450 = vsub.f32 0.0, %v2434
        %v2451 = vsub.f32 0.0, %v2435
        %v2452 = vsub.f32 0.0, %v2436
        %v2453 = vsub.f32 0.0, %v2437
        %v2454 = vsub.f32 0.0, %v2438
        %v2455 = vsub.f32 0.0, %v2439
        %v2456 = vmul.f32 %v2440, 1.442695
        %v2457 = vpow.pop %v2456
        %v2458 = vmul.f32 %v2441, 1.442695
        %v2459 = vpow.pop %v2458
        %v2460 = vmul.f32 %v2442, 1.442695
        %v2461 = vpow.pop %v2460
        %v2462 = vmul.f32 %v2443, 1.442695
        %v2463 = vpow.pop %v2462
        %v2464 = vmul.f32 %v2444, 1.442695
        %v2465 = vpow.pop %v2464
        %v2466 = vmul.f32 %v2445, 1.442695
        %v2467 = vpow.pop %v2466
        %v2468 = vmul.f32 %v2446, 1.442695
        %v2469 = vpow.pop %v2468
        %v2470 = vmul.f32 %v2447, 1.442695
        %v2471 = vpow.pop %v2470
        %v2472 = vmul.f32 %v2448, 1.442695
        %v2473 = vpow.pop %v2472
        %v2474 = vmul.f32 %v2449, 1.442695
        %v2475 = vpow.pop %v2474
        %v2476 = vmul.f32 %v2450, 1.442695
        %v2477 = vpow.pop %v2476
        %v2478 = vmul.f32 %v2451, 1.442695
        %v2479 = vpow.pop %v2478
        %v2480 = vmul.f32 %v2452, 1.442695
        %v2481 = vpow.pop %v2480
        %v2482 = vmul.f32 %v2453, 1.442695
        %v2483 = vpow.pop %v2482
        %v2484 = vmul.f32 %v2454, 1.442695
        %v2485 = vpow.pop %v2484
        %v2486 = vmul.f32 %v2455, 1.442695
        %v2487 = vpow.pop %v2486
        %v2488 = vadd.f32 %v2457, 1.0
        %v2489 = vlog2.pop %v2488
        %v2490 = vmul.f32 %v2489, 0.6931472
        %v2491 = vmul.f32 -0.5, %v2457
        %v2492 = vadd.f32 %v2491, 1.0
        %v2493 = vmul.f32 %v2492, %v2457
        %v2494 = vand.u32 2147483647, %v2457
        %vm2495 = vcmp.lt.f32.partialorder %v2494, 0.0004427343
        %v2496 = vsel %vm2495, %v2493, %v2490
        %v2497 = vadd.f32 %v2459, 1.0
        %v2498 = vlog2.pop %v2497
        %v2499 = vmul.f32 %v2498, 0.6931472
        %v2500 = vmul.f32 -0.5, %v2459
        %v2501 = vadd.f32 %v2500, 1.0
        %v2502 = vmul.f32 %v2501, %v2459
        %v2503 = vand.u32 2147483647, %v2459
        %vm2504 = vcmp.lt.f32.partialorder %v2503, 0.0004427343
        %v2505 = vsel %vm2504, %v2502, %v2499
        %v2506 = vadd.f32 %v2461, 1.0
        %v2507 = vlog2.pop %v2506
        %v2508 = vmul.f32 %v2507, 0.6931472
        %v2509 = vmul.f32 -0.5, %v2461
        %v2510 = vadd.f32 %v2509, 1.0
        %v2511 = vmul.f32 %v2510, %v2461
        %v2512 = vand.u32 2147483647, %v2461
        %vm2513 = vcmp.lt.f32.partialorder %v2512, 0.0004427343
        %v2514 = vsel %vm2513, %v2511, %v2508
        %v2515 = vadd.f32 %v2463, 1.0
        %v2516 = vlog2.pop %v2515
        %v2517 = vmul.f32 %v2516, 0.6931472
        %v2518 = vmul.f32 -0.5, %v2463
        %v2519 = vadd.f32 %v2518, 1.0
        %v2520 = vmul.f32 %v2519, %v2463
        %v2521 = vand.u32 2147483647, %v2463
        %vm2522 = vcmp.lt.f32.partialorder %v2521, 0.0004427343
        %v2523 = vsel %vm2522, %v2520, %v2517
        %v2524 = vadd.f32 %v2465, 1.0
        %v2525 = vlog2.pop %v2524
        %v2526 = vmul.f32 %v2525, 0.6931472
        %v2527 = vmul.f32 -0.5, %v2465
        %v2528 = vadd.f32 %v2527, 1.0
        %v2529 = vmul.f32 %v2528, %v2465
        %v2530 = vand.u32 2147483647, %v2465
        %vm2531 = vcmp.lt.f32.partialorder %v2530, 0.0004427343
        %v2532 = vsel %vm2531, %v2529, %v2526
        %v2533 = vadd.f32 %v2467, 1.0
        %v2534 = vlog2.pop %v2533
        %v2535 = vmul.f32 %v2534, 0.6931472
        %v2536 = vmul.f32 -0.5, %v2467
        %v2537 = vadd.f32 %v2536, 1.0
        %v2538 = vmul.f32 %v2537, %v2467
        %v2539 = vand.u32 2147483647, %v2467
        %vm2540 = vcmp.lt.f32.partialorder %v2539, 0.0004427343
        %v2541 = vsel %vm2540, %v2538, %v2535
        %v2542 = vadd.f32 %v2469, 1.0
        %v2543 = vlog2.pop %v2542
        %v2544 = vmul.f32 %v2543, 0.6931472
        %v2545 = vmul.f32 -0.5, %v2469
        %v2546 = vadd.f32 %v2545, 1.0
        %v2547 = vmul.f32 %v2546, %v2469
        %v2548 = vand.u32 2147483647, %v2469
        %vm2549 = vcmp.lt.f32.partialorder %v2548, 0.0004427343
        %v2550 = vsel %vm2549, %v2547, %v2544
        %v2551 = vadd.f32 %v2471, 1.0
        %v2552 = vlog2.pop %v2551
        %v2553 = vmul.f32 %v2552, 0.6931472
        %v2554 = vmul.f32 -0.5, %v2471
        %v2555 = vadd.f32 %v2554, 1.0
        %v2556 = vmul.f32 %v2555, %v2471
        %v2557 = vand.u32 2147483647, %v2471
        %vm2558 = vcmp.lt.f32.partialorder %v2557, 0.0004427343
        %v2559 = vsel %vm2558, %v2556, %v2553
        %v2560 = vadd.f32 %v2473, 1.0
        %v2561 = vlog2.pop %v2560
        %v2562 = vmul.f32 %v2561, 0.6931472
        %v2563 = vmul.f32 -0.5, %v2473
        %v2564 = vadd.f32 %v2563, 1.0
        %v2565 = vmul.f32 %v2564, %v2473
        %v2566 = vand.u32 2147483647, %v2473
        %vm2567 = vcmp.lt.f32.partialorder %v2566, 0.0004427343
        %v2568 = vsel %vm2567, %v2565, %v2562
        %v2569 = vadd.f32 %v2475, 1.0
        %v2570 = vlog2.pop %v2569
        %v2571 = vmul.f32 %v2570, 0.6931472
        %v2572 = vmul.f32 -0.5, %v2475
        %v2573 = vadd.f32 %v2572, 1.0
        %v2574 = vmul.f32 %v2573, %v2475
        %v2575 = vand.u32 2147483647, %v2475
        %vm2576 = vcmp.lt.f32.partialorder %v2575, 0.0004427343
        %v2577 = vsel %vm2576, %v2574, %v2571
        %v2578 = vadd.f32 %v2477, 1.0
        %v2579 = vlog2.pop %v2578
        %v2580 = vmul.f32 %v2579, 0.6931472
        %v2581 = vmul.f32 -0.5, %v2477
        %v2582 = vadd.f32 %v2581, 1.0
        %v2583 = vmul.f32 %v2582, %v2477
        %v2584 = vand.u32 2147483647, %v2477
        %vm2585 = vcmp.lt.f32.partialorder %v2584, 0.0004427343
        %v2586 = vsel %vm2585, %v2583, %v2580
        %v2587 = vadd.f32 %v2479, 1.0
        %v2588 = vlog2.pop %v2587
        %v2589 = vmul.f32 %v2588, 0.6931472
        %v2590 = vmul.f32 -0.5, %v2479
        %v2591 = vadd.f32 %v2590, 1.0
        %v2592 = vmul.f32 %v2591, %v2479
        %v2593 = vand.u32 2147483647, %v2479
        %vm2594 = vcmp.lt.f32.partialorder %v2593, 0.0004427343
        %v2595 = vsel %vm2594, %v2592, %v2589
        %v2596 = vadd.f32 %v2481, 1.0
        %v2597 = vlog2.pop %v2596
        %v2598 = vmul.f32 %v2597, 0.6931472
        %v2599 = vmul.f32 -0.5, %v2481
        %v2600 = vadd.f32 %v2599, 1.0
        %v2601 = vmul.f32 %v2600, %v2481
        %v2602 = vand.u32 2147483647, %v2481
        %vm2603 = vcmp.lt.f32.partialorder %v2602, 0.0004427343
        %v2604 = vsel %vm2603, %v2601, %v2598
        %v2605 = vadd.f32 %v2483, 1.0
        %v2606 = vlog2.pop %v2605
        %v2607 = vmul.f32 %v2606, 0.6931472
        %v2608 = vmul.f32 -0.5, %v2483
        %v2609 = vadd.f32 %v2608, 1.0
        %v2610 = vmul.f32 %v2609, %v2483
        %v2611 = vand.u32 2147483647, %v2483
        %vm2612 = vcmp.lt.f32.partialorder %v2611, 0.0004427343
        %v2613 = vsel %vm2612, %v2610, %v2607
        %v2614 = vadd.f32 %v2485, 1.0
        %v2615 = vlog2.pop %v2614
        %v2616 = vmul.f32 %v2615, 0.6931472
        %v2617 = vmul.f32 -0.5, %v2485
        %v2618 = vadd.f32 %v2617, 1.0
        %v2619 = vmul.f32 %v2618, %v2485
        %v2620 = vand.u32 2147483647, %v2485
        %vm2621 = vcmp.lt.f32.partialorder %v2620, 0.0004427343
        %v2622 = vsel %vm2621, %v2619, %v2616
        %v2623 = vadd.f32 %v2487, 1.0
        %v2624 = vlog2.pop %v2623
        %v2625 = vmul.f32 %v2624, 0.6931472
        %v2626 = vmul.f32 -0.5, %v2487
        %v2627 = vadd.f32 %v2626, 1.0
        %v2628 = vmul.f32 %v2627, %v2487
        %v2629 = vand.u32 2147483647, %v2487
        %vm2630 = vcmp.lt.f32.partialorder %v2629, 0.0004427343
        %v2631 = vsel %vm2630, %v2628, %v2625
        %v2632 = vadd.f32 %v2408, %v2496
        %v2633 = vadd.f32 %v2409, %v2505
        %v2634 = vadd.f32 %v2410, %v2514
        %v2635 = vadd.f32 %v2411, %v2523
        %v2636 = vadd.f32 %v2412, %v2532
        %v2637 = vadd.f32 %v2413, %v2541
        %v2638 = vadd.f32 %v2414, %v2550
        %v2639 = vadd.f32 %v2415, %v2559
        %v2640 = vadd.f32 %v2416, %v2568
        %v2641 = vadd.f32 %v2417, %v2577
        %v2642 = vadd.f32 %v2418, %v2586
        %v2643 = vadd.f32 %v2419, %v2595
        %v2644 = vadd.f32 %v2420, %v2604
        %v2645 = vadd.f32 %v2421, %v2613
        %v2646 = vadd.f32 %v2422, %v2622
        %v2647 = vadd.f32 %v2423, %v2631
        %v2648 = vadd.f32 %v2632, 0.0001
        %v2649 = vadd.f32 %v2633, 0.0001
        %v2650 = vadd.f32 %v2634, 0.0001
        %v2651 = vadd.f32 %v2635, 0.0001
        %v2652 = vadd.f32 %v2636, 0.0001
        %v2653 = vadd.f32 %v2637, 0.0001
        %v2654 = vadd.f32 %v2638, 0.0001
        %v2655 = vadd.f32 %v2639, 0.0001
        %v2656 = vadd.f32 %v2640, 0.0001
        %v2657 = vadd.f32 %v2641, 0.0001
        %v2658 = vadd.f32 %v2642, 0.0001
        %v2659 = vadd.f32 %v2643, 0.0001
        %v2660 = vadd.f32 %v2644, 0.0001
        %v2661 = vadd.f32 %v2645, 0.0001
        %v2662 = vadd.f32 %v2646, 0.0001
        %v2663 = vadd.f32 %v2647, 0.0001
        %v2664 = vld [vmem:[%s4] sm:$0xf]
        %v2665 = vld [vmem:[%s4 + $0x4] sm:$0xf]
        %v2666 = vld [vmem:[%s4 + $0x8] sm:$0xf]
        %v2667 = vld [vmem:[%s4 + $0xc] sm:$0xf]
        %v2668 = vld [vmem:[%s4 + $0x10] sm:$0xf]
        %v2669 = vld [vmem:[%s4 + $0x14] sm:$0xf]
        %v2670 = vld [vmem:[%s4 + $0x18] sm:$0xf]
        %v2671 = vld [vmem:[%s4 + $0x1c] sm:$0xf]
        %v2680 = vunpack.c.l.b16 %v2664
        %v2681 = vunpack.c.l.b16 %v2665
        %v2682 = vunpack.c.l.b16 %v2666
        %v2683 = vunpack.c.l.b16 %v2667
        %v2684 = vunpack.c.l.b16 %v2668
        %v2685 = vunpack.c.l.b16 %v2669
        %v2686 = vunpack.c.l.b16 %v2670
        %v2687 = vunpack.c.l.b16 %v2671
        %v2688 = vpack.c.b16 %v2681, %v2680
        %v2689 = vpack.c.b16 %v2683, %v2682
        %v2690 = vpack.c.b16 %v2685, %v2684
        %v2691 = vpack.c.b16 %v2687, %v2686
        %v2693 = vsel %vm1544, %v2688, 0
        %v2696 = vsel %vm1544, %v2689, 0
        %v2699 = vsel %vm1544, %v2690, 0
        %v2702 = vsel %vm1544, %v2691, 0
        %2704 = vmatpush.bf16.msra.mxu0 0
        %2705 = vmatpush.bf16.msra.mxu0 0
        %2706 = vmatpush.bf16.msra.mxu0 0
        %2707 = vmatpush.bf16.msra.mxu0 0
        %2708 = vmatpush.bf16.msra.mxu0 %v2392
        %2709 = vmatpush.bf16.msra.mxu0 %v2376
        %2710 = vmatpush.bf16.msra.mxu0 %v2360
        %2711 = vmatpush.bf16.msra.mxu0 %v2344
        %2712 = vmatmul.bf16.gmra.mxu0 %v2693
        %v2713 = vpop.f32.mrf.mxu0
        %v2714 = vadd.f32 0.0, %v2713
        %v2715 = vpop.f32.mrf.mxu0
        %v2716 = vadd.f32 0.0, %v2715
        %2717 = vmatmul.bf16.gmra.mxu0 %v2696
        %v2718 = vpop.f32.mrf.mxu0
        %v2719 = vadd.f32 0.0, %v2718
        %v2720 = vpop.f32.mrf.mxu0
        %v2721 = vadd.f32 0.0, %v2720
        %2722 = vmatmul.bf16.gmra.mxu0 %v2699
        %v2723 = vpop.f32.mrf.mxu0
        %v2724 = vadd.f32 0.0, %v2723
        %v2725 = vpop.f32.mrf.mxu0
        %v2726 = vadd.f32 0.0, %v2725
        %2727 = vmatmul.bf16.gmra.mxu0 %v2702
        %v2728 = vpop.f32.mrf.mxu0
        %v2729 = vadd.f32 0.0, %v2728
        %v2730 = vpop.f32.mrf.mxu0
        %v2731 = vadd.f32 0.0, %v2730
        %2732 = vdwg.mxu0
        %2733 = vmatpush.bf16.msra.mxu0 0
        %2734 = vmatpush.bf16.msra.mxu0 0
        %2735 = vmatpush.bf16.msra.mxu0 0
        %2736 = vmatpush.bf16.msra.mxu0 0
        %2737 = vmatpush.bf16.msra.mxu0 %v2393
        %2738 = vmatpush.bf16.msra.mxu0 %v2377
        %2739 = vmatpush.bf16.msra.mxu0 %v2361
        %2740 = vmatpush.bf16.msra.mxu0 %v2345
        %2741 = vmatmul.bf16.gmra.mxu0 %v2693
        %v2742 = vpop.f32.mrf.mxu0
        %v2743 = vadd.f32 0.0, %v2742
        %v2744 = vpop.f32.mrf.mxu0
        %v2745 = vadd.f32 0.0, %v2744
        %2746 = vmatmul.bf16.gmra.mxu0 %v2696
        %v2747 = vpop.f32.mrf.mxu0
        %v2748 = vadd.f32 0.0, %v2747
        %v2749 = vpop.f32.mrf.mxu0
        %v2750 = vadd.f32 0.0, %v2749
        %2751 = vmatmul.bf16.gmra.mxu0 %v2699
        %v2752 = vpop.f32.mrf.mxu0
        %v2753 = vadd.f32 0.0, %v2752
        %v2754 = vpop.f32.mrf.mxu0
        %v2755 = vadd.f32 0.0, %v2754
        %2756 = vmatmul.bf16.gmra.mxu0 %v2702
        %v2757 = vpop.f32.mrf.mxu0
        %v2758 = vadd.f32 0.0, %v2757
        %v2759 = vpop.f32.mrf.mxu0
        %v2760 = vadd.f32 0.0, %v2759
        %2761 = vdwg.mxu0
        %2762 = vmatpush.bf16.msra.mxu0 0
        %2763 = vmatpush.bf16.msra.mxu0 0
        %2764 = vmatpush.bf16.msra.mxu0 0
        %2765 = vmatpush.bf16.msra.mxu0 0
        %2766 = vmatpush.bf16.msra.mxu0 %v2394
        %2767 = vmatpush.bf16.msra.mxu0 %v2378
        %2768 = vmatpush.bf16.msra.mxu0 %v2362
        %2769 = vmatpush.bf16.msra.mxu0 %v2346
        %2770 = vmatmul.bf16.gmra.mxu0 %v2693
        %v2771 = vpop.f32.mrf.mxu0
        %v2772 = vadd.f32 0.0, %v2771
        %v2773 = vpop.f32.mrf.mxu0
        %v2774 = vadd.f32 0.0, %v2773
        %2775 = vmatmul.bf16.gmra.mxu0 %v2696
        %v2776 = vpop.f32.mrf.mxu0
        %v2777 = vadd.f32 0.0, %v2776
        %v2778 = vpop.f32.mrf.mxu0
        %v2779 = vadd.f32 0.0, %v2778
        %2780 = vmatmul.bf16.gmra.mxu0 %v2699
        %v2781 = vpop.f32.mrf.mxu0
        %v2782 = vadd.f32 0.0, %v2781
        %v2783 = vpop.f32.mrf.mxu0
        %v2784 = vadd.f32 0.0, %v2783
        %2785 = vmatmul.bf16.gmra.mxu0 %v2702
        %v2786 = vpop.f32.mrf.mxu0
        %v2787 = vadd.f32 0.0, %v2786
        %v2788 = vpop.f32.mrf.mxu0
        %v2789 = vadd.f32 0.0, %v2788
        %2790 = vdwg.mxu0
        %2791 = vmatpush.bf16.msra.mxu0 0
        %2792 = vmatpush.bf16.msra.mxu0 0
        %2793 = vmatpush.bf16.msra.mxu0 0
        %2794 = vmatpush.bf16.msra.mxu0 0
        %2795 = vmatpush.bf16.msra.mxu0 %v2395
        %2796 = vmatpush.bf16.msra.mxu0 %v2379
        %2797 = vmatpush.bf16.msra.mxu0 %v2363
        %2798 = vmatpush.bf16.msra.mxu0 %v2347
        %2799 = vmatmul.bf16.gmra.mxu0 %v2693
        %v2800 = vpop.f32.mrf.mxu0
        %v2801 = vadd.f32 0.0, %v2800
        %v2802 = vpop.f32.mrf.mxu0
        %v2803 = vadd.f32 0.0, %v2802
        %2804 = vmatmul.bf16.gmra.mxu0 %v2696
        %v2805 = vpop.f32.mrf.mxu0
        %v2806 = vadd.f32 0.0, %v2805
        %v2807 = vpop.f32.mrf.mxu0
        %v2808 = vadd.f32 0.0, %v2807
        %2809 = vmatmul.bf16.gmra.mxu0 %v2699
        %v2810 = vpop.f32.mrf.mxu0
        %v2811 = vadd.f32 0.0, %v2810
        %v2812 = vpop.f32.mrf.mxu0
        %v2813 = vadd.f32 0.0, %v2812
        %2814 = vmatmul.bf16.gmra.mxu0 %v2702
        %v2815 = vpop.f32.mrf.mxu0
        %v2816 = vadd.f32 0.0, %v2815
        %v2817 = vpop.f32.mrf.mxu0
        %v2818 = vadd.f32 0.0, %v2817
        %2819 = vdwg.mxu0
        %2820 = vmatpush.bf16.msra.mxu0 0
        %2821 = vmatpush.bf16.msra.mxu0 0
        %2822 = vmatpush.bf16.msra.mxu0 0
        %2823 = vmatpush.bf16.msra.mxu0 0
        %2824 = vmatpush.bf16.msra.mxu0 %v2396
        %2825 = vmatpush.bf16.msra.mxu0 %v2380
        %2826 = vmatpush.bf16.msra.mxu0 %v2364
        %2827 = vmatpush.bf16.msra.mxu0 %v2348
        %2828 = vmatmul.bf16.gmra.mxu0 %v2693
        %v2829 = vpop.f32.mrf.mxu0
        %v2830 = vadd.f32 0.0, %v2829
        %v2831 = vpop.f32.mrf.mxu0
        %v2832 = vadd.f32 0.0, %v2831
        %2833 = vmatmul.bf16.gmra.mxu0 %v2696
        %v2834 = vpop.f32.mrf.mxu0
        %v2835 = vadd.f32 0.0, %v2834
        %v2836 = vpop.f32.mrf.mxu0
        %v2837 = vadd.f32 0.0, %v2836
        %2838 = vmatmul.bf16.gmra.mxu0 %v2699
        %v2839 = vpop.f32.mrf.mxu0
        %v2840 = vadd.f32 0.0, %v2839
        %v2841 = vpop.f32.mrf.mxu0
        %v2842 = vadd.f32 0.0, %v2841
        %2843 = vmatmul.bf16.gmra.mxu0 %v2702
        %v2844 = vpop.f32.mrf.mxu0
        %v2845 = vadd.f32 0.0, %v2844
        %v2846 = vpop.f32.mrf.mxu0
        %v2847 = vadd.f32 0.0, %v2846
        %2848 = vdwg.mxu0
        %2849 = vmatpush.bf16.msra.mxu0 0
        %2850 = vmatpush.bf16.msra.mxu0 0
        %2851 = vmatpush.bf16.msra.mxu0 0
        %2852 = vmatpush.bf16.msra.mxu0 0
        %2853 = vmatpush.bf16.msra.mxu0 %v2397
        %2854 = vmatpush.bf16.msra.mxu0 %v2381
        %2855 = vmatpush.bf16.msra.mxu0 %v2365
        %2856 = vmatpush.bf16.msra.mxu0 %v2349
        %2857 = vmatmul.bf16.gmra.mxu0 %v2693
        %v2858 = vpop.f32.mrf.mxu0
        %v2859 = vadd.f32 0.0, %v2858
        %v2860 = vpop.f32.mrf.mxu0
        %v2861 = vadd.f32 0.0, %v2860
        %2862 = vmatmul.bf16.gmra.mxu0 %v2696
        %v2863 = vpop.f32.mrf.mxu0
        %v2864 = vadd.f32 0.0, %v2863
        %v2865 = vpop.f32.mrf.mxu0
        %v2866 = vadd.f32 0.0, %v2865
        %2867 = vmatmul.bf16.gmra.mxu0 %v2699
        %v2868 = vpop.f32.mrf.mxu0
        %v2869 = vadd.f32 0.0, %v2868
        %v2870 = vpop.f32.mrf.mxu0
        %v2871 = vadd.f32 0.0, %v2870
        %2872 = vmatmul.bf16.gmra.mxu0 %v2702
        %v2873 = vpop.f32.mrf.mxu0
        %v2874 = vadd.f32 0.0, %v2873
        %v2875 = vpop.f32.mrf.mxu0
        %v2876 = vadd.f32 0.0, %v2875
        %2877 = vdwg.mxu0
        %2878 = vmatpush.bf16.msra.mxu0 0
        %2879 = vmatpush.bf16.msra.mxu0 0
        %2880 = vmatpush.bf16.msra.mxu0 0
        %2881 = vmatpush.bf16.msra.mxu0 0
        %2882 = vmatpush.bf16.msra.mxu0 %v2398
        %2883 = vmatpush.bf16.msra.mxu0 %v2382
        %2884 = vmatpush.bf16.msra.mxu0 %v2366
        %2885 = vmatpush.bf16.msra.mxu0 %v2350
        %2886 = vmatmul.bf16.gmra.mxu0 %v2693
        %v2887 = vpop.f32.mrf.mxu0
        %v2888 = vadd.f32 0.0, %v2887
        %v2889 = vpop.f32.mrf.mxu0
        %v2890 = vadd.f32 0.0, %v2889
        %2891 = vmatmul.bf16.gmra.mxu0 %v2696
        %v2892 = vpop.f32.mrf.mxu0
        %v2893 = vadd.f32 0.0, %v2892
        %v2894 = vpop.f32.mrf.mxu0
        %v2895 = vadd.f32 0.0, %v2894
        %2896 = vmatmul.bf16.gmra.mxu0 %v2699
        %v2897 = vpop.f32.mrf.mxu0
        %v2898 = vadd.f32 0.0, %v2897
        %v2899 = vpop.f32.mrf.mxu0
        %v2900 = vadd.f32 0.0, %v2899
        %2901 = vmatmul.bf16.gmra.mxu0 %v2702
        %v2902 = vpop.f32.mrf.mxu0
        %v2903 = vadd.f32 0.0, %v2902
        %v2904 = vpop.f32.mrf.mxu0
        %v2905 = vadd.f32 0.0, %v2904
        %2906 = vdwg.mxu0
        %2907 = vmatpush.bf16.msra.mxu0 0
        %2908 = vmatpush.bf16.msra.mxu0 0
        %2909 = vmatpush.bf16.msra.mxu0 0
        %2910 = vmatpush.bf16.msra.mxu0 0
        %2911 = vmatpush.bf16.msra.mxu0 %v2399
        %2912 = vmatpush.bf16.msra.mxu0 %v2383
        %2913 = vmatpush.bf16.msra.mxu0 %v2367
        %2914 = vmatpush.bf16.msra.mxu0 %v2351
        %2915 = vmatmul.bf16.gmra.mxu0 %v2693
        %v2916 = vpop.f32.mrf.mxu0
        %v2917 = vadd.f32 0.0, %v2916
        %v2918 = vpop.f32.mrf.mxu0
        %v2919 = vadd.f32 0.0, %v2918
        %2920 = vmatmul.bf16.gmra.mxu0 %v2696
        %v2921 = vpop.f32.mrf.mxu0
        %v2922 = vadd.f32 0.0, %v2921
        %v2923 = vpop.f32.mrf.mxu0
        %v2924 = vadd.f32 0.0, %v2923
        %2925 = vmatmul.bf16.gmra.mxu0 %v2699
        %v2926 = vpop.f32.mrf.mxu0
        %v2927 = vadd.f32 0.0, %v2926
        %v2928 = vpop.f32.mrf.mxu0
        %v2929 = vadd.f32 0.0, %v2928
        %2930 = vmatmul.bf16.gmra.mxu0 %v2702
        %v2931 = vpop.f32.mrf.mxu0
        %v2932 = vadd.f32 0.0, %v2931
        %v2933 = vpop.f32.mrf.mxu0
        %v2934 = vadd.f32 0.0, %v2933
        %2935 = vdwg.mxu0
        %2936 = vmatpush.bf16.msra.mxu0 0
        %2937 = vmatpush.bf16.msra.mxu0 0
        %2938 = vmatpush.bf16.msra.mxu0 0
        %2939 = vmatpush.bf16.msra.mxu0 0
        %2940 = vmatpush.bf16.msra.mxu0 %v2400
        %2941 = vmatpush.bf16.msra.mxu0 %v2384
        %2942 = vmatpush.bf16.msra.mxu0 %v2368
        %2943 = vmatpush.bf16.msra.mxu0 %v2352
        %2944 = vmatmul.bf16.gmra.mxu0 %v2693
        %v2945 = vpop.f32.mrf.mxu0
        %v2946 = vadd.f32 0.0, %v2945
        %v2947 = vpop.f32.mrf.mxu0
        %v2948 = vadd.f32 0.0, %v2947
        %2949 = vmatmul.bf16.gmra.mxu0 %v2696
        %v2950 = vpop.f32.mrf.mxu0
        %v2951 = vadd.f32 0.0, %v2950
        %v2952 = vpop.f32.mrf.mxu0
        %v2953 = vadd.f32 0.0, %v2952
        %2954 = vmatmul.bf16.gmra.mxu0 %v2699
        %v2955 = vpop.f32.mrf.mxu0
        %v2956 = vadd.f32 0.0, %v2955
        %v2957 = vpop.f32.mrf.mxu0
        %v2958 = vadd.f32 0.0, %v2957
        %2959 = vmatmul.bf16.gmra.mxu0 %v2702
        %v2960 = vpop.f32.mrf.mxu0
        %v2961 = vadd.f32 0.0, %v2960
        %v2962 = vpop.f32.mrf.mxu0
        %v2963 = vadd.f32 0.0, %v2962
        %2964 = vdwg.mxu0
        %2965 = vmatpush.bf16.msra.mxu0 0
        %2966 = vmatpush.bf16.msra.mxu0 0
        %2967 = vmatpush.bf16.msra.mxu0 0
        %2968 = vmatpush.bf16.msra.mxu0 0
        %2969 = vmatpush.bf16.msra.mxu0 %v2401
        %2970 = vmatpush.bf16.msra.mxu0 %v2385
        %2971 = vmatpush.bf16.msra.mxu0 %v2369
        %2972 = vmatpush.bf16.msra.mxu0 %v2353
        %2973 = vmatmul.bf16.gmra.mxu0 %v2693
        %v2974 = vpop.f32.mrf.mxu0
        %v2975 = vadd.f32 0.0, %v2974
        %v2976 = vpop.f32.mrf.mxu0
        %v2977 = vadd.f32 0.0, %v2976
        %2978 = vmatmul.bf16.gmra.mxu0 %v2696
        %v2979 = vpop.f32.mrf.mxu0
        %v2980 = vadd.f32 0.0, %v2979
        %v2981 = vpop.f32.mrf.mxu0
        %v2982 = vadd.f32 0.0, %v2981
        %2983 = vmatmul.bf16.gmra.mxu0 %v2699
        %v2984 = vpop.f32.mrf.mxu0
        %v2985 = vadd.f32 0.0, %v2984
        %v2986 = vpop.f32.mrf.mxu0
        %v2987 = vadd.f32 0.0, %v2986
        %2988 = vmatmul.bf16.gmra.mxu0 %v2702
        %v2989 = vpop.f32.mrf.mxu0
        %v2990 = vadd.f32 0.0, %v2989
        %v2991 = vpop.f32.mrf.mxu0
        %v2992 = vadd.f32 0.0, %v2991
        %2993 = vdwg.mxu0
        %2994 = vmatpush.bf16.msra.mxu0 0
        %2995 = vmatpush.bf16.msra.mxu0 0
        %2996 = vmatpush.bf16.msra.mxu0 0
        %2997 = vmatpush.bf16.msra.mxu0 0
        %2998 = vmatpush.bf16.msra.mxu0 %v2402
        %2999 = vmatpush.bf16.msra.mxu0 %v2386
        %3000 = vmatpush.bf16.msra.mxu0 %v2370
        %3001 = vmatpush.bf16.msra.mxu0 %v2354
        %3002 = vmatmul.bf16.gmra.mxu0 %v2693
        %v3003 = vpop.f32.mrf.mxu0
        %v3004 = vadd.f32 0.0, %v3003
        %v3005 = vpop.f32.mrf.mxu0
        %v3006 = vadd.f32 0.0, %v3005
        %3007 = vmatmul.bf16.gmra.mxu0 %v2696
        %v3008 = vpop.f32.mrf.mxu0
        %v3009 = vadd.f32 0.0, %v3008
        %v3010 = vpop.f32.mrf.mxu0
        %v3011 = vadd.f32 0.0, %v3010
        %3012 = vmatmul.bf16.gmra.mxu0 %v2699
        %v3013 = vpop.f32.mrf.mxu0
        %v3014 = vadd.f32 0.0, %v3013
        %v3015 = vpop.f32.mrf.mxu0
        %v3016 = vadd.f32 0.0, %v3015
        %3017 = vmatmul.bf16.gmra.mxu0 %v2702
        %v3018 = vpop.f32.mrf.mxu0
        %v3019 = vadd.f32 0.0, %v3018
        %v3020 = vpop.f32.mrf.mxu0
        %v3021 = vadd.f32 0.0, %v3020
        %3022 = vdwg.mxu0
        %3023 = vmatpush.bf16.msra.mxu0 0
        %3024 = vmatpush.bf16.msra.mxu0 0
        %3025 = vmatpush.bf16.msra.mxu0 0
        %3026 = vmatpush.bf16.msra.mxu0 0
        %3027 = vmatpush.bf16.msra.mxu0 %v2403
        %3028 = vmatpush.bf16.msra.mxu0 %v2387
        %3029 = vmatpush.bf16.msra.mxu0 %v2371
        %3030 = vmatpush.bf16.msra.mxu0 %v2355
        %3031 = vmatmul.bf16.gmra.mxu0 %v2693
        %v3032 = vpop.f32.mrf.mxu0
        %v3033 = vadd.f32 0.0, %v3032
        %v3034 = vpop.f32.mrf.mxu0
        %v3035 = vadd.f32 0.0, %v3034
        %3036 = vmatmul.bf16.gmra.mxu0 %v2696
        %v3037 = vpop.f32.mrf.mxu0
        %v3038 = vadd.f32 0.0, %v3037
        %v3039 = vpop.f32.mrf.mxu0
        %v3040 = vadd.f32 0.0, %v3039
        %3041 = vmatmul.bf16.gmra.mxu0 %v2699
        %v3042 = vpop.f32.mrf.mxu0
        %v3043 = vadd.f32 0.0, %v3042
        %v3044 = vpop.f32.mrf.mxu0
        %v3045 = vadd.f32 0.0, %v3044
        %3046 = vmatmul.bf16.gmra.mxu0 %v2702
        %v3047 = vpop.f32.mrf.mxu0
        %v3048 = vadd.f32 0.0, %v3047
        %v3049 = vpop.f32.mrf.mxu0
        %v3050 = vadd.f32 0.0, %v3049
        %3051 = vdwg.mxu0
        %3052 = vmatpush.bf16.msra.mxu0 0
        %3053 = vmatpush.bf16.msra.mxu0 0
        %3054 = vmatpush.bf16.msra.mxu0 0
        %3055 = vmatpush.bf16.msra.mxu0 0
        %3056 = vmatpush.bf16.msra.mxu0 %v2404
        %3057 = vmatpush.bf16.msra.mxu0 %v2388
        %3058 = vmatpush.bf16.msra.mxu0 %v2372
        %3059 = vmatpush.bf16.msra.mxu0 %v2356
        %3060 = vmatmul.bf16.gmra.mxu0 %v2693
        %v3061 = vpop.f32.mrf.mxu0
        %v3062 = vadd.f32 0.0, %v3061
        %v3063 = vpop.f32.mrf.mxu0
        %v3064 = vadd.f32 0.0, %v3063
        %3065 = vmatmul.bf16.gmra.mxu0 %v2696
        %v3066 = vpop.f32.mrf.mxu0
        %v3067 = vadd.f32 0.0, %v3066
        %v3068 = vpop.f32.mrf.mxu0
        %v3069 = vadd.f32 0.0, %v3068
        %3070 = vmatmul.bf16.gmra.mxu0 %v2699
        %v3071 = vpop.f32.mrf.mxu0
        %v3072 = vadd.f32 0.0, %v3071
        %v3073 = vpop.f32.mrf.mxu0
        %v3074 = vadd.f32 0.0, %v3073
        %3075 = vmatmul.bf16.gmra.mxu0 %v2702
        %v3076 = vpop.f32.mrf.mxu0
        %v3077 = vadd.f32 0.0, %v3076
        %v3078 = vpop.f32.mrf.mxu0
        %v3079 = vadd.f32 0.0, %v3078
        %3080 = vdwg.mxu0
        %3081 = vmatpush.bf16.msra.mxu0 0
        %3082 = vmatpush.bf16.msra.mxu0 0
        %3083 = vmatpush.bf16.msra.mxu0 0
        %3084 = vmatpush.bf16.msra.mxu0 0
        %3085 = vmatpush.bf16.msra.mxu0 %v2405
        %3086 = vmatpush.bf16.msra.mxu0 %v2389
        %3087 = vmatpush.bf16.msra.mxu0 %v2373
        %3088 = vmatpush.bf16.msra.mxu0 %v2357
        %3089 = vmatmul.bf16.gmra.mxu0 %v2693
        %v3090 = vpop.f32.mrf.mxu0
        %v3091 = vadd.f32 0.0, %v3090
        %v3092 = vpop.f32.mrf.mxu0
        %v3093 = vadd.f32 0.0, %v3092
        %3094 = vmatmul.bf16.gmra.mxu0 %v2696
        %v3095 = vpop.f32.mrf.mxu0
        %v3096 = vadd.f32 0.0, %v3095
        %v3097 = vpop.f32.mrf.mxu0
        %v3098 = vadd.f32 0.0, %v3097
        %3099 = vmatmul.bf16.gmra.mxu0 %v2699
        %v3100 = vpop.f32.mrf.mxu0
        %v3101 = vadd.f32 0.0, %v3100
        %v3102 = vpop.f32.mrf.mxu0
        %v3103 = vadd.f32 0.0, %v3102
        %3104 = vmatmul.bf16.gmra.mxu0 %v2702
        %v3105 = vpop.f32.mrf.mxu0
        %v3106 = vadd.f32 0.0, %v3105
        %v3107 = vpop.f32.mrf.mxu0
        %v3108 = vadd.f32 0.0, %v3107
        %3109 = vdwg.mxu0
        %3110 = vmatpush.bf16.msra.mxu0 0
        %3111 = vmatpush.bf16.msra.mxu0 0
        %3112 = vmatpush.bf16.msra.mxu0 0
        %3113 = vmatpush.bf16.msra.mxu0 0
        %3114 = vmatpush.bf16.msra.mxu0 %v2406
        %3115 = vmatpush.bf16.msra.mxu0 %v2390
        %3116 = vmatpush.bf16.msra.mxu0 %v2374
        %3117 = vmatpush.bf16.msra.mxu0 %v2358
        %3118 = vmatmul.bf16.gmra.mxu0 %v2693
        %v3119 = vpop.f32.mrf.mxu0
        %v3120 = vadd.f32 0.0, %v3119
        %v3121 = vpop.f32.mrf.mxu0
        %v3122 = vadd.f32 0.0, %v3121
        %3123 = vmatmul.bf16.gmra.mxu0 %v2696
        %v3124 = vpop.f32.mrf.mxu0
        %v3125 = vadd.f32 0.0, %v3124
        %v3126 = vpop.f32.mrf.mxu0
        %v3127 = vadd.f32 0.0, %v3126
        %3128 = vmatmul.bf16.gmra.mxu0 %v2699
        %v3129 = vpop.f32.mrf.mxu0
        %v3130 = vadd.f32 0.0, %v3129
        %v3131 = vpop.f32.mrf.mxu0
        %v3132 = vadd.f32 0.0, %v3131
        %3133 = vmatmul.bf16.gmra.mxu0 %v2702
        %v3134 = vpop.f32.mrf.mxu0
        %v3135 = vadd.f32 0.0, %v3134
        %v3136 = vpop.f32.mrf.mxu0
        %v3137 = vadd.f32 0.0, %v3136
        %3138 = vdwg.mxu0
        %3139 = vmatpush.bf16.msra.mxu0 0
        %3140 = vmatpush.bf16.msra.mxu0 0
        %3141 = vmatpush.bf16.msra.mxu0 0
        %3142 = vmatpush.bf16.msra.mxu0 0
        %3143 = vmatpush.bf16.msra.mxu0 %v2407
        %3144 = vmatpush.bf16.msra.mxu0 %v2391
        %3145 = vmatpush.bf16.msra.mxu0 %v2375
        %3146 = vmatpush.bf16.msra.mxu0 %v2359
        %3147 = vmatmul.bf16.gmra.mxu0 %v2693
        %v3148 = vpop.f32.mrf.mxu0
        %v3149 = vadd.f32 0.0, %v3148
        %v3150 = vpop.f32.mrf.mxu0
        %v3151 = vadd.f32 0.0, %v3150
        %3152 = vmatmul.bf16.gmra.mxu0 %v2696
        %v3153 = vpop.f32.mrf.mxu0
        %v3154 = vadd.f32 0.0, %v3153
        %v3155 = vpop.f32.mrf.mxu0
        %v3156 = vadd.f32 0.0, %v3155
        %3157 = vmatmul.bf16.gmra.mxu0 %v2699
        %v3158 = vpop.f32.mrf.mxu0
        %v3159 = vadd.f32 0.0, %v3158
        %v3160 = vpop.f32.mrf.mxu0
        %v3161 = vadd.f32 0.0, %v3160
        %3162 = vmatmul.bf16.gmra.mxu0 %v2702
        %v3163 = vpop.f32.mrf.mxu0
        %v3164 = vadd.f32 0.0, %v3163
        %v3165 = vpop.f32.mrf.mxu0
        %v3166 = vadd.f32 0.0, %v3165
        %3167 = vdwg.mxu0
        %v3168 = vmax.f32 %v2714, 0.0
        %v3169 = vmax.f32 %v2743, 0.0
        %v3170 = vmax.f32 %v2772, 0.0
        %v3171 = vmax.f32 %v2801, 0.0
        %v3172 = vmax.f32 %v2830, 0.0
        %v3173 = vmax.f32 %v2859, 0.0
        %v3174 = vmax.f32 %v2888, 0.0
        %v3175 = vmax.f32 %v2917, 0.0
        %v3176 = vmax.f32 %v2946, 0.0
        %v3177 = vmax.f32 %v2975, 0.0
        %v3178 = vmax.f32 %v3004, 0.0
        %v3179 = vmax.f32 %v3033, 0.0
        %v3180 = vmax.f32 %v3062, 0.0
        %v3181 = vmax.f32 %v3091, 0.0
        %v3182 = vmax.f32 %v3120, 0.0
        %v3183 = vmax.f32 %v3149, 0.0
        %v3184 = vmax.f32 %v2716, 0.0
        %v3185 = vmax.f32 %v2745, 0.0
        %v3186 = vmax.f32 %v2774, 0.0
        %v3187 = vmax.f32 %v2803, 0.0
        %v3188 = vmax.f32 %v2832, 0.0
        %v3189 = vmax.f32 %v2861, 0.0
        %v3190 = vmax.f32 %v2890, 0.0
        %v3191 = vmax.f32 %v2919, 0.0
        %v3192 = vmax.f32 %v2948, 0.0
        %v3193 = vmax.f32 %v2977, 0.0
        %v3194 = vmax.f32 %v3006, 0.0
        %v3195 = vmax.f32 %v3035, 0.0
        %v3196 = vmax.f32 %v3064, 0.0
        %v3197 = vmax.f32 %v3093, 0.0
        %v3198 = vmax.f32 %v3122, 0.0
        %v3199 = vmax.f32 %v3151, 0.0
        %v3200 = vmax.f32 %v2719, 0.0
        %v3201 = vmax.f32 %v2748, 0.0
        %v3202 = vmax.f32 %v2777, 0.0
        %v3203 = vmax.f32 %v2806, 0.0
        %v3204 = vmax.f32 %v2835, 0.0
        %v3205 = vmax.f32 %v2864, 0.0
        %v3206 = vmax.f32 %v2893, 0.0
        %v3207 = vmax.f32 %v2922, 0.0
        %v3208 = vmax.f32 %v2951, 0.0
        %v3209 = vmax.f32 %v2980, 0.0
        %v3210 = vmax.f32 %v3009, 0.0
        %v3211 = vmax.f32 %v3038, 0.0
        %v3212 = vmax.f32 %v3067, 0.0
        %v3213 = vmax.f32 %v3096, 0.0
        %v3214 = vmax.f32 %v3125, 0.0
        %v3215 = vmax.f32 %v3154, 0.0
        %v3216 = vmax.f32 %v2721, 0.0
        %v3217 = vmax.f32 %v2750, 0.0
        %v3218 = vmax.f32 %v2779, 0.0
        %v3219 = vmax.f32 %v2808, 0.0
        %v3220 = vmax.f32 %v2837, 0.0
        %v3221 = vmax.f32 %v2866, 0.0
        %v3222 = vmax.f32 %v2895, 0.0
        %v3223 = vmax.f32 %v2924, 0.0
        %v3224 = vmax.f32 %v2953, 0.0
        %v3225 = vmax.f32 %v2982, 0.0
        %v3226 = vmax.f32 %v3011, 0.0
        %v3227 = vmax.f32 %v3040, 0.0
        %v3228 = vmax.f32 %v3069, 0.0
        %v3229 = vmax.f32 %v3098, 0.0
        %v3230 = vmax.f32 %v3127, 0.0
        %v3231 = vmax.f32 %v3156, 0.0
        %v3232 = vmax.f32 %v2724, 0.0
        %v3233 = vmax.f32 %v2753, 0.0
        %v3234 = vmax.f32 %v2782, 0.0
        %v3235 = vmax.f32 %v2811, 0.0
        %v3236 = vmax.f32 %v2840, 0.0
        %v3237 = vmax.f32 %v2869, 0.0
        %v3238 = vmax.f32 %v2898, 0.0
        %v3239 = vmax.f32 %v2927, 0.0
        %v3240 = vmax.f32 %v2956, 0.0
        %v3241 = vmax.f32 %v2985, 0.0
        %v3242 = vmax.f32 %v3014, 0.0
        %v3243 = vmax.f32 %v3043, 0.0
        %v3244 = vmax.f32 %v3072, 0.0
        %v3245 = vmax.f32 %v3101, 0.0
        %v3246 = vmax.f32 %v3130, 0.0
        %v3247 = vmax.f32 %v3159, 0.0
        %v3248 = vmax.f32 %v2726, 0.0
        %v3249 = vmax.f32 %v2755, 0.0
        %v3250 = vmax.f32 %v2784, 0.0
        %v3251 = vmax.f32 %v2813, 0.0
        %v3252 = vmax.f32 %v2842, 0.0
        %v3253 = vmax.f32 %v2871, 0.0
        %v3254 = vmax.f32 %v2900, 0.0
        %v3255 = vmax.f32 %v2929, 0.0
        %v3256 = vmax.f32 %v2958, 0.0
        %v3257 = vmax.f32 %v2987, 0.0
        %v3258 = vmax.f32 %v3016, 0.0
        %v3259 = vmax.f32 %v3045, 0.0
        %v3260 = vmax.f32 %v3074, 0.0
        %v3261 = vmax.f32 %v3103, 0.0
        %v3262 = vmax.f32 %v3132, 0.0
        %v3263 = vmax.f32 %v3161, 0.0
        %v3264 = vmax.f32 %v2729, 0.0
        %v3265 = vmax.f32 %v2758, 0.0
        %v3266 = vmax.f32 %v2787, 0.0
        %v3267 = vmax.f32 %v2816, 0.0
        %v3268 = vmax.f32 %v2845, 0.0
        %v3269 = vmax.f32 %v2874, 0.0
        %v3270 = vmax.f32 %v2903, 0.0
        %v3271 = vmax.f32 %v2932, 0.0
        %v3272 = vmax.f32 %v2961, 0.0
        %v3273 = vmax.f32 %v2990, 0.0
        %v3274 = vmax.f32 %v3019, 0.0
        %v3275 = vmax.f32 %v3048, 0.0
        %v3276 = vmax.f32 %v3077, 0.0
        %v3277 = vmax.f32 %v3106, 0.0
        %v3278 = vmax.f32 %v3135, 0.0
        %v3279 = vmax.f32 %v3164, 0.0
        %v3280 = vmax.f32 %v2731, 0.0
        %v3281 = vmax.f32 %v2760, 0.0
        %v3282 = vmax.f32 %v2789, 0.0
        %v3283 = vmax.f32 %v2818, 0.0
        %v3284 = vmax.f32 %v2847, 0.0
        %v3285 = vmax.f32 %v2876, 0.0
        %v3286 = vmax.f32 %v2905, 0.0
        %v3287 = vmax.f32 %v2934, 0.0
        %v3288 = vmax.f32 %v2963, 0.0
        %v3289 = vmax.f32 %v2992, 0.0
        %v3290 = vmax.f32 %v3021, 0.0
        %v3291 = vmax.f32 %v3050, 0.0
        %v3292 = vmax.f32 %v3079, 0.0
        %v3293 = vmax.f32 %v3108, 0.0
        %v3294 = vmax.f32 %v3137, 0.0
        %v3295 = vmax.f32 %v3166, 0.0
        %v3296 = vld [vmem:[%s5] sm:$0xf]
        %v3297 = vpack.c.bf16 %v3184, %v3168
        %v3298 = vpack.c.bf16 %v3185, %v3169
        %v3299 = vpack.c.bf16 %v3186, %v3170
        %v3300 = vpack.c.bf16 %v3187, %v3171
        %v3301 = vpack.c.bf16 %v3188, %v3172
        %v3302 = vpack.c.bf16 %v3189, %v3173
        %v3303 = vpack.c.bf16 %v3190, %v3174
        %v3304 = vpack.c.bf16 %v3191, %v3175
        %v3305 = vpack.c.bf16 %v3192, %v3176
        %v3306 = vpack.c.bf16 %v3193, %v3177
        %v3307 = vpack.c.bf16 %v3194, %v3178
        %v3308 = vpack.c.bf16 %v3195, %v3179
        %v3309 = vpack.c.bf16 %v3196, %v3180
        %v3310 = vpack.c.bf16 %v3197, %v3181
        %v3311 = vpack.c.bf16 %v3198, %v3182
        %v3312 = vpack.c.bf16 %v3199, %v3183
        %v3313 = vpack.c.bf16 %v3216, %v3200
        %v3314 = vpack.c.bf16 %v3217, %v3201
        %v3315 = vpack.c.bf16 %v3218, %v3202
        %v3316 = vpack.c.bf16 %v3219, %v3203
        %v3317 = vpack.c.bf16 %v3220, %v3204
        %v3318 = vpack.c.bf16 %v3221, %v3205
        %v3319 = vpack.c.bf16 %v3222, %v3206
        %v3320 = vpack.c.bf16 %v3223, %v3207
        %v3321 = vpack.c.bf16 %v3224, %v3208
        %v3322 = vpack.c.bf16 %v3225, %v3209
        %v3323 = vpack.c.bf16 %v3226, %v3210
        %v3324 = vpack.c.bf16 %v3227, %v3211
        %v3325 = vpack.c.bf16 %v3228, %v3212
        %v3326 = vpack.c.bf16 %v3229, %v3213
        %v3327 = vpack.c.bf16 %v3230, %v3214
        %v3328 = vpack.c.bf16 %v3231, %v3215
        %v3329 = vpack.c.bf16 %v3248, %v3232
        %v3330 = vpack.c.bf16 %v3249, %v3233
        %v3331 = vpack.c.bf16 %v3250, %v3234
        %v3332 = vpack.c.bf16 %v3251, %v3235
        %v3333 = vpack.c.bf16 %v3252, %v3236
        %v3334 = vpack.c.bf16 %v3253, %v3237
        %v3335 = vpack.c.bf16 %v3254, %v3238
        %v3336 = vpack.c.bf16 %v3255, %v3239
        %v3337 = vpack.c.bf16 %v3256, %v3240
        %v3338 = vpack.c.bf16 %v3257, %v3241
        %v3339 = vpack.c.bf16 %v3258, %v3242
        %v3340 = vpack.c.bf16 %v3259, %v3243
        %v3341 = vpack.c.bf16 %v3260, %v3244
        %v3342 = vpack.c.bf16 %v3261, %v3245
        %v3343 = vpack.c.bf16 %v3262, %v3246
        %v3344 = vpack.c.bf16 %v3263, %v3247
        %v3345 = vpack.c.bf16 %v3280, %v3264
        %v3346 = vpack.c.bf16 %v3281, %v3265
        %v3347 = vpack.c.bf16 %v3282, %v3266
        %v3348 = vpack.c.bf16 %v3283, %v3267
        %v3349 = vpack.c.bf16 %v3284, %v3268
        %v3350 = vpack.c.bf16 %v3285, %v3269
        %v3351 = vpack.c.bf16 %v3286, %v3270
        %v3352 = vpack.c.bf16 %v3287, %v3271
        %v3353 = vpack.c.bf16 %v3288, %v3272
        %v3354 = vpack.c.bf16 %v3289, %v3273
        %v3355 = vpack.c.bf16 %v3290, %v3274
        %v3356 = vpack.c.bf16 %v3291, %v3275
        %v3357 = vpack.c.bf16 %v3292, %v3276
        %v3358 = vpack.c.bf16 %v3293, %v3277
        %v3359 = vpack.c.bf16 %v3294, %v3278
        %v3360 = vpack.c.bf16 %v3295, %v3279
        %v3362 = vsel %vm1544, %v3296, 0
        %3364 = vmatpush.bf16.msra.mxu0 0
        %3365 = vmatpush.bf16.msra.mxu0 0
        %3366 = vmatpush.bf16.msra.mxu0 0
        %3367 = vmatpush.bf16.msra.mxu0 0
        %3368 = vmatpush.bf16.msra.mxu0 %v3345
        %3369 = vmatpush.bf16.msra.mxu0 %v3329
        %3370 = vmatpush.bf16.msra.mxu0 %v3313
        %3371 = vmatpush.bf16.msra.mxu0 %v3297
        %3372 = vmatmul.bf16.gmra.mxu0 %v3362
        %v3373 = vpop.f32.mrf.mxu0
        %v3374 = vadd.f32 0.0, %v3373
        %v3375 = vpop.f32.mrf.mxu0
        %3376 = vdwg.mxu0
        %3377 = vmatpush.bf16.msra.mxu0 0
        %3378 = vmatpush.bf16.msra.mxu0 0
        %3379 = vmatpush.bf16.msra.mxu0 0
        %3380 = vmatpush.bf16.msra.mxu0 0
        %3381 = vmatpush.bf16.msra.mxu0 %v3346
        %3382 = vmatpush.bf16.msra.mxu0 %v3330
        %3383 = vmatpush.bf16.msra.mxu0 %v3314
        %3384 = vmatpush.bf16.msra.mxu0 %v3298
        %3385 = vmatmul.bf16.gmra.mxu0 %v3362
        %v3386 = vpop.f32.mrf.mxu0
        %v3387 = vadd.f32 0.0, %v3386
        %v3388 = vpop.f32.mrf.mxu0
        %3389 = vdwg.mxu0
        %3390 = vmatpush.bf16.msra.mxu0 0
        %3391 = vmatpush.bf16.msra.mxu0 0
        %3392 = vmatpush.bf16.msra.mxu0 0
        %3393 = vmatpush.bf16.msra.mxu0 0
        %3394 = vmatpush.bf16.msra.mxu0 %v3347
        %3395 = vmatpush.bf16.msra.mxu0 %v3331
        %3396 = vmatpush.bf16.msra.mxu0 %v3315
        %3397 = vmatpush.bf16.msra.mxu0 %v3299
        %3398 = vmatmul.bf16.gmra.mxu0 %v3362
        %v3399 = vpop.f32.mrf.mxu0
        %v3400 = vadd.f32 0.0, %v3399
        %v3401 = vpop.f32.mrf.mxu0
        %3402 = vdwg.mxu0
        %3403 = vmatpush.bf16.msra.mxu0 0
        %3404 = vmatpush.bf16.msra.mxu0 0
        %3405 = vmatpush.bf16.msra.mxu0 0
        %3406 = vmatpush.bf16.msra.mxu0 0
        %3407 = vmatpush.bf16.msra.mxu0 %v3348
        %3408 = vmatpush.bf16.msra.mxu0 %v3332
        %3409 = vmatpush.bf16.msra.mxu0 %v3316
        %3410 = vmatpush.bf16.msra.mxu0 %v3300
        %3411 = vmatmul.bf16.gmra.mxu0 %v3362
        %v3412 = vpop.f32.mrf.mxu0
        %v3413 = vadd.f32 0.0, %v3412
        %v3414 = vpop.f32.mrf.mxu0
        %3415 = vdwg.mxu0
        %3416 = vmatpush.bf16.msra.mxu0 0
        %3417 = vmatpush.bf16.msra.mxu0 0
        %3418 = vmatpush.bf16.msra.mxu0 0
        %3419 = vmatpush.bf16.msra.mxu0 0
        %3420 = vmatpush.bf16.msra.mxu0 %v3349
        %3421 = vmatpush.bf16.msra.mxu0 %v3333
        %3422 = vmatpush.bf16.msra.mxu0 %v3317
        %3423 = vmatpush.bf16.msra.mxu0 %v3301
        %3424 = vmatmul.bf16.gmra.mxu0 %v3362
        %v3425 = vpop.f32.mrf.mxu0
        %v3426 = vadd.f32 0.0, %v3425
        %v3427 = vpop.f32.mrf.mxu0
        %3428 = vdwg.mxu0
        %3429 = vmatpush.bf16.msra.mxu0 0
        %3430 = vmatpush.bf16.msra.mxu0 0
        %3431 = vmatpush.bf16.msra.mxu0 0
        %3432 = vmatpush.bf16.msra.mxu0 0
        %3433 = vmatpush.bf16.msra.mxu0 %v3350
        %3434 = vmatpush.bf16.msra.mxu0 %v3334
        %3435 = vmatpush.bf16.msra.mxu0 %v3318
        %3436 = vmatpush.bf16.msra.mxu0 %v3302
        %3437 = vmatmul.bf16.gmra.mxu0 %v3362
        %v3438 = vpop.f32.mrf.mxu0
        %v3439 = vadd.f32 0.0, %v3438
        %v3440 = vpop.f32.mrf.mxu0
        %3441 = vdwg.mxu0
        %3442 = vmatpush.bf16.msra.mxu0 0
        %3443 = vmatpush.bf16.msra.mxu0 0
        %3444 = vmatpush.bf16.msra.mxu0 0
        %3445 = vmatpush.bf16.msra.mxu0 0
        %3446 = vmatpush.bf16.msra.mxu0 %v3351
        %3447 = vmatpush.bf16.msra.mxu0 %v3335
        %3448 = vmatpush.bf16.msra.mxu0 %v3319
        %3449 = vmatpush.bf16.msra.mxu0 %v3303
        %3450 = vmatmul.bf16.gmra.mxu0 %v3362
        %v3451 = vpop.f32.mrf.mxu0
        %v3452 = vadd.f32 0.0, %v3451
        %v3453 = vpop.f32.mrf.mxu0
        %3454 = vdwg.mxu0
        %3455 = vmatpush.bf16.msra.mxu0 0
        %3456 = vmatpush.bf16.msra.mxu0 0
        %3457 = vmatpush.bf16.msra.mxu0 0
        %3458 = vmatpush.bf16.msra.mxu0 0
        %3459 = vmatpush.bf16.msra.mxu0 %v3352
        %3460 = vmatpush.bf16.msra.mxu0 %v3336
        %3461 = vmatpush.bf16.msra.mxu0 %v3320
        %3462 = vmatpush.bf16.msra.mxu0 %v3304
        %3463 = vmatmul.bf16.gmra.mxu0 %v3362
        %v3464 = vpop.f32.mrf.mxu0
        %v3465 = vadd.f32 0.0, %v3464
        %v3466 = vpop.f32.mrf.mxu0
        %3467 = vdwg.mxu0
        %3468 = vmatpush.bf16.msra.mxu0 0
        %3469 = vmatpush.bf16.msra.mxu0 0
        %3470 = vmatpush.bf16.msra.mxu0 0
        %3471 = vmatpush.bf16.msra.mxu0 0
        %3472 = vmatpush.bf16.msra.mxu0 %v3353
        %3473 = vmatpush.bf16.msra.mxu0 %v3337
        %3474 = vmatpush.bf16.msra.mxu0 %v3321
        %3475 = vmatpush.bf16.msra.mxu0 %v3305
        %3476 = vmatmul.bf16.gmra.mxu0 %v3362
        %v3477 = vpop.f32.mrf.mxu0
        %v3478 = vadd.f32 0.0, %v3477
        %v3479 = vpop.f32.mrf.mxu0
        %3480 = vdwg.mxu0
        %3481 = vmatpush.bf16.msra.mxu0 0
        %3482 = vmatpush.bf16.msra.mxu0 0
        %3483 = vmatpush.bf16.msra.mxu0 0
        %3484 = vmatpush.bf16.msra.mxu0 0
        %3485 = vmatpush.bf16.msra.mxu0 %v3354
        %3486 = vmatpush.bf16.msra.mxu0 %v3338
        %3487 = vmatpush.bf16.msra.mxu0 %v3322
        %3488 = vmatpush.bf16.msra.mxu0 %v3306
        %3489 = vmatmul.bf16.gmra.mxu0 %v3362
        %v3490 = vpop.f32.mrf.mxu0
        %v3491 = vadd.f32 0.0, %v3490
        %v3492 = vpop.f32.mrf.mxu0
        %3493 = vdwg.mxu0
        %3494 = vmatpush.bf16.msra.mxu0 0
        %3495 = vmatpush.bf16.msra.mxu0 0
        %3496 = vmatpush.bf16.msra.mxu0 0
        %3497 = vmatpush.bf16.msra.mxu0 0
        %3498 = vmatpush.bf16.msra.mxu0 %v3355
        %3499 = vmatpush.bf16.msra.mxu0 %v3339
        %3500 = vmatpush.bf16.msra.mxu0 %v3323
        %3501 = vmatpush.bf16.msra.mxu0 %v3307
        %3502 = vmatmul.bf16.gmra.mxu0 %v3362
        %v3503 = vpop.f32.mrf.mxu0
        %v3504 = vadd.f32 0.0, %v3503
        %v3505 = vpop.f32.mrf.mxu0
        %3506 = vdwg.mxu0
        %3507 = vmatpush.bf16.msra.mxu0 0
        %3508 = vmatpush.bf16.msra.mxu0 0
        %3509 = vmatpush.bf16.msra.mxu0 0
        %3510 = vmatpush.bf16.msra.mxu0 0
        %3511 = vmatpush.bf16.msra.mxu0 %v3356
        %3512 = vmatpush.bf16.msra.mxu0 %v3340
        %3513 = vmatpush.bf16.msra.mxu0 %v3324
        %3514 = vmatpush.bf16.msra.mxu0 %v3308
        %3515 = vmatmul.bf16.gmra.mxu0 %v3362
        %v3516 = vpop.f32.mrf.mxu0
        %v3517 = vadd.f32 0.0, %v3516
        %v3518 = vpop.f32.mrf.mxu0
        %3519 = vdwg.mxu0
        %3520 = vmatpush.bf16.msra.mxu0 0
        %3521 = vmatpush.bf16.msra.mxu0 0
        %3522 = vmatpush.bf16.msra.mxu0 0
        %3523 = vmatpush.bf16.msra.mxu0 0
        %3524 = vmatpush.bf16.msra.mxu0 %v3357
        %3525 = vmatpush.bf16.msra.mxu0 %v3341
        %3526 = vmatpush.bf16.msra.mxu0 %v3325
        %3527 = vmatpush.bf16.msra.mxu0 %v3309
        %3528 = vmatmul.bf16.gmra.mxu0 %v3362
        %v3529 = vpop.f32.mrf.mxu0
        %v3530 = vadd.f32 0.0, %v3529
        %v3531 = vpop.f32.mrf.mxu0
        %3532 = vdwg.mxu0
        %3533 = vmatpush.bf16.msra.mxu0 0
        %3534 = vmatpush.bf16.msra.mxu0 0
        %3535 = vmatpush.bf16.msra.mxu0 0
        %3536 = vmatpush.bf16.msra.mxu0 0
        %3537 = vmatpush.bf16.msra.mxu0 %v3358
        %3538 = vmatpush.bf16.msra.mxu0 %v3342
        %3539 = vmatpush.bf16.msra.mxu0 %v3326
        %3540 = vmatpush.bf16.msra.mxu0 %v3310
        %3541 = vmatmul.bf16.gmra.mxu0 %v3362
        %v3542 = vpop.f32.mrf.mxu0
        %v3543 = vadd.f32 0.0, %v3542
        %v3544 = vpop.f32.mrf.mxu0
        %3545 = vdwg.mxu0
        %3546 = vmatpush.bf16.msra.mxu0 0
        %3547 = vmatpush.bf16.msra.mxu0 0
        %3548 = vmatpush.bf16.msra.mxu0 0
        %3549 = vmatpush.bf16.msra.mxu0 0
        %3550 = vmatpush.bf16.msra.mxu0 %v3359
        %3551 = vmatpush.bf16.msra.mxu0 %v3343
        %3552 = vmatpush.bf16.msra.mxu0 %v3327
        %3553 = vmatpush.bf16.msra.mxu0 %v3311
        %3554 = vmatmul.bf16.gmra.mxu0 %v3362
        %v3555 = vpop.f32.mrf.mxu0
        %v3556 = vadd.f32 0.0, %v3555
        %v3557 = vpop.f32.mrf.mxu0
        %3558 = vdwg.mxu0
        %3559 = vmatpush.bf16.msra.mxu0 0
        %3560 = vmatpush.bf16.msra.mxu0 0
        %3561 = vmatpush.bf16.msra.mxu0 0
        %3562 = vmatpush.bf16.msra.mxu0 0
        %3563 = vmatpush.bf16.msra.mxu0 %v3360
        %3564 = vmatpush.bf16.msra.mxu0 %v3344
        %3565 = vmatpush.bf16.msra.mxu0 %v3328
        %3566 = vmatpush.bf16.msra.mxu0 %v3312
        %3567 = vmatmul.bf16.gmra.mxu0 %v3362
        %v3568 = vpop.f32.mrf.mxu0
        %v3569 = vadd.f32 0.0, %v3568
        %v3570 = vpop.f32.mrf.mxu0
        %3571 = vdwg.mxu0
        %3572 = vst [vmem:[%s302] sm:$0xff] %v3374
        %3573 = vst [vmem:[%s302 + $0x8] sm:$0xff] %v3387
        %3574 = vst [vmem:[%s302 + $0x10] sm:$0xff] %v3400
        %3575 = vst [vmem:[%s302 + $0x18] sm:$0xff] %v3413
        %3576 = vst [vmem:[%s302 + $0x20] sm:$0xff] %v3426
        %3577 = vst [vmem:[%s302 + $0x28] sm:$0xff] %v3439
        %3578 = vst [vmem:[%s302 + $0x30] sm:$0xff] %v3452
        %3579 = vst [vmem:[%s302 + $0x38] sm:$0xff] %v3465
        %3580 = vst [vmem:[%s302 + $0x40] sm:$0xff] %v3478
        %3581 = vst [vmem:[%s302 + $0x48] sm:$0xff] %v3491
        %3582 = vst [vmem:[%s302 + $0x50] sm:$0xff] %v3504
        %3583 = vst [vmem:[%s302 + $0x58] sm:$0xff] %v3517
        %3584 = vst [vmem:[%s302 + $0x60] sm:$0xff] %v3530
        %3585 = vst [vmem:[%s302 + $0x68] sm:$0xff] %v3543
        %3586 = vst [vmem:[%s302 + $0x70] sm:$0xff] %v3556
        %3587 = vst [vmem:[%s302 + $0x78] sm:$0xff] %v3569
        %v3604 = vrot.slane %v1623, 7
        %v3605 = vrot.slane %v1656, 6
        %v3606 = vrot.slane %v1689, 5
        %v3607 = vrot.slane %v1722, 4
        %v3608 = vrot.slane %v1755, 3
        %v3609 = vrot.slane %v1788, 2
        %v3610 = vrot.slane %v1821, 1
        %v3611 = vrot.slane %v1887, 7
        %v3612 = vrot.slane %v1920, 6
        %v3613 = vrot.slane %v1953, 5
        %v3614 = vrot.slane %v1986, 4
        %v3615 = vrot.slane %v2019, 3
        %v3616 = vrot.slane %v2052, 2
        %v3617 = vrot.slane %v2085, 1
        %vm3618 = vcmask 1040384
        %v3619 = vsel %vm3618, %v1590, %v3604
        %vm3620 = vcmask 1042434
        %v3621 = vsel %vm3620, %v3605, %v3606
        %vm3622 = vcmask 1041408
        %v3623 = vsel %vm3622, %v3619, %v3621
        %vm3624 = vcmask 1044484
        %v3625 = vsel %vm3624, %v3607, %v3608
        %vm3626 = vcmask 1046534
        %v3627 = vsel %vm3626, %v3609, %v3610
        %vm3628 = vcmask 1045508
        %v3629 = vsel %vm3628, %v3625, %v3627
        %vm3630 = vcmask 1043456
        %v3631 = vsel %vm3630, %v3623, %v3629
        %v3632 = vsel %vm3618, %v1854, %v3611
        %v3633 = vsel %vm3620, %v3612, %v3613
        %v3634 = vsel %vm3622, %v3632, %v3633
        %v3635 = vsel %vm3624, %v3614, %v3615
        %v3636 = vsel %vm3626, %v3616, %v3617
        %v3637 = vsel %vm3628, %v3635, %v3636
        %v3638 = vsel %vm3630, %v3634, %v3637
        %s3641 = scalar_lea.vmem %s302, 3
        %3642 = vst [vmem:[%s3641] ss:$8 sm:$0xf] %v3631
        %3643 = vst [vmem:[%s3641] ss:$8 sm:$0xf0] %v3631
        %s3644 = scalar_lea.vmem %s302, 67
        %3645 = vst [vmem:[%s3644] ss:$8 sm:$0xf] %v3638
        %3646 = vst [vmem:[%s3644] ss:$8 sm:$0xf0] %v3638
        %3663 = vst [vmem:[#allocation1] sm:$0xff] %v2648
        %3664 = vst [vmem:[#allocation1 + $0x9] sm:$0xff] %v2649
        %3665 = vst [vmem:[#allocation1 + $0x12] sm:$0xff] %v2650
        %3666 = vst [vmem:[#allocation1 + $0x1b] sm:$0xff] %v2651
        %3667 = vst [vmem:[#allocation1 + $0x24] sm:$0xff] %v2652
        %3668 = vst [vmem:[#allocation1 + $0x2d] sm:$0xff] %v2653
        %3669 = vst [vmem:[#allocation1 + $0x36] sm:$0xff] %v2654
        %3670 = vst [vmem:[#allocation1 + $0x3f] sm:$0xff] %v2655
        %s3671 = scalar_lea.vmem [#allocation1], 1
        %v3672 = vld [vmem:[%s3671] ss:$9 sm:$0xff]
        %3673 = vst [vmem:[#allocation1] sm:$0xff] %v2656
        %3674 = vst [vmem:[#allocation1 + $0x9] sm:$0xff] %v2657
        %3675 = vst [vmem:[#allocation1 + $0x12] sm:$0xff] %v2658
        %3676 = vst [vmem:[#allocation1 + $0x1b] sm:$0xff] %v2659
        %3677 = vst [vmem:[#allocation1 + $0x24] sm:$0xff] %v2660
        %3678 = vst [vmem:[#allocation1 + $0x2d] sm:$0xff] %v2661
        %3679 = vst [vmem:[#allocation1 + $0x36] sm:$0xff] %v2662
        %3680 = vst [vmem:[#allocation1 + $0x3f] sm:$0xff] %v2663
        %v3681 = vld [vmem:[%s3671] ss:$9 sm:$0xff]
        %s3684 = scalar_lea.vmem %s302, 4
        %3685 = vst [vmem:[%s3684] ss:$8 sm:$0xf] %v3672
        %3686 = vst [vmem:[%s3684] ss:$8 sm:$0xf0] %v3672
        %s3687 = scalar_lea.vmem %s302, 68
        %3688 = vst [vmem:[%s3687] ss:$8 sm:$0xf] %v3681
        %3689 = vst [vmem:[%s3687] ss:$8 sm:$0xf0] %v3681
        %s3690 = smul.u32 16, %s17
        %p3691 = scmp.lt.s32.totalorder %s3690, 31
        %s3692 = scalar_select %p3691, %s3690, 31
        %s3693 = smul.addr %s3692, 8
        %s3694 = scalar_lea.vmem %s6, %s3693
        // Predicated region
        $region68: #{colorsdf_forward.1} parent=62 // pred_check
          %p3695 = pneg %p166
        $region69: #{colorsdf_forward.1} parent=62 // pred_check_branch
          %3697 = sbr.rel (%p3695) target = $region71
        $region70: #{colorsdf_forward.1} parent=62 // pred_region
          %s3698 = smul.u32 16, %s17
        $region71: #{colorsdf_forward.1} parent=62 // pred_fallthru
          _
      $region63: #{colorsdf_forward.1} parent=5 // pred_fallthru
        _
      %p3699 = scmp.le.s32.totalorder 2, %s12
      // Predicated region
      $region72: #{colorsdf_forward.1} parent=5 // pred_check
        %p3700 = pneg %p3699
      $region73: #{colorsdf_forward.1} parent=5 // pred_check_branch
        %3702 = sbr.rel (%p3700) target = $region75
      $region74: #{colorsdf_forward.1} parent=5 // pred_region
        %s3703 = ssub.s32 %s12, 2
        // Predicated region
        $region76: #{colorsdf_forward.1} parent=74 // pred_check
          %p3704 = pneg %p172
        $region77: #{colorsdf_forward.1} parent=74 // pred_check_branch
          %3706 = sbr.rel (%p3704) target = $region79
        $region78: #{colorsdf_forward.1} parent=74 // pred_region
          %s3707 = smul.u32 16, %s18
          %p3708 = scmp.lt.s32.totalorder %s3707, 31
          %s3709 = scalar_select %p3708, %s3707, 31
          %s3710 = smul.addr %s3709, 8
          %s3711 = scalar_lea.vmem %s6, %s3710
        $region79: #{colorsdf_forward.1} parent=74 // pred_fallthru
          _
      $region75: #{colorsdf_forward.1} parent=5 // pred_fallthru
        _
    $region6: #{colorsdf_forward.1} parent=1 // loop_footer
      %s16 = sadd.s32 1, %s12
    $region7: #{colorsdf_forward.1} parent=1 // loop_footer_branch
      %11 = sbr.rel target = $region3
    $region8: #{colorsdf_forward.1} parent=1 // loop_exit
      _

</llo_original>
